<compile_context>
chip_gen: v5e
topology: v5e:2x2
jax: 0.10.0
libtpu: 0.0.40
codegen_flags: <defaults>
</compile_context>

<pallas_src>
import jax
import jax.numpy as jnp
from jax.experimental import pallas as pl
from jax.experimental.pallas import tpu as pltpu


def _leaky_relu(x, slope=0.2):
    return jnp.where(x > 0, x, slope * x)


def _round_up(v, m):
    return ((v + m - 1) // m) * m


def discriminator_kernel(x_ref, c_ref, w1x_ref, w1c_ref, b1_ref,
                         w2_ref, b2_ref, w3_ref, b3_ref, w4_ref, b4_ref,
                         o_ref):
    f32, bf16 = jnp.float32, jnp.bfloat16
    # Layer 1: cat([x, c]) @ W1 expressed as x @ W1[:784] + c @ W1[784:].
    # All operands are bf16 -> native MXU path; accumulate in f32.
    h = jnp.dot(x_ref[...], w1x_ref[...], preferred_element_type=f32)
    h = h + jnp.dot(c_ref[...], w1c_ref[...], preferred_element_type=f32)
    h = _leaky_relu(h + b1_ref[...])
    # TODO(synk): Dropout(0.3) is identity here (eval-mode semantics).
    # Layer 2
    h = _leaky_relu(
        jnp.dot(h.astype(bf16), w2_ref[...], preferred_element_type=f32) + b2_ref[...])
    # Layer 3
    h = _leaky_relu(
        jnp.dot(h.astype(bf16), w3_ref[...], preferred_element_type=f32) + b3_ref[...])
    # Layer 4 (output lanes padded 1 -> 8; wrapper slices column 0) + Sigmoid.
    logits = jnp.dot(h.astype(bf16), w4_ref[...], preferred_element_type=f32) + b4_ref[...]
    o_ref[...] = pl.reciprocal(1.0 + jnp.exp(-logits), approx=True)


def init_params(key):
    """Raw parameters mirroring the PyTorch module's shapes (f32)."""
    ks = jax.random.split(key, 9)

    def linear(kw, kb, fan_in, fan_out):
        bound = 1.0 / jnp.sqrt(fan_in)
        w = jax.random.uniform(kw, (fan_in, fan_out), jnp.float32, -bound, bound)
        b = jax.random.uniform(kb, (1, fan_out), jnp.float32, -bound, bound)
        return w, b

    emb = jax.random.normal(ks[0], (10, 10), jnp.float32)   # nn.Embedding(10, 10)
    w1, b1 = linear(ks[1], ks[2], 794, 1024)
    w2, b2 = linear(ks[3], ks[4], 1024, 512)
    w3, b3 = linear(ks[5], ks[6], 512, 256)
    w4, b4 = linear(ks[7], ks[8], 256, 1)
    return dict(emb=emb, w1=w1, b1=b1, w2=w2, b2=b2, w3=w3, b3=b3, w4=w4, b4=b4)


def pack_params(raw):
    """One-time preprocessing: split/pad W1, pad W4/emb, cast weights to bf16."""
    bf16 = jnp.bfloat16
    # Embedding padded 10 -> 16 lanes (zero columns); kept f32 until the bf16 cast of c.
    emb_p = jnp.pad(raw["emb"], ((0, 0), (0, 16 - 10)))                      # (10, 16)
    # W1 split at the image/label boundary; label part zero-padded to 16 K-rows.
    w1x = raw["w1"][:784].astype(bf16)                                       # (784, 1024)
    w1c = jnp.pad(raw["w1"][784:], ((0, 16 - 10), (0, 0))).astype(bf16)      # (16, 1024)
    # Final layer padded 1 -> 8 output lanes (zero columns).
    w4p = jnp.pad(raw["w4"], ((0, 0), (0, 8 - 1))).astype(bf16)              # (256, 8)
    b4p = jnp.pad(raw["b4"], ((0, 0), (0, 8 - 1)))                           # (1, 8)
    return dict(
        emb_p=emb_p,
        w1x=w1x, w1c=w1c, b1=raw["b1"],
        w2=raw["w2"].astype(bf16), b2=raw["b2"],
        w3=raw["w3"].astype(bf16), b3=raw["b3"],
        w4=w4p, b4=b4p,
    )


def discriminator_forward(params, x, labels):
    """x: (B, 784) float32, labels: (B,) int32 -> (B, 1) float32."""
    bf16 = jnp.bfloat16
    B = x.shape[0]

    # Glue: embedding lookup (tiny gather). Concat is fused into the kernel.
    c = jnp.take(params["emb_p"], labels, axis=0).astype(bf16)   # (B, 16), cols 10.. zero
    x_b = x.astype(bf16)                                         # stream x as bf16

    # Batch tiling:
    #  * small batches (B <= 128): one grid step, rows rounded up to a multiple of 16
    #    (bf16 sublane packing).
    #  * larger batches: >= 2 grid steps so v7x can shard the parallel batch axis over
    #    its 2 TensorCores, with tiles capped at 512 rows (amortizes per-step overhead
    #    on v5e/v6e while staying far under the VMEM limit).
    if B <= 128:
        tile_b = _round_up(max(B, 16), 16)
        b_pad = tile_b
    else:
        tile_b = min(512, _round_up(pl.cdiv(_round_up(B, 16), 2), 16))
        b_pad = _round_up(B, tile_b)
    if b_pad != B:
        x_b = jnp.pad(x_b, ((0, b_pad - B), (0, 0)))
        c = jnp.pad(c, ((0, b_pad - B), (0, 0)))
    grid = (b_pad // tile_b,)

    def batch_spec(n):
        return pl.BlockSpec((tile_b, n), lambda i: (i, 0))

    def resident_spec(shape):
        # Constant index_map -> block stays resident in VMEM across grid steps.
        return pl.BlockSpec(shape, lambda i: (0, 0))

    in_specs = [
        batch_spec(784),             # x  (bf16)
        batch_spec(16),              # c  (bf16)
        resident_spec((784, 1024)),  # w1x (bf16)
        resident_spec((16, 1024)),   # w1c (bf16)
        resident_spec((1, 1024)),    # b1  (f32)
        resident_spec((1024, 512)),  # w2  (bf16)
        resident_spec((1, 512)),     # b2  (f32)
        resident_spec((512, 256)),   # w3  (bf16)
        resident_spec((1, 256)),     # b3  (f32)
        resident_spec((256, 8)),     # w4  (bf16, padded)
        resident_spec((1, 8)),       # b4  (f32, padded)
    ]

    out = pl.pallas_call(
        discriminator_kernel,
        grid=grid,
        out_shape=jax.ShapeDtypeStruct((b_pad, 8), jnp.float32),
        in_specs=in_specs,
        out_specs=batch_spec(8),
        compiler_params=pltpu.CompilerParams(
            dimension_semantics=("parallel",),
            vmem_limit_bytes=32 << 20,
        ),
    )(x_b, c,
      params["w1x"], params["w1c"], params["b1"],
      params["w2"], params["b2"],
      params["w3"], params["b3"],
      params["w4"], params["b4"])

    return out[:B, :1]                                           # (B, 1)


def reference_forward(params, x, labels):
    """Pure-JAX reference mirroring the kernel's numerics (bf16 operands, f32 accum)."""
    f32, bf16 = jnp.float32, jnp.bfloat16
    c = jnp.take(params["emb_p"], labels, axis=0).astype(bf16)
    xb = x.astype(bf16)
    h = (jnp.dot(xb, params["w1x"], preferred_element_type=f32)
         + jnp.dot(c, params["w1c"], preferred_element_type=f32))
    h = _leaky_relu(h + params["b1"])
    h = _leaky_relu(
        jnp.dot(h.astype(bf16), params["w2"], preferred_element_type=f32) + params["b2"])
    h = _leaky_relu(
        jnp.dot(h.astype(bf16), params["w3"], preferred_element_type=f32) + params["b3"])
    logits = jnp.dot(h.astype(bf16), params["w4"], preferred_element_type=f32) + params["b4"]
    return jax.nn.sigmoid(logits[:, :1])


if __name__ == "__main__":
    key = jax.random.PRNGKey(0)
    k_params, k_x, k_lbl = jax.random.split(key, 3)

    params = pack_params(init_params(k_params))

    B = 8  # small batch
    x = jax.random.normal(k_x, (B, 784), jnp.float32)        # flattened 1x28x28
    labels = jax.random.randint(k_lbl, (B,), 0, 10, jnp.int32)

    out = discriminator_forward(params, x, labels)
    out = jax.block_until_ready(out)

    ref = reference_forward(params, x, labels)
    assert out.shape == (B, 1), out.shape
    max_diff = jnp.max(jnp.abs(out - ref))
    # Tolerance covers bf16 accumulation-order differences + approx (EUP) reciprocal.
    assert jnp.allclose(out, ref, atol=2e-3, rtol=2e-3), f"max diff {max_diff}"

    print("KERNEL_OK")
</pallas_src>

<mosaic_0001>
module attributes {stable_mosaic.version = 11 : i64} {
  func.func @discriminator_kernel(%arg0: i32, %arg1: memref<16x784xbf16, #tpu.memory_space<vmem>>, %arg2: memref<16x16xbf16, #tpu.memory_space<vmem>>, %arg3: memref<784x1024xbf16, #tpu.memory_space<vmem>>, %arg4: memref<16x1024xbf16, #tpu.memory_space<vmem>>, %arg5: memref<1x1024xf32, #tpu.memory_space<vmem>>, %arg6: memref<1024x512xbf16, #tpu.memory_space<vmem>>, %arg7: memref<1x512xf32, #tpu.memory_space<vmem>>, %arg8: memref<512x256xbf16, #tpu.memory_space<vmem>>, %arg9: memref<1x256xf32, #tpu.memory_space<vmem>>, %arg10: memref<256x8xbf16, #tpu.memory_space<vmem>>, %arg11: memref<1x8xf32, #tpu.memory_space<vmem>>, %arg12: memref<16x8xf32, #tpu.memory_space<vmem>>) attributes {dimension_semantics = [#tpu.dimension_semantics<parallel>], iteration_bounds = array<i64: 1>, scalar_prefetch = 0 : i64, scratch_operands = 0 : i64, tpu.core_type = #tpu.core_type<tc>, window_params = [{transform_indices = @transform_0, window_bounds = array<i64: 16, 784>}, {transform_indices = @transform_1, window_bounds = array<i64: 16, 16>}, {pipeline_mode = #tpu.pipeline_mode<synchronous>, transform_indices = @transform_2, window_bounds = array<i64: 784, 1024>}, {pipeline_mode = #tpu.pipeline_mode<synchronous>, transform_indices = @transform_3, window_bounds = array<i64: 16, 1024>}, {pipeline_mode = #tpu.pipeline_mode<synchronous>, transform_indices = @transform_4, window_bounds = array<i64: 1, 1024>}, {pipeline_mode = #tpu.pipeline_mode<synchronous>, transform_indices = @transform_5, window_bounds = array<i64: 1024, 512>}, {pipeline_mode = #tpu.pipeline_mode<synchronous>, transform_indices = @transform_6, window_bounds = array<i64: 1, 512>}, {pipeline_mode = #tpu.pipeline_mode<synchronous>, transform_indices = @transform_7, window_bounds = array<i64: 512, 256>}, {pipeline_mode = #tpu.pipeline_mode<synchronous>, transform_indices = @transform_8, window_bounds = array<i64: 1, 256>}, {pipeline_mode = #tpu.pipeline_mode<synchronous>, transform_indices = @transform_9, window_bounds = array<i64: 256, 8>}, {pipeline_mode = #tpu.pipeline_mode<synchronous>, transform_indices = @transform_10, window_bounds = array<i64: 1, 8>}, {transform_indices = @transform_11, window_bounds = array<i64: 16, 8>}]} {
    %c0 = arith.constant 0 : index
    %c0_0 = arith.constant 0 : index
    %0 = vector.load %arg1[%c0, %c0_0] : memref<16x784xbf16, #tpu.memory_space<vmem>>, vector<16x784xbf16>
    %c0_1 = arith.constant 0 : index
    %c0_2 = arith.constant 0 : index
    %1 = vector.load %arg3[%c0_1, %c0_2] : memref<784x1024xbf16, #tpu.memory_space<vmem>>, vector<784x1024xbf16>
    %cst = arith.constant dense<0.000000e+00> : vector<16x1024xf32>
    %2 = tpu.matmul %0, %1, %cst {dimension_numbers = #tpu.dot_dimension_numbers<[1], [0], [0], [1], [0, 0, 1, 1], [], []>} : vector<16x784xbf16>, vector<784x1024xbf16>, vector<16x1024xf32> -> vector<16x1024xf32>
    %c0_3 = arith.constant 0 : index
    %c0_4 = arith.constant 0 : index
    %3 = vector.load %arg2[%c0_3, %c0_4] : memref<16x16xbf16, #tpu.memory_space<vmem>>, vector<16x16xbf16>
    %c0_5 = arith.constant 0 : index
    %c0_6 = arith.constant 0 : index
    %4 = vector.load %arg4[%c0_5, %c0_6] : memref<16x1024xbf16, #tpu.memory_space<vmem>>, vector<16x1024xbf16>
    %cst_7 = arith.constant dense<0.000000e+00> : vector<16x1024xf32>
    %5 = tpu.matmul %3, %4, %cst_7 {dimension_numbers = #tpu.dot_dimension_numbers<[1], [0], [0], [1], [0, 0, 1, 1], [], []>} : vector<16x16xbf16>, vector<16x1024xbf16>, vector<16x1024xf32> -> vector<16x1024xf32>
    %6 = arith.addf %2, %5 : vector<16x1024xf32>
    %c0_8 = arith.constant 0 : index
    %c0_9 = arith.constant 0 : index
    %7 = vector.load %arg5[%c0_8, %c0_9] : memref<1x1024xf32, #tpu.memory_space<vmem>>, vector<1x1024xf32>
    %8 = vector.broadcast %7 : vector<1x1024xf32> to vector<16x1024xf32>
    %9 = arith.addf %6, %8 : vector<16x1024xf32>
    %cst_10 = arith.constant 0.000000e+00 : f32
    %10 = vector.broadcast %cst_10 : f32 to vector<16x1024xf32>
    %11 = arith.cmpf ogt, %9, %10 : vector<16x1024xf32>
    %cst_11 = arith.constant 2.000000e-01 : f32
    %12 = vector.broadcast %cst_11 : f32 to vector<16x1024xf32>
    %13 = arith.mulf %12, %9 : vector<16x1024xf32>
    %14 = arith.select %11, %9, %13 : vector<16x1024xi1>, vector<16x1024xf32>
    %15 = arith.truncf %14 : vector<16x1024xf32> to vector<16x1024xbf16>
    %c0_12 = arith.constant 0 : index
    %c0_13 = arith.constant 0 : index
    %16 = vector.load %arg6[%c0_12, %c0_13] : memref<1024x512xbf16, #tpu.memory_space<vmem>>, vector<1024x512xbf16>
    %cst_14 = arith.constant dense<0.000000e+00> : vector<16x512xf32>
    %17 = tpu.matmul %15, %16, %cst_14 {dimension_numbers = #tpu.dot_dimension_numbers<[1], [0], [0], [1], [0, 0, 1, 1], [], []>} : vector<16x1024xbf16>, vector<1024x512xbf16>, vector<16x512xf32> -> vector<16x512xf32>
    %c0_15 = arith.constant 0 : index
    %c0_16 = arith.constant 0 : index
    %18 = vector.load %arg7[%c0_15, %c0_16] : memref<1x512xf32, #tpu.memory_space<vmem>>, vector<1x512xf32>
    %19 = vector.broadcast %18 : vector<1x512xf32> to vector<16x512xf32>
    %20 = arith.addf %17, %19 : vector<16x512xf32>
    %cst_17 = arith.constant 0.000000e+00 : f32
    %21 = vector.broadcast %cst_17 : f32 to vector<16x512xf32>
    %22 = arith.cmpf ogt, %20, %21 : vector<16x512xf32>
    %cst_18 = arith.constant 2.000000e-01 : f32
    %23 = vector.broadcast %cst_18 : f32 to vector<16x512xf32>
    %24 = arith.mulf %23, %20 : vector<16x512xf32>
    %25 = arith.select %22, %20, %24 : vector<16x512xi1>, vector<16x512xf32>
    %26 = arith.truncf %25 : vector<16x512xf32> to vector<16x512xbf16>
    %c0_19 = arith.constant 0 : index
    %c0_20 = arith.constant 0 : index
    %27 = vector.load %arg8[%c0_19, %c0_20] : memref<512x256xbf16, #tpu.memory_space<vmem>>, vector<512x256xbf16>
    %cst_21 = arith.constant dense<0.000000e+00> : vector<16x256xf32>
    %28 = tpu.matmul %26, %27, %cst_21 {dimension_numbers = #tpu.dot_dimension_numbers<[1], [0], [0], [1], [0, 0, 1, 1], [], []>} : vector<16x512xbf16>, vector<512x256xbf16>, vector<16x256xf32> -> vector<16x256xf32>
    %c0_22 = arith.constant 0 : index
    %c0_23 = arith.constant 0 : index
    %29 = vector.load %arg9[%c0_22, %c0_23] : memref<1x256xf32, #tpu.memory_space<vmem>>, vector<1x256xf32>
    %30 = vector.broadcast %29 : vector<1x256xf32> to vector<16x256xf32>
    %31 = arith.addf %28, %30 : vector<16x256xf32>
    %cst_24 = arith.constant 0.000000e+00 : f32
    %32 = vector.broadcast %cst_24 : f32 to vector<16x256xf32>
    %33 = arith.cmpf ogt, %31, %32 : vector<16x256xf32>
    %cst_25 = arith.constant 2.000000e-01 : f32
    %34 = vector.broadcast %cst_25 : f32 to vector<16x256xf32>
    %35 = arith.mulf %34, %31 : vector<16x256xf32>
    %36 = arith.select %33, %31, %35 : vector<16x256xi1>, vector<16x256xf32>
    %37 = arith.truncf %36 : vector<16x256xf32> to vector<16x256xbf16>
    %c0_26 = arith.constant 0 : index
    %c0_27 = arith.constant 0 : index
    %38 = vector.load %arg10[%c0_26, %c0_27] : memref<256x8xbf16, #tpu.memory_space<vmem>>, vector<256x8xbf16>
    %cst_28 = arith.constant dense<0.000000e+00> : vector<16x8xf32>
    %39 = tpu.matmul %37, %38, %cst_28 {dimension_numbers = #tpu.dot_dimension_numbers<[1], [0], [0], [1], [0, 0, 1, 1], [], []>} : vector<16x256xbf16>, vector<256x8xbf16>, vector<16x8xf32> -> vector<16x8xf32>
    %c0_29 = arith.constant 0 : index
    %c0_30 = arith.constant 0 : index
    %40 = vector.load %arg11[%c0_29, %c0_30] : memref<1x8xf32, #tpu.memory_space<vmem>>, vector<1x8xf32>
    %41 = vector.broadcast %40 : vector<1x8xf32> to vector<16x8xf32>
    %42 = arith.addf %39, %41 : vector<16x8xf32>
    %cst_31 = arith.constant 0.000000e+00 : f32
    %43 = vector.broadcast %cst_31 : f32 to vector<16x8xf32>
    %44 = arith.subf %43, %42 : vector<16x8xf32>
    %45 = math.exp %44 : vector<16x8xf32>
    %cst_32 = arith.constant 1.000000e+00 : f32
    %46 = vector.broadcast %cst_32 : f32 to vector<16x8xf32>
    %47 = arith.addf %46, %45 : vector<16x8xf32>
    %48 = tpu.reciprocal %47 {approx = true} : vector<16x8xf32> -> vector<16x8xf32>
    %c0_33 = arith.constant 0 : index
    %c0_34 = arith.constant 0 : index
    %49 = vector.load %arg12[%c0_33, %c0_34] : memref<16x8xf32, #tpu.memory_space<vmem>>, vector<16x8xf32>
    tpu.vector_store %arg12[%c0_33, %c0_34], %48 {strides = array<i32>} : memref<16x8xf32, #tpu.memory_space<vmem>>, vector<16x8xf32>,
    return
  }
  func.func @transform_0(%arg0: i32) -> (i32, i32) {
    %c0_i32 = arith.constant 0 : i32
    %c0_i32_0 = arith.constant 0 : i32
    return %arg0, %c0_i32 : i32, i32
  }
  func.func @transform_1(%arg0: i32) -> (i32, i32) {
    %c0_i32 = arith.constant 0 : i32
    %c0_i32_0 = arith.constant 0 : i32
    return %arg0, %c0_i32 : i32, i32
  }
  func.func @transform_2(%arg0: i32) -> (i32, i32) {
    %c0_i32 = arith.constant 0 : i32
    %c0_i32_0 = arith.constant 0 : i32
    %c0_i32_1 = arith.constant 0 : i32
    return %c0_i32, %c0_i32_0 : i32, i32
  }
  func.func @transform_3(%arg0: i32) -> (i32, i32) {
    %c0_i32 = arith.constant 0 : i32
    %c0_i32_0 = arith.constant 0 : i32
    %c0_i32_1 = arith.constant 0 : i32
    return %c0_i32, %c0_i32_0 : i32, i32
  }
  func.func @transform_4(%arg0: i32) -> (i32, i32) {
    %c0_i32 = arith.constant 0 : i32
    %c0_i32_0 = arith.constant 0 : i32
    %c0_i32_1 = arith.constant 0 : i32
    return %c0_i32, %c0_i32_0 : i32, i32
  }
  func.func @transform_5(%arg0: i32) -> (i32, i32) {
    %c0_i32 = arith.constant 0 : i32
    %c0_i32_0 = arith.constant 0 : i32
    %c0_i32_1 = arith.constant 0 : i32
    return %c0_i32, %c0_i32_0 : i32, i32
  }
  func.func @transform_6(%arg0: i32) -> (i32, i32) {
    %c0_i32 = arith.constant 0 : i32
    %c0_i32_0 = arith.constant 0 : i32
    %c0_i32_1 = arith.constant 0 : i32
    return %c0_i32, %c0_i32_0 : i32, i32
  }
  func.func @transform_7(%arg0: i32) -> (i32, i32) {
    %c0_i32 = arith.constant 0 : i32
    %c0_i32_0 = arith.constant 0 : i32
    %c0_i32_1 = arith.constant 0 : i32
    return %c0_i32, %c0_i32_0 : i32, i32
  }
  func.func @transform_8(%arg0: i32) -> (i32, i32) {
    %c0_i32 = arith.constant 0 : i32
    %c0_i32_0 = arith.constant 0 : i32
    %c0_i32_1 = arith.constant 0 : i32
    return %c0_i32, %c0_i32_0 : i32, i32
  }
  func.func @transform_9(%arg0: i32) -> (i32, i32) {
    %c0_i32 = arith.constant 0 : i32
    %c0_i32_0 = arith.constant 0 : i32
    %c0_i32_1 = arith.constant 0 : i32
    return %c0_i32, %c0_i32_0 : i32, i32
  }
  func.func @transform_10(%arg0: i32) -> (i32, i32) {
    %c0_i32 = arith.constant 0 : i32
    %c0_i32_0 = arith.constant 0 : i32
    %c0_i32_1 = arith.constant 0 : i32
    return %c0_i32, %c0_i32_0 : i32, i32
  }
  func.func @transform_11(%arg0: i32) -> (i32, i32) {
    %c0_i32 = arith.constant 0 : i32
    %c0_i32_0 = arith.constant 0 : i32
    return %arg0, %c0_i32 : i32, i32
  }
}

</mosaic_0001>

<llo_original>
// kernel: tpu_custom_call.1
$region0: #{tpu_custom_call.1}
  #allocation0 [shape = 'u32[]', space=smem, size = 0x4, offset = 0x4, fixed_abs, tag = 'smem constant byte address 0x4 - core index']
  #allocation1 [shape = 'u32[72,128]{1,0:T(1,128)}', space=vmem, size = 0x9000, scoped, tag = 'internal scratch']
  %s0 = inlined_call_operand.hbm [shape: bf16[16,784], index: 0, kind: input, shape index: {}]
  %s1 = inlined_call_operand.hbm [shape: bf16[16,16], index: 1, kind: input, shape index: {}]
  %s2 = inlined_call_operand.hbm [shape: bf16[784,1024], index: 2, kind: input, shape index: {}]
  %s3 = inlined_call_operand.hbm [shape: bf16[16,1024], index: 3, kind: input, shape index: {}]
  %s4 = inlined_call_operand.hbm [shape: f32[1,1024], index: 4, kind: input, shape index: {}]
  %s5 = inlined_call_operand.hbm [shape: bf16[1024,512], index: 5, kind: input, shape index: {}]
  %s6 = inlined_call_operand.hbm [shape: f32[1,512], index: 6, kind: input, shape index: {}]
  %s7 = inlined_call_operand.hbm [shape: bf16[512,256], index: 7, kind: input, shape index: {}]
  %s8 = inlined_call_operand.hbm [shape: f32[1,256], index: 8, kind: input, shape index: {}]
  %s9 = inlined_call_operand.vmem [shape: bf16[256,8], index: 9, kind: input, shape index: {}]
  %s10 = inlined_call_operand.hbm [shape: f32[1,8], index: 10, kind: input, shape index: {}]
  %s11 = inlined_call_operand.vmem [shape: f32[16,8], index: 11, kind: output, shape index: {}]
  %s12 = sld [smem:[#allocation0]]
  $region94: #{tpu_custom_call.1} parent=0
    _
  %s14 = ssub.s32 1, %s12
  %s15 = scalar_select 0, %s14, %s12
  $region1: #{tpu_custom_call.1} parent=0
    #allocation2 [shape = 'u8[28672]{0}', space=vmem, size = 0x7000, scoped, tag = 'input window, operand 0, single buffered']
    #allocation3 [shape = 's32[1]{0}', space=sflag, size = 0x4, scoped, tag = 'scoped memory for tpu_custom_call.1']
    #allocation4 [shape = 'u8[4096]{0}', space=vmem, size = 0x1000, scoped, tag = 'input window, operand 1, single buffered']
    #allocation5 [shape = 's32[1]{0}', space=sflag, size = 0x4, scoped, tag = 'scoped memory for tpu_custom_call.1']
    #allocation6 [shape = 'u8[1605632]{0}', space=vmem, size = 0x188000, scoped, tag = 'input window, operand 2, single buffered']
    #allocation7 [shape = 'u8[32768]{0}', space=vmem, size = 0x8000, scoped, tag = 'input window, operand 3, single buffered']
    #allocation8 [shape = 's32[1]{0}', space=sflag, size = 0x4, scoped, tag = 'scoped memory for tpu_custom_call.1']
    #allocation9 [shape = 'u8[4096]{0}', space=vmem, size = 0x1000, scoped, tag = 'input window, operand 4, single buffered']
    #allocation10 [shape = 'u8[1048576]{0}', space=vmem, size = 0x100000, scoped, tag = 'input window, operand 5, single buffered']
    #allocation11 [shape = 's32[1]{0}', space=sflag, size = 0x4, scoped, tag = 'scoped memory for tpu_custom_call.1']
    #allocation12 [shape = 'u8[2048]{0}', space=vmem, size = 0x800, scoped, tag = 'input window, operand 6, single buffered']
    #allocation13 [shape = 'u8[262144]{0}', space=vmem, size = 0x40000, scoped, tag = 'input window, operand 7, single buffered']
    #allocation14 [shape = 's32[1]{0}', space=sflag, size = 0x4, scoped, tag = 'scoped memory for tpu_custom_call.1']
    #allocation15 [shape = 'u8[1024]{0}', space=vmem, size = 0x400, scoped, tag = 'input window, operand 8, single buffered']
    #allocation16 [shape = 'u8[512]{0}', space=vmem, size = 0x400, scoped, tag = 'input window, operand 10, single buffered']
    #allocation17 [shape = 's32[1]{0}', space=sflag, size = 0x4, scoped, tag = 'scoped memory for tpu_custom_call.1']
    %16 = vsyncpa [#allocation3], 0
    %17 = vsyncpa [#allocation5], 0
    %18 = vsyncpa [#allocation8], 0
    %19 = vsyncpa [#allocation11], 0
    %20 = vsyncpa [#allocation14], 0
    %21 = vsyncpa [#allocation17], 0
    // Predicated region
    $region2: #{tpu_custom_call.1} parent=1 // pred_check
      _
    $region3: #{tpu_custom_call.1} parent=1 // pred_check_branch
      %23 = sbr.rel (0) target = $region5
    $region4: #{tpu_custom_call.1} parent=1 // pred_region
      %25 = vsyncadd [#allocation3], 0
      %s26 = sshll.u32 %s0, 4
      %s27 = int_to_ptr.hbm [resolvable:$true] %s26
      %s28 = sshll.u32 [#allocation2], 4
      %s29 = int_to_ptr.vmem [resolvable:$true] %s28
      %34 = dma.hbm_to_vmem [thread:$0]  %s27, 896, %s29, [#allocation3], 448, 448, 28
    $region5: #{tpu_custom_call.1} parent=1 // pred_fallthru
      _
    // Predicated region
    $region6: #{tpu_custom_call.1} parent=1 // pred_check
      _
    $region7: #{tpu_custom_call.1} parent=1 // pred_check_branch
      %36 = sbr.rel (0) target = $region9
    $region8: #{tpu_custom_call.1} parent=1 // pred_region
      %38 = vsyncadd [#allocation5], 0
      %s39 = sshll.u32 %s1, 4
      %s40 = int_to_ptr.hbm [resolvable:$true] %s39
      %s41 = sshll.u32 [#allocation4], 4
      %s42 = int_to_ptr.vmem [resolvable:$true] %s41
      %47 = dma.hbm_to_vmem [thread:$0]  %s40, 128, %s42, [#allocation5], 64, 64, 4
    $region9: #{tpu_custom_call.1} parent=1 // pred_fallthru
      _
    // Predicated region
    $region10: #{tpu_custom_call.1} parent=1 // pred_check
      _
    $region11: #{tpu_custom_call.1} parent=1 // pred_check_branch
      %49 = sbr.rel (0) target = $region13
    $region12: #{tpu_custom_call.1} parent=1 // pred_region
      %51 = vsyncadd [#allocation5], 0
      %s52 = sshll.u32 %s2, 4
      %s53 = int_to_ptr.hbm [resolvable:$true] %s52
      %s54 = sshll.u32 [#allocation6], 4
      %s55 = int_to_ptr.vmem [resolvable:$true] %s54
      %60 = dma.hbm_to_vmem [thread:$0]  %s53, 50176, %s55, [#allocation5], 512, 512, 32
    $region13: #{tpu_custom_call.1} parent=1 // pred_fallthru
      _
    // Predicated region
    $region14: #{tpu_custom_call.1} parent=1 // pred_check
      _
    $region15: #{tpu_custom_call.1} parent=1 // pred_check_branch
      %62 = sbr.rel (0) target = $region17
    $region16: #{tpu_custom_call.1} parent=1 // pred_region
      %64 = vsyncadd [#allocation8], 0
      %s65 = sshll.u32 %s3, 4
      %s66 = int_to_ptr.hbm [resolvable:$true] %s65
      %s67 = sshll.u32 [#allocation7], 4
      %s68 = int_to_ptr.vmem [resolvable:$true] %s67
      %73 = dma.hbm_to_vmem [thread:$0]  %s66, 1024, %s68, [#allocation8], 512, 512, 32
    $region17: #{tpu_custom_call.1} parent=1 // pred_fallthru
      _
    // Predicated region
    $region18: #{tpu_custom_call.1} parent=1 // pred_check
      _
    $region19: #{tpu_custom_call.1} parent=1 // pred_check_branch
      %75 = sbr.rel (0) target = $region21
    $region20: #{tpu_custom_call.1} parent=1 // pred_region
      %77 = vsyncadd [#allocation8], 0
      %s79 = sshll.u32 %s4, 4
      %s80 = int_to_ptr.hbm [resolvable:$true] %s79
      %s81 = sshll.u32 [#allocation9], 4
      %s82 = int_to_ptr.vmem [resolvable:$true] %s81
      %84 = dma.hbm_to_vmem [thread:$0]  %s80, 128, %s82, [#allocation8]
    $region21: #{tpu_custom_call.1} parent=1 // pred_fallthru
      _
    // Predicated region
    $region22: #{tpu_custom_call.1} parent=1 // pred_check
      _
    $region23: #{tpu_custom_call.1} parent=1 // pred_check_branch
      %86 = sbr.rel (0) target = $region25
    $region24: #{tpu_custom_call.1} parent=1 // pred_region
      %88 = vsyncadd [#allocation11], 0
      %s89 = sshll.u32 %s5, 4
      %s90 = int_to_ptr.hbm [resolvable:$true] %s89
      %s91 = sshll.u32 [#allocation10], 4
      %s92 = int_to_ptr.vmem [resolvable:$true] %s91
      %97 = dma.hbm_to_vmem [thread:$0]  %s90, 32768, %s92, [#allocation11], 256, 256, 16
    $region25: #{tpu_custom_call.1} parent=1 // pred_fallthru
      _
    // Predicated region
    $region26: #{tpu_custom_call.1} parent=1 // pred_check
      _
    $region27: #{tpu_custom_call.1} parent=1 // pred_check_branch
      %99 = sbr.rel (0) target = $region29
    $region28: #{tpu_custom_call.1} parent=1 // pred_region
      %101 = vsyncadd [#allocation11], 0
      %s103 = sshll.u32 %s6, 4
      %s104 = int_to_ptr.hbm [resolvable:$true] %s103
      %s105 = sshll.u32 [#allocation12], 4
      %s106 = int_to_ptr.vmem [resolvable:$true] %s105
      %108 = dma.hbm_to_vmem [thread:$0]  %s104, 64, %s106, [#allocation11]
    $region29: #{tpu_custom_call.1} parent=1 // pred_fallthru
      _
    // Predicated region
    $region30: #{tpu_custom_call.1} parent=1 // pred_check
      _
    $region31: #{tpu_custom_call.1} parent=1 // pred_check_branch
      %110 = sbr.rel (0) target = $region33
    $region32: #{tpu_custom_call.1} parent=1 // pred_region
      %112 = vsyncadd [#allocation14], 0
      %s113 = sshll.u32 %s7, 4
      %s114 = int_to_ptr.hbm [resolvable:$true] %s113
      %s115 = sshll.u32 [#allocation13], 4
      %s116 = int_to_ptr.vmem [resolvable:$true] %s115
      %121 = dma.hbm_to_vmem [thread:$0]  %s114, 8192, %s116, [#allocation14], 128, 128, 8
    $region33: #{tpu_custom_call.1} parent=1 // pred_fallthru
      _
    // Predicated region
    $region34: #{tpu_custom_call.1} parent=1 // pred_check
      _
    $region35: #{tpu_custom_call.1} parent=1 // pred_check_branch
      %123 = sbr.rel (0) target = $region37
    $region36: #{tpu_custom_call.1} parent=1 // pred_region
      %125 = vsyncadd [#allocation14], 0
      %s127 = sshll.u32 %s8, 4
      %s128 = int_to_ptr.hbm [resolvable:$true] %s127
      %s129 = sshll.u32 [#allocation15], 4
      %s130 = int_to_ptr.vmem [resolvable:$true] %s129
      %132 = dma.hbm_to_vmem [thread:$0]  %s128, 32, %s130, [#allocation14]
    $region37: #{tpu_custom_call.1} parent=1 // pred_fallthru
      _
    // Predicated region
    $region38: #{tpu_custom_call.1} parent=1 // pred_check
      _
    $region39: #{tpu_custom_call.1} parent=1 // pred_check_branch
      %134 = sbr.rel (0) target = $region41
    $region40: #{tpu_custom_call.1} parent=1 // pred_region
      _
    $region41: #{tpu_custom_call.1} parent=1 // pred_fallthru
      _
    // Predicated region
    $region42: #{tpu_custom_call.1} parent=1 // pred_check
      _
    $region43: #{tpu_custom_call.1} parent=1 // pred_check_branch
      %136 = sbr.rel (0) target = $region45
    $region44: #{tpu_custom_call.1} parent=1 // pred_region
      %138 = vsyncadd [#allocation17], 0
      %s140 = sshll.u32 %s10, 4
      %s141 = int_to_ptr.hbm [resolvable:$true] %s140
      %s142 = sshll.u32 [#allocation16], 4
      %s143 = int_to_ptr.vmem [resolvable:$true] %s142
      %145 = dma.hbm_to_vmem [thread:$0]  %s141, 16, %s143, [#allocation17]
    $region45: #{tpu_custom_call.1} parent=1 // pred_fallthru
      _
    // Predicated region
    $region46: #{tpu_custom_call.1} parent=1 // pred_check
      _
    $region47: #{tpu_custom_call.1} parent=1 // pred_check_branch
      %147 = sbr.rel (0) target = $region49
    $region48: #{tpu_custom_call.1} parent=1 // pred_region
      %149 = dma.done [#allocation3], 896
    $region49: #{tpu_custom_call.1} parent=1 // pred_fallthru
      _
    // Predicated region
    $region50: #{tpu_custom_call.1} parent=1 // pred_check
      _
    $region51: #{tpu_custom_call.1} parent=1 // pred_check_branch
      %151 = sbr.rel (0) target = $region53
    $region52: #{tpu_custom_call.1} parent=1 // pred_region
      %153 = dma.done [#allocation5], 128
    $region53: #{tpu_custom_call.1} parent=1 // pred_fallthru
      _
    // Predicated region
    $region54: #{tpu_custom_call.1} parent=1 // pred_check
      _
    $region55: #{tpu_custom_call.1} parent=1 // pred_check_branch
      %155 = sbr.rel (0) target = $region57
    $region56: #{tpu_custom_call.1} parent=1 // pred_region
      %157 = dma.done [#allocation5], 50176
    $region57: #{tpu_custom_call.1} parent=1 // pred_fallthru
      _
    // Predicated region
    $region58: #{tpu_custom_call.1} parent=1 // pred_check
      _
    $region59: #{tpu_custom_call.1} parent=1 // pred_check_branch
      %159 = sbr.rel (0) target = $region61
    $region60: #{tpu_custom_call.1} parent=1 // pred_region
      %161 = dma.done [#allocation8], 1024
    $region61: #{tpu_custom_call.1} parent=1 // pred_fallthru
      _
    // Predicated region
    $region62: #{tpu_custom_call.1} parent=1 // pred_check
      _
    $region63: #{tpu_custom_call.1} parent=1 // pred_check_branch
      %163 = sbr.rel (0) target = $region65
    $region64: #{tpu_custom_call.1} parent=1 // pred_region
      %165 = dma.done [#allocation8], 128
    $region65: #{tpu_custom_call.1} parent=1 // pred_fallthru
      _
    // Predicated region
    $region66: #{tpu_custom_call.1} parent=1 // pred_check
      _
    $region67: #{tpu_custom_call.1} parent=1 // pred_check_branch
      %167 = sbr.rel (0) target = $region69
    $region68: #{tpu_custom_call.1} parent=1 // pred_region
      %169 = dma.done [#allocation11], 32768
    $region69: #{tpu_custom_call.1} parent=1 // pred_fallthru
      _
    // Predicated region
    $region70: #{tpu_custom_call.1} parent=1 // pred_check
      _
    $region71: #{tpu_custom_call.1} parent=1 // pred_check_branch
      %171 = sbr.rel (0) target = $region73
    $region72: #{tpu_custom_call.1} parent=1 // pred_region
      %173 = dma.done [#allocation11], 64
    $region73: #{tpu_custom_call.1} parent=1 // pred_fallthru
      _
    // Predicated region
    $region74: #{tpu_custom_call.1} parent=1 // pred_check
      _
    $region75: #{tpu_custom_call.1} parent=1 // pred_check_branch
      %175 = sbr.rel (0) target = $region77
    $region76: #{tpu_custom_call.1} parent=1 // pred_region
      %177 = dma.done [#allocation14], 8192
    $region77: #{tpu_custom_call.1} parent=1 // pred_fallthru
      _
    // Predicated region
    $region78: #{tpu_custom_call.1} parent=1 // pred_check
      _
    $region79: #{tpu_custom_call.1} parent=1 // pred_check_branch
      %179 = sbr.rel (0) target = $region81
    $region80: #{tpu_custom_call.1} parent=1 // pred_region
      %181 = dma.done [#allocation14], 32
    $region81: #{tpu_custom_call.1} parent=1 // pred_fallthru
      _
    // Predicated region
    $region82: #{tpu_custom_call.1} parent=1 // pred_check
      _
    $region83: #{tpu_custom_call.1} parent=1 // pred_check_branch
      %183 = sbr.rel (0) target = $region85
    $region84: #{tpu_custom_call.1} parent=1 // pred_region
      %185 = dma.done [#allocation17], 16
    $region85: #{tpu_custom_call.1} parent=1 // pred_fallthru
      _
    %v187 = vld [vmem:[#allocation2] sm:$0xff]
    %v188 = vld [vmem:[#allocation2 + $0x8] sm:$0xff]
    %v189 = vld [vmem:[#allocation2 + $0x10] sm:$0xff]
    %v190 = vld [vmem:[#allocation2 + $0x18] sm:$0xf]
    %v191 = vld [vmem:[#allocation2 + $0x1c] sm:$0xff]
    %v192 = vld [vmem:[#allocation2 + $0x24] sm:$0xff]
    %v193 = vld [vmem:[#allocation2 + $0x2c] sm:$0xff]
    %v194 = vld [vmem:[#allocation2 + $0x34] sm:$0xf]
    %v195 = vld [vmem:[#allocation6] sm:$0xff]
    %v196 = vld [vmem:[#allocation6 + $0x8] sm:$0xff]
    %v197 = vld [vmem:[#allocation6 + $0x10] sm:$0xff]
    %v198 = vld [vmem:[#allocation6 + $0x18] sm:$0xff]
    %v199 = vld [vmem:[#allocation6 + $0x20] sm:$0xff]
    %v200 = vld [vmem:[#allocation6 + $0x28] sm:$0xff]
    %v201 = vld [vmem:[#allocation6 + $0x30] sm:$0xff]
    %v202 = vld [vmem:[#allocation6 + $0x38] sm:$0xff]
    %v203 = vld [vmem:[#allocation6 + $0x40] sm:$0xff]
    %v204 = vld [vmem:[#allocation6 + $0x48] sm:$0xff]
    %v205 = vld [vmem:[#allocation6 + $0x50] sm:$0xff]
    %v206 = vld [vmem:[#allocation6 + $0x58] sm:$0xff]
    %v207 = vld [vmem:[#allocation6 + $0x60] sm:$0xff]
    %v208 = vld [vmem:[#allocation6 + $0x68] sm:$0xff]
    %v209 = vld [vmem:[#allocation6 + $0x70] sm:$0xff]
    %v210 = vld [vmem:[#allocation6 + $0x78] sm:$0xff]
    %v211 = vld [vmem:[#allocation6 + $0x80] sm:$0xff]
    %v212 = vld [vmem:[#allocation6 + $0x88] sm:$0xff]
    %v213 = vld [vmem:[#allocation6 + $0x90] sm:$0xff]
    %v214 = vld [vmem:[#allocation6 + $0x98] sm:$0xff]
    %v215 = vld [vmem:[#allocation6 + $0xa0] sm:$0xff]
    %v216 = vld [vmem:[#allocation6 + $0xa8] sm:$0xff]
    %v217 = vld [vmem:[#allocation6 + $0xb0] sm:$0xff]
    %v218 = vld [vmem:[#allocation6 + $0xb8] sm:$0xff]
    %v219 = vld [vmem:[#allocation6 + $0xc0] sm:$0xff]
    %v220 = vld [vmem:[#allocation6 + $0xc8] sm:$0xff]
    %v221 = vld [vmem:[#allocation6 + $0xd0] sm:$0xff]
    %v222 = vld [vmem:[#allocation6 + $0xd8] sm:$0xff]
    %v223 = vld [vmem:[#allocation6 + $0xe0] sm:$0xff]
    %v224 = vld [vmem:[#allocation6 + $0xe8] sm:$0xff]
    %v225 = vld [vmem:[#allocation6 + $0xf0] sm:$0xff]
    %v226 = vld [vmem:[#allocation6 + $0xf8] sm:$0xff]
    %v227 = vld [vmem:[#allocation6 + $0x100] sm:$0xff]
    %v228 = vld [vmem:[#allocation6 + $0x108] sm:$0xff]
    %v229 = vld [vmem:[#allocation6 + $0x110] sm:$0xff]
    %v230 = vld [vmem:[#allocation6 + $0x118] sm:$0xff]
    %v231 = vld [vmem:[#allocation6 + $0x120] sm:$0xff]
    %v232 = vld [vmem:[#allocation6 + $0x128] sm:$0xff]
    %v233 = vld [vmem:[#allocation6 + $0x130] sm:$0xff]
    %v234 = vld [vmem:[#allocation6 + $0x138] sm:$0xff]
    %v235 = vld [vmem:[#allocation6 + $0x140] sm:$0xff]
    %v236 = vld [vmem:[#allocation6 + $0x148] sm:$0xff]
    %v237 = vld [vmem:[#allocation6 + $0x150] sm:$0xff]
    %v238 = vld [vmem:[#allocation6 + $0x158] sm:$0xff]
    %v239 = vld [vmem:[#allocation6 + $0x160] sm:$0xff]
    %v240 = vld [vmem:[#allocation6 + $0x168] sm:$0xff]
    %v241 = vld [vmem:[#allocation6 + $0x170] sm:$0xff]
    %v242 = vld [vmem:[#allocation6 + $0x178] sm:$0xff]
    %v243 = vld [vmem:[#allocation6 + $0x180] sm:$0xff]
    %v244 = vld [vmem:[#allocation6 + $0x188] sm:$0xff]
    %v245 = vld [vmem:[#allocation6 + $0x190] sm:$0xff]
    %v246 = vld [vmem:[#allocation6 + $0x198] sm:$0xff]
    %v247 = vld [vmem:[#allocation6 + $0x1a0] sm:$0xff]
    %v248 = vld [vmem:[#allocation6 + $0x1a8] sm:$0xff]
    %v249 = vld [vmem:[#allocation6 + $0x1b0] sm:$0xff]
    %v250 = vld [vmem:[#allocation6 + $0x1b8] sm:$0xff]
    %v251 = vld [vmem:[#allocation6 + $0x1c0] sm:$0xff]
    %v252 = vld [vmem:[#allocation6 + $0x1c8] sm:$0xff]
    %v253 = vld [vmem:[#allocation6 + $0x1d0] sm:$0xff]
    %v254 = vld [vmem:[#allocation6 + $0x1d8] sm:$0xff]
    %v255 = vld [vmem:[#allocation6 + $0x1e0] sm:$0xff]
    %v256 = vld [vmem:[#allocation6 + $0x1e8] sm:$0xff]
    %v257 = vld [vmem:[#allocation6 + $0x1f0] sm:$0xff]
    %v258 = vld [vmem:[#allocation6 + $0x1f8] sm:$0xff]
    %v259 = vld [vmem:[#allocation6 + $0x200] sm:$0xff]
    %v260 = vld [vmem:[#allocation6 + $0x208] sm:$0xff]
    %v261 = vld [vmem:[#allocation6 + $0x210] sm:$0xff]
    %v262 = vld [vmem:[#allocation6 + $0x218] sm:$0xff]
    %v263 = vld [vmem:[#allocation6 + $0x220] sm:$0xff]
    %v264 = vld [vmem:[#allocation6 + $0x228] sm:$0xff]
    %v265 = vld [vmem:[#allocation6 + $0x230] sm:$0xff]
    %v266 = vld [vmem:[#allocation6 + $0x238] sm:$0xff]
    %v267 = vld [vmem:[#allocation6 + $0x240] sm:$0xff]
    %v268 = vld [vmem:[#allocation6 + $0x248] sm:$0xff]
    %v269 = vld [vmem:[#allocation6 + $0x250] sm:$0xff]
    %v270 = vld [vmem:[#allocation6 + $0x258] sm:$0xff]
    %v271 = vld [vmem:[#allocation6 + $0x260] sm:$0xff]
    %v272 = vld [vmem:[#allocation6 + $0x268] sm:$0xff]
    %v273 = vld [vmem:[#allocation6 + $0x270] sm:$0xff]
    %v274 = vld [vmem:[#allocation6 + $0x278] sm:$0xff]
    %v275 = vld [vmem:[#allocation6 + $0x280] sm:$0xff]
    %v276 = vld [vmem:[#allocation6 + $0x288] sm:$0xff]
    %v277 = vld [vmem:[#allocation6 + $0x290] sm:$0xff]
    %v278 = vld [vmem:[#allocation6 + $0x298] sm:$0xff]
    %v279 = vld [vmem:[#allocation6 + $0x2a0] sm:$0xff]
    %v280 = vld [vmem:[#allocation6 + $0x2a8] sm:$0xff]
    %v281 = vld [vmem:[#allocation6 + $0x2b0] sm:$0xff]
    %v282 = vld [vmem:[#allocation6 + $0x2b8] sm:$0xff]
    %v283 = vld [vmem:[#allocation6 + $0x2c0] sm:$0xff]
    %v284 = vld [vmem:[#allocation6 + $0x2c8] sm:$0xff]
    %v285 = vld [vmem:[#allocation6 + $0x2d0] sm:$0xff]
    %v286 = vld [vmem:[#allocation6 + $0x2d8] sm:$0xff]
    %v287 = vld [vmem:[#allocation6 + $0x2e0] sm:$0xff]
    %v288 = vld [vmem:[#allocation6 + $0x2e8] sm:$0xff]
    %v289 = vld [vmem:[#allocation6 + $0x2f0] sm:$0xff]
    %v290 = vld [vmem:[#allocation6 + $0x2f8] sm:$0xff]
    %v291 = vld [vmem:[#allocation6 + $0x300] sm:$0xff]
    %v292 = vld [vmem:[#allocation6 + $0x308] sm:$0xff]
    %v293 = vld [vmem:[#allocation6 + $0x310] sm:$0xff]
    %v294 = vld [vmem:[#allocation6 + $0x318] sm:$0xff]
    %v295 = vld [vmem:[#allocation6 + $0x320] sm:$0xff]
    %v296 = vld [vmem:[#allocation6 + $0x328] sm:$0xff]
    %v297 = vld [vmem:[#allocation6 + $0x330] sm:$0xff]
    %v298 = vld [vmem:[#allocation6 + $0x338] sm:$0xff]
    %v299 = vld [vmem:[#allocation6 + $0x340] sm:$0xff]
    %v300 = vld [vmem:[#allocation6 + $0x348] sm:$0xff]
    %v301 = vld [vmem:[#allocation6 + $0x350] sm:$0xff]
    %v302 = vld [vmem:[#allocation6 + $0x358] sm:$0xff]
    %v303 = vld [vmem:[#allocation6 + $0x360] sm:$0xff]
    %v304 = vld [vmem:[#allocation6 + $0x368] sm:$0xff]
    %v305 = vld [vmem:[#allocation6 + $0x370] sm:$0xff]
    %v306 = vld [vmem:[#allocation6 + $0x378] sm:$0xff]
    %v307 = vld [vmem:[#allocation6 + $0x380] sm:$0xff]
    %v308 = vld [vmem:[#allocation6 + $0x388] sm:$0xff]
    %v309 = vld [vmem:[#allocation6 + $0x390] sm:$0xff]
    %v310 = vld [vmem:[#allocation6 + $0x398] sm:$0xff]
    %v311 = vld [vmem:[#allocation6 + $0x3a0] sm:$0xff]
    %v312 = vld [vmem:[#allocation6 + $0x3a8] sm:$0xff]
    %v313 = vld [vmem:[#allocation6 + $0x3b0] sm:$0xff]
    %v314 = vld [vmem:[#allocation6 + $0x3b8] sm:$0xff]
    %v315 = vld [vmem:[#allocation6 + $0x3c0] sm:$0xff]
    %v316 = vld [vmem:[#allocation6 + $0x3c8] sm:$0xff]
    %v317 = vld [vmem:[#allocation6 + $0x3d0] sm:$0xff]
    %v318 = vld [vmem:[#allocation6 + $0x3d8] sm:$0xff]
    %v319 = vld [vmem:[#allocation6 + $0x3e0] sm:$0xff]
    %v320 = vld [vmem:[#allocation6 + $0x3e8] sm:$0xff]
    %v321 = vld [vmem:[#allocation6 + $0x3f0] sm:$0xff]
    %v322 = vld [vmem:[#allocation6 + $0x3f8] sm:$0xff]
    %v323 = vld [vmem:[#allocation6 + $0x400] sm:$0xff]
    %v324 = vld [vmem:[#allocation6 + $0x408] sm:$0xff]
    %v325 = vld [vmem:[#allocation6 + $0x410] sm:$0xff]
    %v326 = vld [vmem:[#allocation6 + $0x418] sm:$0xff]
    %v327 = vld [vmem:[#allocation6 + $0x420] sm:$0xff]
    %v328 = vld [vmem:[#allocation6 + $0x428] sm:$0xff]
    %v329 = vld [vmem:[#allocation6 + $0x430] sm:$0xff]
    %v330 = vld [vmem:[#allocation6 + $0x438] sm:$0xff]
    %v331 = vld [vmem:[#allocation6 + $0x440] sm:$0xff]
    %v332 = vld [vmem:[#allocation6 + $0x448] sm:$0xff]
    %v333 = vld [vmem:[#allocation6 + $0x450] sm:$0xff]
    %v334 = vld [vmem:[#allocation6 + $0x458] sm:$0xff]
    %v335 = vld [vmem:[#allocation6 + $0x460] sm:$0xff]
    %v336 = vld [vmem:[#allocation6 + $0x468] sm:$0xff]
    %v337 = vld [vmem:[#allocation6 + $0x470] sm:$0xff]
    %v338 = vld [vmem:[#allocation6 + $0x478] sm:$0xff]
    %v339 = vld [vmem:[#allocation6 + $0x480] sm:$0xff]
    %v340 = vld [vmem:[#allocation6 + $0x488] sm:$0xff]
    %v341 = vld [vmem:[#allocation6 + $0x490] sm:$0xff]
    %v342 = vld [vmem:[#allocation6 + $0x498] sm:$0xff]
    %v343 = vld [vmem:[#allocation6 + $0x4a0] sm:$0xff]
    %v344 = vld [vmem:[#allocation6 + $0x4a8] sm:$0xff]
    %v345 = vld [vmem:[#allocation6 + $0x4b0] sm:$0xff]
    %v346 = vld [vmem:[#allocation6 + $0x4b8] sm:$0xff]
    %v347 = vld [vmem:[#allocation6 + $0x4c0] sm:$0xff]
    %v348 = vld [vmem:[#allocation6 + $0x4c8] sm:$0xff]
    %v349 = vld [vmem:[#allocation6 + $0x4d0] sm:$0xff]
    %v350 = vld [vmem:[#allocation6 + $0x4d8] sm:$0xff]
    %v351 = vld [vmem:[#allocation6 + $0x4e0] sm:$0xff]
    %v352 = vld [vmem:[#allocation6 + $0x4e8] sm:$0xff]
    %v353 = vld [vmem:[#allocation6 + $0x4f0] sm:$0xff]
    %v354 = vld [vmem:[#allocation6 + $0x4f8] sm:$0xff]
    %v355 = vld [vmem:[#allocation6 + $0x500] sm:$0xff]
    %v356 = vld [vmem:[#allocation6 + $0x508] sm:$0xff]
    %v357 = vld [vmem:[#allocation6 + $0x510] sm:$0xff]
    %v358 = vld [vmem:[#allocation6 + $0x518] sm:$0xff]
    %v359 = vld [vmem:[#allocation6 + $0x520] sm:$0xff]
    %v360 = vld [vmem:[#allocation6 + $0x528] sm:$0xff]
    %v361 = vld [vmem:[#allocation6 + $0x530] sm:$0xff]
    %v362 = vld [vmem:[#allocation6 + $0x538] sm:$0xff]
    %v363 = vld [vmem:[#allocation6 + $0x540] sm:$0xff]
    %v364 = vld [vmem:[#allocation6 + $0x548] sm:$0xff]
    %v365 = vld [vmem:[#allocation6 + $0x550] sm:$0xff]
    %v366 = vld [vmem:[#allocation6 + $0x558] sm:$0xff]
    %v367 = vld [vmem:[#allocation6 + $0x560] sm:$0xff]
    %v368 = vld [vmem:[#allocation6 + $0x568] sm:$0xff]
    %v369 = vld [vmem:[#allocation6 + $0x570] sm:$0xff]
    %v370 = vld [vmem:[#allocation6 + $0x578] sm:$0xff]
    %v371 = vld [vmem:[#allocation6 + $0x580] sm:$0xff]
    %v372 = vld [vmem:[#allocation6 + $0x588] sm:$0xff]
    %v373 = vld [vmem:[#allocation6 + $0x590] sm:$0xff]
    %v374 = vld [vmem:[#allocation6 + $0x598] sm:$0xff]
    %v375 = vld [vmem:[#allocation6 + $0x5a0] sm:$0xff]
    %v376 = vld [vmem:[#allocation6 + $0x5a8] sm:$0xff]
    %v377 = vld [vmem:[#allocation6 + $0x5b0] sm:$0xff]
    %v378 = vld [vmem:[#allocation6 + $0x5b8] sm:$0xff]
    %v379 = vld [vmem:[#allocation6 + $0x5c0] sm:$0xff]
    %v380 = vld [vmem:[#allocation6 + $0x5c8] sm:$0xff]
    %v381 = vld [vmem:[#allocation6 + $0x5d0] sm:$0xff]
    %v382 = vld [vmem:[#allocation6 + $0x5d8] sm:$0xff]
    %v383 = vld [vmem:[#allocation6 + $0x5e0] sm:$0xff]
    %v384 = vld [vmem:[#allocation6 + $0x5e8] sm:$0xff]
    %v385 = vld [vmem:[#allocation6 + $0x5f0] sm:$0xff]
    %v386 = vld [vmem:[#allocation6 + $0x5f8] sm:$0xff]
    %v387 = vld [vmem:[#allocation6 + $0x600] sm:$0xff]
    %v388 = vld [vmem:[#allocation6 + $0x608] sm:$0xff]
    %v389 = vld [vmem:[#allocation6 + $0x610] sm:$0xff]
    %v390 = vld [vmem:[#allocation6 + $0x618] sm:$0xff]
    %v391 = vld [vmem:[#allocation6 + $0x620] sm:$0xff]
    %v392 = vld [vmem:[#allocation6 + $0x628] sm:$0xff]
    %v393 = vld [vmem:[#allocation6 + $0x630] sm:$0xff]
    %v394 = vld [vmem:[#allocation6 + $0x638] sm:$0xff]
    %v395 = vld [vmem:[#allocation6 + $0x640] sm:$0xff]
    %v396 = vld [vmem:[#allocation6 + $0x648] sm:$0xff]
    %v397 = vld [vmem:[#allocation6 + $0x650] sm:$0xff]
    %v398 = vld [vmem:[#allocation6 + $0x658] sm:$0xff]
    %v399 = vld [vmem:[#allocation6 + $0x660] sm:$0xff]
    %v400 = vld [vmem:[#allocation6 + $0x668] sm:$0xff]
    %v401 = vld [vmem:[#allocation6 + $0x670] sm:$0xff]
    %v402 = vld [vmem:[#allocation6 + $0x678] sm:$0xff]
    %v403 = vld [vmem:[#allocation6 + $0x680] sm:$0xff]
    %v404 = vld [vmem:[#allocation6 + $0x688] sm:$0xff]
    %v405 = vld [vmem:[#allocation6 + $0x690] sm:$0xff]
    %v406 = vld [vmem:[#allocation6 + $0x698] sm:$0xff]
    %v407 = vld [vmem:[#allocation6 + $0x6a0] sm:$0xff]
    %v408 = vld [vmem:[#allocation6 + $0x6a8] sm:$0xff]
    %v409 = vld [vmem:[#allocation6 + $0x6b0] sm:$0xff]
    %v410 = vld [vmem:[#allocation6 + $0x6b8] sm:$0xff]
    %v411 = vld [vmem:[#allocation6 + $0x6c0] sm:$0xff]
    %v412 = vld [vmem:[#allocation6 + $0x6c8] sm:$0xff]
    %v413 = vld [vmem:[#allocation6 + $0x6d0] sm:$0xff]
    %v414 = vld [vmem:[#allocation6 + $0x6d8] sm:$0xff]
    %v415 = vld [vmem:[#allocation6 + $0x6e0] sm:$0xff]
    %v416 = vld [vmem:[#allocation6 + $0x6e8] sm:$0xff]
    %v417 = vld [vmem:[#allocation6 + $0x6f0] sm:$0xff]
    %v418 = vld [vmem:[#allocation6 + $0x6f8] sm:$0xff]
    %v419 = vld [vmem:[#allocation6 + $0x700] sm:$0xff]
    %v420 = vld [vmem:[#allocation6 + $0x708] sm:$0xff]
    %v421 = vld [vmem:[#allocation6 + $0x710] sm:$0xff]
    %v422 = vld [vmem:[#allocation6 + $0x718] sm:$0xff]
    %v423 = vld [vmem:[#allocation6 + $0x720] sm:$0xff]
    %v424 = vld [vmem:[#allocation6 + $0x728] sm:$0xff]
    %v425 = vld [vmem:[#allocation6 + $0x730] sm:$0xff]
    %v426 = vld [vmem:[#allocation6 + $0x738] sm:$0xff]
    %v427 = vld [vmem:[#allocation6 + $0x740] sm:$0xff]
    %v428 = vld [vmem:[#allocation6 + $0x748] sm:$0xff]
    %v429 = vld [vmem:[#allocation6 + $0x750] sm:$0xff]
    %v430 = vld [vmem:[#allocation6 + $0x758] sm:$0xff]
    %v431 = vld [vmem:[#allocation6 + $0x760] sm:$0xff]
    %v432 = vld [vmem:[#allocation6 + $0x768] sm:$0xff]
    %v433 = vld [vmem:[#allocation6 + $0x770] sm:$0xff]
    %v434 = vld [vmem:[#allocation6 + $0x778] sm:$0xff]
    %v435 = vld [vmem:[#allocation6 + $0x780] sm:$0xff]
    %v436 = vld [vmem:[#allocation6 + $0x788] sm:$0xff]
    %v437 = vld [vmem:[#allocation6 + $0x790] sm:$0xff]
    %v438 = vld [vmem:[#allocation6 + $0x798] sm:$0xff]
    %v439 = vld [vmem:[#allocation6 + $0x7a0] sm:$0xff]
    %v440 = vld [vmem:[#allocation6 + $0x7a8] sm:$0xff]
    %v441 = vld [vmem:[#allocation6 + $0x7b0] sm:$0xff]
    %v442 = vld [vmem:[#allocation6 + $0x7b8] sm:$0xff]
    %v443 = vld [vmem:[#allocation6 + $0x7c0] sm:$0xff]
    %v444 = vld [vmem:[#allocation6 + $0x7c8] sm:$0xff]
    %v445 = vld [vmem:[#allocation6 + $0x7d0] sm:$0xff]
    %v446 = vld [vmem:[#allocation6 + $0x7d8] sm:$0xff]
    %v447 = vld [vmem:[#allocation6 + $0x7e0] sm:$0xff]
    %v448 = vld [vmem:[#allocation6 + $0x7e8] sm:$0xff]
    %v449 = vld [vmem:[#allocation6 + $0x7f0] sm:$0xff]
    %v450 = vld [vmem:[#allocation6 + $0x7f8] sm:$0xff]
    %v451 = vld [vmem:[#allocation6 + $0x800] sm:$0xff]
    %v452 = vld [vmem:[#allocation6 + $0x808] sm:$0xff]
    %v453 = vld [vmem:[#allocation6 + $0x810] sm:$0xff]
    %v454 = vld [vmem:[#allocation6 + $0x818] sm:$0xff]
    %v455 = vld [vmem:[#allocation6 + $0x820] sm:$0xff]
    %v456 = vld [vmem:[#allocation6 + $0x828] sm:$0xff]
    %v457 = vld [vmem:[#allocation6 + $0x830] sm:$0xff]
    %v458 = vld [vmem:[#allocation6 + $0x838] sm:$0xff]
    %v459 = vld [vmem:[#allocation6 + $0x840] sm:$0xff]
    %v460 = vld [vmem:[#allocation6 + $0x848] sm:$0xff]
    %v461 = vld [vmem:[#allocation6 + $0x850] sm:$0xff]
    %v462 = vld [vmem:[#allocation6 + $0x858] sm:$0xff]
    %v463 = vld [vmem:[#allocation6 + $0x860] sm:$0xff]
    %v464 = vld [vmem:[#allocation6 + $0x868] sm:$0xff]
    %v465 = vld [vmem:[#allocation6 + $0x870] sm:$0xff]
    %v466 = vld [vmem:[#allocation6 + $0x878] sm:$0xff]
    %v467 = vld [vmem:[#allocation6 + $0x880] sm:$0xff]
    %v468 = vld [vmem:[#allocation6 + $0x888] sm:$0xff]
    %v469 = vld [vmem:[#allocation6 + $0x890] sm:$0xff]
    %v470 = vld [vmem:[#allocation6 + $0x898] sm:$0xff]
    %v471 = vld [vmem:[#allocation6 + $0x8a0] sm:$0xff]
    %v472 = vld [vmem:[#allocation6 + $0x8a8] sm:$0xff]
    %v473 = vld [vmem:[#allocation6 + $0x8b0] sm:$0xff]
    %v474 = vld [vmem:[#allocation6 + $0x8b8] sm:$0xff]
    %v475 = vld [vmem:[#allocation6 + $0x8c0] sm:$0xff]
    %v476 = vld [vmem:[#allocation6 + $0x8c8] sm:$0xff]
    %v477 = vld [vmem:[#allocation6 + $0x8d0] sm:$0xff]
    %v478 = vld [vmem:[#allocation6 + $0x8d8] sm:$0xff]
    %v479 = vld [vmem:[#allocation6 + $0x8e0] sm:$0xff]
    %v480 = vld [vmem:[#allocation6 + $0x8e8] sm:$0xff]
    %v481 = vld [vmem:[#allocation6 + $0x8f0] sm:$0xff]
    %v482 = vld [vmem:[#allocation6 + $0x8f8] sm:$0xff]
    %v483 = vld [vmem:[#allocation6 + $0x900] sm:$0xff]
    %v484 = vld [vmem:[#allocation6 + $0x908] sm:$0xff]
    %v485 = vld [vmem:[#allocation6 + $0x910] sm:$0xff]
    %v486 = vld [vmem:[#allocation6 + $0x918] sm:$0xff]
    %v487 = vld [vmem:[#allocation6 + $0x920] sm:$0xff]
    %v488 = vld [vmem:[#allocation6 + $0x928] sm:$0xff]
    %v489 = vld [vmem:[#allocation6 + $0x930] sm:$0xff]
    %v490 = vld [vmem:[#allocation6 + $0x938] sm:$0xff]
    %v491 = vld [vmem:[#allocation6 + $0x940] sm:$0xff]
    %v492 = vld [vmem:[#allocation6 + $0x948] sm:$0xff]
    %v493 = vld [vmem:[#allocation6 + $0x950] sm:$0xff]
    %v494 = vld [vmem:[#allocation6 + $0x958] sm:$0xff]
    %v495 = vld [vmem:[#allocation6 + $0x960] sm:$0xff]
    %v496 = vld [vmem:[#allocation6 + $0x968] sm:$0xff]
    %v497 = vld [vmem:[#allocation6 + $0x970] sm:$0xff]
    %v498 = vld [vmem:[#allocation6 + $0x978] sm:$0xff]
    %v499 = vld [vmem:[#allocation6 + $0x980] sm:$0xff]
    %v500 = vld [vmem:[#allocation6 + $0x988] sm:$0xff]
    %v501 = vld [vmem:[#allocation6 + $0x990] sm:$0xff]
    %v502 = vld [vmem:[#allocation6 + $0x998] sm:$0xff]
    %v503 = vld [vmem:[#allocation6 + $0x9a0] sm:$0xff]
    %v504 = vld [vmem:[#allocation6 + $0x9a8] sm:$0xff]
    %v505 = vld [vmem:[#allocation6 + $0x9b0] sm:$0xff]
    %v506 = vld [vmem:[#allocation6 + $0x9b8] sm:$0xff]
    %v507 = vld [vmem:[#allocation6 + $0x9c0] sm:$0xff]
    %v508 = vld [vmem:[#allocation6 + $0x9c8] sm:$0xff]
    %v509 = vld [vmem:[#allocation6 + $0x9d0] sm:$0xff]
    %v510 = vld [vmem:[#allocation6 + $0x9d8] sm:$0xff]
    %v511 = vld [vmem:[#allocation6 + $0x9e0] sm:$0xff]
    %v512 = vld [vmem:[#allocation6 + $0x9e8] sm:$0xff]
    %v513 = vld [vmem:[#allocation6 + $0x9f0] sm:$0xff]
    %v514 = vld [vmem:[#allocation6 + $0x9f8] sm:$0xff]
    %v515 = vld [vmem:[#allocation6 + $0xa00] sm:$0xff]
    %v516 = vld [vmem:[#allocation6 + $0xa08] sm:$0xff]
    %v517 = vld [vmem:[#allocation6 + $0xa10] sm:$0xff]
    %v518 = vld [vmem:[#allocation6 + $0xa18] sm:$0xff]
    %v519 = vld [vmem:[#allocation6 + $0xa20] sm:$0xff]
    %v520 = vld [vmem:[#allocation6 + $0xa28] sm:$0xff]
    %v521 = vld [vmem:[#allocation6 + $0xa30] sm:$0xff]
    %v522 = vld [vmem:[#allocation6 + $0xa38] sm:$0xff]
    %v523 = vld [vmem:[#allocation6 + $0xa40] sm:$0xff]
    %v524 = vld [vmem:[#allocation6 + $0xa48] sm:$0xff]
    %v525 = vld [vmem:[#allocation6 + $0xa50] sm:$0xff]
    %v526 = vld [vmem:[#allocation6 + $0xa58] sm:$0xff]
    %v527 = vld [vmem:[#allocation6 + $0xa60] sm:$0xff]
    %v528 = vld [vmem:[#allocation6 + $0xa68] sm:$0xff]
    %v529 = vld [vmem:[#allocation6 + $0xa70] sm:$0xff]
    %v530 = vld [vmem:[#allocation6 + $0xa78] sm:$0xff]
    %v531 = vld [vmem:[#allocation6 + $0xa80] sm:$0xff]
    %v532 = vld [vmem:[#allocation6 + $0xa88] sm:$0xff]
    %v533 = vld [vmem:[#allocation6 + $0xa90] sm:$0xff]
    %v534 = vld [vmem:[#allocation6 + $0xa98] sm:$0xff]
    %v535 = vld [vmem:[#allocation6 + $0xaa0] sm:$0xff]
    %v536 = vld [vmem:[#allocation6 + $0xaa8] sm:$0xff]
    %v537 = vld [vmem:[#allocation6 + $0xab0] sm:$0xff]
    %v538 = vld [vmem:[#allocation6 + $0xab8] sm:$0xff]
    %v539 = vld [vmem:[#allocation6 + $0xac0] sm:$0xff]
    %v540 = vld [vmem:[#allocation6 + $0xac8] sm:$0xff]
    %v541 = vld [vmem:[#allocation6 + $0xad0] sm:$0xff]
    %v542 = vld [vmem:[#allocation6 + $0xad8] sm:$0xff]
    %v543 = vld [vmem:[#allocation6 + $0xae0] sm:$0xff]
    %v544 = vld [vmem:[#allocation6 + $0xae8] sm:$0xff]
    %v545 = vld [vmem:[#allocation6 + $0xaf0] sm:$0xff]
    %v546 = vld [vmem:[#allocation6 + $0xaf8] sm:$0xff]
    %v547 = vld [vmem:[#allocation6 + $0xb00] sm:$0xff]
    %v548 = vld [vmem:[#allocation6 + $0xb08] sm:$0xff]
    %v549 = vld [vmem:[#allocation6 + $0xb10] sm:$0xff]
    %v550 = vld [vmem:[#allocation6 + $0xb18] sm:$0xff]
    %v551 = vld [vmem:[#allocation6 + $0xb20] sm:$0xff]
    %v552 = vld [vmem:[#allocation6 + $0xb28] sm:$0xff]
    %v553 = vld [vmem:[#allocation6 + $0xb30] sm:$0xff]
    %v554 = vld [vmem:[#allocation6 + $0xb38] sm:$0xff]
    %v555 = vld [vmem:[#allocation6 + $0xb40] sm:$0xff]
    %v556 = vld [vmem:[#allocation6 + $0xb48] sm:$0xff]
    %v557 = vld [vmem:[#allocation6 + $0xb50] sm:$0xff]
    %v558 = vld [vmem:[#allocation6 + $0xb58] sm:$0xff]
    %v559 = vld [vmem:[#allocation6 + $0xb60] sm:$0xff]
    %v560 = vld [vmem:[#allocation6 + $0xb68] sm:$0xff]
    %v561 = vld [vmem:[#allocation6 + $0xb70] sm:$0xff]
    %v562 = vld [vmem:[#allocation6 + $0xb78] sm:$0xff]
    %v563 = vld [vmem:[#allocation6 + $0xb80] sm:$0xff]
    %v564 = vld [vmem:[#allocation6 + $0xb88] sm:$0xff]
    %v565 = vld [vmem:[#allocation6 + $0xb90] sm:$0xff]
    %v566 = vld [vmem:[#allocation6 + $0xb98] sm:$0xff]
    %v567 = vld [vmem:[#allocation6 + $0xba0] sm:$0xff]
    %v568 = vld [vmem:[#allocation6 + $0xba8] sm:$0xff]
    %v569 = vld [vmem:[#allocation6 + $0xbb0] sm:$0xff]
    %v570 = vld [vmem:[#allocation6 + $0xbb8] sm:$0xff]
    %v571 = vld [vmem:[#allocation6 + $0xbc0] sm:$0xff]
    %v572 = vld [vmem:[#allocation6 + $0xbc8] sm:$0xff]
    %v573 = vld [vmem:[#allocation6 + $0xbd0] sm:$0xff]
    %v574 = vld [vmem:[#allocation6 + $0xbd8] sm:$0xff]
    %v575 = vld [vmem:[#allocation6 + $0xbe0] sm:$0xff]
    %v576 = vld [vmem:[#allocation6 + $0xbe8] sm:$0xff]
    %v577 = vld [vmem:[#allocation6 + $0xbf0] sm:$0xff]
    %v578 = vld [vmem:[#allocation6 + $0xbf8] sm:$0xff]
    %v579 = vld [vmem:[#allocation6 + $0xc00] sm:$0xff]
    %v580 = vld [vmem:[#allocation6 + $0xc08] sm:$0xff]
    %v581 = vld [vmem:[#allocation6 + $0xc10] sm:$0xff]
    %v582 = vld [vmem:[#allocation6 + $0xc18] sm:$0xff]
    %v583 = vld [vmem:[#allocation6 + $0xc20] sm:$0xff]
    %v584 = vld [vmem:[#allocation6 + $0xc28] sm:$0xff]
    %v585 = vld [vmem:[#allocation6 + $0xc30] sm:$0xff]
    %v586 = vld [vmem:[#allocation6 + $0xc38] sm:$0xff]
    %v587 = vld [vmem:[#allocation4] sm:$0xf]
    %v588 = vld [vmem:[#allocation4 + $0x4] sm:$0xf]
    %v589 = vld [vmem:[#allocation7] sm:$0xff]
    %v590 = vld [vmem:[#allocation7 + $0x8] sm:$0xff]
    %v591 = vld [vmem:[#allocation7 + $0x10] sm:$0xff]
    %v592 = vld [vmem:[#allocation7 + $0x18] sm:$0xff]
    %v593 = vld [vmem:[#allocation7 + $0x20] sm:$0xff]
    %v594 = vld [vmem:[#allocation7 + $0x28] sm:$0xff]
    %v595 = vld [vmem:[#allocation7 + $0x30] sm:$0xff]
    %v596 = vld [vmem:[#allocation7 + $0x38] sm:$0xff]
    %v599 = vunpack.c.l.b16 %v587
    %v600 = vunpack.c.l.b16 %v588
    %v601 = vpack.c.b16 %v600, %v599
    %v610 = vunpack.c.l.b16 %v589
    %v611 = vunpack.c.h.b16 %v589
    %v612 = vunpack.c.l.b16 %v590
    %v613 = vunpack.c.h.b16 %v590
    %v614 = vunpack.c.l.b16 %v591
    %v615 = vunpack.c.h.b16 %v591
    %v616 = vunpack.c.l.b16 %v592
    %v617 = vunpack.c.h.b16 %v592
    %v618 = vunpack.c.l.b16 %v593
    %v619 = vunpack.c.h.b16 %v593
    %v620 = vunpack.c.l.b16 %v594
    %v621 = vunpack.c.h.b16 %v594
    %v622 = vunpack.c.l.b16 %v595
    %v623 = vunpack.c.h.b16 %v595
    %v624 = vunpack.c.l.b16 %v596
    %v625 = vunpack.c.h.b16 %v596
    %v626 = vpack.c.b16 %v618, %v610
    %v627 = vpack.c.b16 %v619, %v611
    %v628 = vpack.c.b16 %v620, %v612
    %v629 = vpack.c.b16 %v621, %v613
    %v630 = vpack.c.b16 %v622, %v614
    %v631 = vpack.c.b16 %v623, %v615
    %v632 = vpack.c.b16 %v624, %v616
    %v633 = vpack.c.b16 %v625, %v617
    %vm642 = vcmask 130048
    %v644 = vsel %vm642, %v601, 0
    %646 = vmatpush.bf16.msra.mxu0 0
    %647 = vmatpush.bf16.msra.mxu0 0
    %648 = vmatpush.bf16.msra.mxu0 0
    %649 = vmatpush.bf16.msra.mxu0 0
    %650 = vmatpush.bf16.msra.mxu0 0
    %651 = vmatpush.bf16.msra.mxu0 0
    %652 = vmatpush.bf16.msra.mxu0 0
    %653 = vmatpush.bf16.msra.mxu0 %v626
    %654 = vmatmul.bf16.gmra.mxu0 %v644
    %v655 = vpop.f32.mrf.mxu0
    %v656 = vadd.f32 0.0, %v655
    %v657 = vpop.f32.mrf.mxu0
    %v658 = vadd.f32 0.0, %v657
    %659 = vdwg.mxu0
    %660 = vmatpush.bf16.msra.mxu0 0
    %661 = vmatpush.bf16.msra.mxu0 0
    %662 = vmatpush.bf16.msra.mxu0 0
    %663 = vmatpush.bf16.msra.mxu0 0
    %664 = vmatpush.bf16.msra.mxu0 0
    %665 = vmatpush.bf16.msra.mxu0 0
    %666 = vmatpush.bf16.msra.mxu0 0
    %667 = vmatpush.bf16.msra.mxu0 %v627
    %668 = vmatmul.bf16.gmra.mxu0 %v644
    %v669 = vpop.f32.mrf.mxu0
    %v670 = vadd.f32 0.0, %v669
    %v671 = vpop.f32.mrf.mxu0
    %v672 = vadd.f32 0.0, %v671
    %673 = vdwg.mxu0
    %674 = vmatpush.bf16.msra.mxu0 0
    %675 = vmatpush.bf16.msra.mxu0 0
    %676 = vmatpush.bf16.msra.mxu0 0
    %677 = vmatpush.bf16.msra.mxu0 0
    %678 = vmatpush.bf16.msra.mxu0 0
    %679 = vmatpush.bf16.msra.mxu0 0
    %680 = vmatpush.bf16.msra.mxu0 0
    %681 = vmatpush.bf16.msra.mxu0 %v628
    %682 = vmatmul.bf16.gmra.mxu0 %v644
    %v683 = vpop.f32.mrf.mxu0
    %v684 = vadd.f32 0.0, %v683
    %v685 = vpop.f32.mrf.mxu0
    %v686 = vadd.f32 0.0, %v685
    %687 = vdwg.mxu0
    %688 = vmatpush.bf16.msra.mxu0 0
    %689 = vmatpush.bf16.msra.mxu0 0
    %690 = vmatpush.bf16.msra.mxu0 0
    %691 = vmatpush.bf16.msra.mxu0 0
    %692 = vmatpush.bf16.msra.mxu0 0
    %693 = vmatpush.bf16.msra.mxu0 0
    %694 = vmatpush.bf16.msra.mxu0 0
    %695 = vmatpush.bf16.msra.mxu0 %v629
    %696 = vmatmul.bf16.gmra.mxu0 %v644
    %v697 = vpop.f32.mrf.mxu0
    %v698 = vadd.f32 0.0, %v697
    %v699 = vpop.f32.mrf.mxu0
    %v700 = vadd.f32 0.0, %v699
    %701 = vdwg.mxu0
    %702 = vmatpush.bf16.msra.mxu0 0
    %703 = vmatpush.bf16.msra.mxu0 0
    %704 = vmatpush.bf16.msra.mxu0 0
    %705 = vmatpush.bf16.msra.mxu0 0
    %706 = vmatpush.bf16.msra.mxu0 0
    %707 = vmatpush.bf16.msra.mxu0 0
    %708 = vmatpush.bf16.msra.mxu0 0
    %709 = vmatpush.bf16.msra.mxu0 %v630
    %710 = vmatmul.bf16.gmra.mxu0 %v644
    %v711 = vpop.f32.mrf.mxu0
    %v712 = vadd.f32 0.0, %v711
    %v713 = vpop.f32.mrf.mxu0
    %v714 = vadd.f32 0.0, %v713
    %715 = vdwg.mxu0
    %716 = vmatpush.bf16.msra.mxu0 0
    %717 = vmatpush.bf16.msra.mxu0 0
    %718 = vmatpush.bf16.msra.mxu0 0
    %719 = vmatpush.bf16.msra.mxu0 0
    %720 = vmatpush.bf16.msra.mxu0 0
    %721 = vmatpush.bf16.msra.mxu0 0
    %722 = vmatpush.bf16.msra.mxu0 0
    %723 = vmatpush.bf16.msra.mxu0 %v631
    %724 = vmatmul.bf16.gmra.mxu0 %v644
    %v725 = vpop.f32.mrf.mxu0
    %v726 = vadd.f32 0.0, %v725
    %v727 = vpop.f32.mrf.mxu0
    %v728 = vadd.f32 0.0, %v727
    %729 = vdwg.mxu0
    %730 = vmatpush.bf16.msra.mxu0 0
    %731 = vmatpush.bf16.msra.mxu0 0
    %732 = vmatpush.bf16.msra.mxu0 0
    %733 = vmatpush.bf16.msra.mxu0 0
    %734 = vmatpush.bf16.msra.mxu0 0
    %735 = vmatpush.bf16.msra.mxu0 0
    %736 = vmatpush.bf16.msra.mxu0 0
    %737 = vmatpush.bf16.msra.mxu0 %v632
    %738 = vmatmul.bf16.gmra.mxu0 %v644
    %v739 = vpop.f32.mrf.mxu0
    %v740 = vadd.f32 0.0, %v739
    %v741 = vpop.f32.mrf.mxu0
    %v742 = vadd.f32 0.0, %v741
    %743 = vdwg.mxu0
    %744 = vmatpush.bf16.msra.mxu0 0
    %745 = vmatpush.bf16.msra.mxu0 0
    %746 = vmatpush.bf16.msra.mxu0 0
    %747 = vmatpush.bf16.msra.mxu0 0
    %748 = vmatpush.bf16.msra.mxu0 0
    %749 = vmatpush.bf16.msra.mxu0 0
    %750 = vmatpush.bf16.msra.mxu0 0
    %751 = vmatpush.bf16.msra.mxu0 %v633
    %752 = vmatmul.bf16.gmra.mxu0 %v644
    %v753 = vpop.f32.mrf.mxu0
    %v754 = vadd.f32 0.0, %v753
    %v755 = vpop.f32.mrf.mxu0
    %v756 = vadd.f32 0.0, %v755
    %757 = vdwg.mxu0
    %v766 = vunpack.c.l.b16 %v187
    %v767 = vunpack.c.h.b16 %v187
    %v768 = vunpack.c.l.b16 %v188
    %v769 = vunpack.c.h.b16 %v188
    %v770 = vunpack.c.l.b16 %v189
    %v771 = vunpack.c.h.b16 %v189
    %v772 = vunpack.c.l.b16 %v190
    %v773 = vunpack.c.l.b16 %v191
    %v774 = vunpack.c.h.b16 %v191
    %v775 = vunpack.c.l.b16 %v192
    %v776 = vunpack.c.h.b16 %v192
    %v777 = vunpack.c.l.b16 %v193
    %v778 = vunpack.c.h.b16 %v193
    %v779 = vunpack.c.l.b16 %v194
    %v780 = vpack.c.b16 %v773, %v766
    %v781 = vpack.c.b16 %v774, %v767
    %v782 = vpack.c.b16 %v775, %v768
    %v783 = vpack.c.b16 %v776, %v769
    %v784 = vpack.c.b16 %v777, %v770
    %v785 = vpack.c.b16 %v778, %v771
    %v786 = vpack.c.b16 %v779, %v772
    %v1185 = vunpack.c.l.b16 %v195
    %v1186 = vunpack.c.h.b16 %v195
    %v1187 = vunpack.c.l.b16 %v196
    %v1188 = vunpack.c.h.b16 %v196
    %v1189 = vunpack.c.l.b16 %v197
    %v1190 = vunpack.c.h.b16 %v197
    %v1191 = vunpack.c.l.b16 %v198
    %v1192 = vunpack.c.h.b16 %v198
    %v1193 = vunpack.c.l.b16 %v199
    %v1194 = vunpack.c.h.b16 %v199
    %v1195 = vunpack.c.l.b16 %v200
    %v1196 = vunpack.c.h.b16 %v200
    %v1197 = vunpack.c.l.b16 %v201
    %v1198 = vunpack.c.h.b16 %v201
    %v1199 = vunpack.c.l.b16 %v202
    %v1200 = vunpack.c.h.b16 %v202
    %v1201 = vunpack.c.l.b16 %v203
    %v1202 = vunpack.c.h.b16 %v203
    %v1203 = vunpack.c.l.b16 %v204
    %v1204 = vunpack.c.h.b16 %v204
    %v1205 = vunpack.c.l.b16 %v205
    %v1206 = vunpack.c.h.b16 %v205
    %v1207 = vunpack.c.l.b16 %v206
    %v1208 = vunpack.c.h.b16 %v206
    %v1209 = vunpack.c.l.b16 %v207
    %v1210 = vunpack.c.h.b16 %v207
    %v1211 = vunpack.c.l.b16 %v208
    %v1212 = vunpack.c.h.b16 %v208
    %v1213 = vunpack.c.l.b16 %v209
    %v1214 = vunpack.c.h.b16 %v209
    %v1215 = vunpack.c.l.b16 %v210
    %v1216 = vunpack.c.h.b16 %v210
    %v1217 = vunpack.c.l.b16 %v211
    %v1218 = vunpack.c.h.b16 %v211
    %v1219 = vunpack.c.l.b16 %v212
    %v1220 = vunpack.c.h.b16 %v212
    %v1221 = vunpack.c.l.b16 %v213
    %v1222 = vunpack.c.h.b16 %v213
    %v1223 = vunpack.c.l.b16 %v214
    %v1224 = vunpack.c.h.b16 %v214
    %v1225 = vunpack.c.l.b16 %v215
    %v1226 = vunpack.c.h.b16 %v215
    %v1227 = vunpack.c.l.b16 %v216
    %v1228 = vunpack.c.h.b16 %v216
    %v1229 = vunpack.c.l.b16 %v217
    %v1230 = vunpack.c.h.b16 %v217
    %v1231 = vunpack.c.l.b16 %v218
    %v1232 = vunpack.c.h.b16 %v218
    %v1233 = vunpack.c.l.b16 %v219
    %v1234 = vunpack.c.h.b16 %v219
    %v1235 = vunpack.c.l.b16 %v220
    %v1236 = vunpack.c.h.b16 %v220
    %v1237 = vunpack.c.l.b16 %v221
    %v1238 = vunpack.c.h.b16 %v221
    %v1239 = vunpack.c.l.b16 %v222
    %v1240 = vunpack.c.h.b16 %v222
    %v1241 = vunpack.c.l.b16 %v223
    %v1242 = vunpack.c.h.b16 %v223
    %v1243 = vunpack.c.l.b16 %v224
    %v1244 = vunpack.c.h.b16 %v224
    %v1245 = vunpack.c.l.b16 %v225
    %v1246 = vunpack.c.h.b16 %v225
    %v1247 = vunpack.c.l.b16 %v226
    %v1248 = vunpack.c.h.b16 %v226
    %v1249 = vunpack.c.l.b16 %v227
    %v1250 = vunpack.c.h.b16 %v227
    %v1251 = vunpack.c.l.b16 %v228
    %v1252 = vunpack.c.h.b16 %v228
    %v1253 = vunpack.c.l.b16 %v229
    %v1254 = vunpack.c.h.b16 %v229
    %v1255 = vunpack.c.l.b16 %v230
    %v1256 = vunpack.c.h.b16 %v230
    %v1257 = vunpack.c.l.b16 %v231
    %v1258 = vunpack.c.h.b16 %v231
    %v1259 = vunpack.c.l.b16 %v232
    %v1260 = vunpack.c.h.b16 %v232
    %v1261 = vunpack.c.l.b16 %v233
    %v1262 = vunpack.c.h.b16 %v233
    %v1263 = vunpack.c.l.b16 %v234
    %v1264 = vunpack.c.h.b16 %v234
    %v1265 = vunpack.c.l.b16 %v235
    %v1266 = vunpack.c.h.b16 %v235
    %v1267 = vunpack.c.l.b16 %v236
    %v1268 = vunpack.c.h.b16 %v236
    %v1269 = vunpack.c.l.b16 %v237
    %v1270 = vunpack.c.h.b16 %v237
    %v1271 = vunpack.c.l.b16 %v238
    %v1272 = vunpack.c.h.b16 %v238
    %v1273 = vunpack.c.l.b16 %v239
    %v1274 = vunpack.c.h.b16 %v239
    %v1275 = vunpack.c.l.b16 %v240
    %v1276 = vunpack.c.h.b16 %v240
    %v1277 = vunpack.c.l.b16 %v241
    %v1278 = vunpack.c.h.b16 %v241
    %v1279 = vunpack.c.l.b16 %v242
    %v1280 = vunpack.c.h.b16 %v242
    %v1281 = vunpack.c.l.b16 %v243
    %v1282 = vunpack.c.h.b16 %v243
    %v1283 = vunpack.c.l.b16 %v244
    %v1284 = vunpack.c.h.b16 %v244
    %v1285 = vunpack.c.l.b16 %v245
    %v1286 = vunpack.c.h.b16 %v245
    %v1287 = vunpack.c.l.b16 %v246
    %v1288 = vunpack.c.h.b16 %v246
    %v1289 = vunpack.c.l.b16 %v247
    %v1290 = vunpack.c.h.b16 %v247
    %v1291 = vunpack.c.l.b16 %v248
    %v1292 = vunpack.c.h.b16 %v248
    %v1293 = vunpack.c.l.b16 %v249
    %v1294 = vunpack.c.h.b16 %v249
    %v1295 = vunpack.c.l.b16 %v250
    %v1296 = vunpack.c.h.b16 %v250
    %v1297 = vunpack.c.l.b16 %v251
    %v1298 = vunpack.c.h.b16 %v251
    %v1299 = vunpack.c.l.b16 %v252
    %v1300 = vunpack.c.h.b16 %v252
    %v1301 = vunpack.c.l.b16 %v253
    %v1302 = vunpack.c.h.b16 %v253
    %v1303 = vunpack.c.l.b16 %v254
    %v1304 = vunpack.c.h.b16 %v254
    %v1305 = vunpack.c.l.b16 %v255
    %v1306 = vunpack.c.h.b16 %v255
    %v1307 = vunpack.c.l.b16 %v256
    %v1308 = vunpack.c.h.b16 %v256
    %v1309 = vunpack.c.l.b16 %v257
    %v1310 = vunpack.c.h.b16 %v257
    %v1311 = vunpack.c.l.b16 %v258
    %v1312 = vunpack.c.h.b16 %v258
    %v1313 = vunpack.c.l.b16 %v259
    %v1314 = vunpack.c.h.b16 %v259
    %v1315 = vunpack.c.l.b16 %v260
    %v1316 = vunpack.c.h.b16 %v260
    %v1317 = vunpack.c.l.b16 %v261
    %v1318 = vunpack.c.h.b16 %v261
    %v1319 = vunpack.c.l.b16 %v262
    %v1320 = vunpack.c.h.b16 %v262
    %v1321 = vunpack.c.l.b16 %v263
    %v1322 = vunpack.c.h.b16 %v263
    %v1323 = vunpack.c.l.b16 %v264
    %v1324 = vunpack.c.h.b16 %v264
    %v1325 = vunpack.c.l.b16 %v265
    %v1326 = vunpack.c.h.b16 %v265
    %v1327 = vunpack.c.l.b16 %v266
    %v1328 = vunpack.c.h.b16 %v266
    %v1329 = vunpack.c.l.b16 %v267
    %v1330 = vunpack.c.h.b16 %v267
    %v1331 = vunpack.c.l.b16 %v268
    %v1332 = vunpack.c.h.b16 %v268
    %v1333 = vunpack.c.l.b16 %v269
    %v1334 = vunpack.c.h.b16 %v269
    %v1335 = vunpack.c.l.b16 %v270
    %v1336 = vunpack.c.h.b16 %v270
    %v1337 = vunpack.c.l.b16 %v271
    %v1338 = vunpack.c.h.b16 %v271
    %v1339 = vunpack.c.l.b16 %v272
    %v1340 = vunpack.c.h.b16 %v272
    %v1341 = vunpack.c.l.b16 %v273
    %v1342 = vunpack.c.h.b16 %v273
    %v1343 = vunpack.c.l.b16 %v274
    %v1344 = vunpack.c.h.b16 %v274
    %v1345 = vunpack.c.l.b16 %v275
    %v1346 = vunpack.c.h.b16 %v275
    %v1347 = vunpack.c.l.b16 %v276
    %v1348 = vunpack.c.h.b16 %v276
    %v1349 = vunpack.c.l.b16 %v277
    %v1350 = vunpack.c.h.b16 %v277
    %v1351 = vunpack.c.l.b16 %v278
    %v1352 = vunpack.c.h.b16 %v278
    %v1353 = vunpack.c.l.b16 %v279
    %v1354 = vunpack.c.h.b16 %v279
    %v1355 = vunpack.c.l.b16 %v280
    %v1356 = vunpack.c.h.b16 %v280
    %v1357 = vunpack.c.l.b16 %v281
    %v1358 = vunpack.c.h.b16 %v281
    %v1359 = vunpack.c.l.b16 %v282
    %v1360 = vunpack.c.h.b16 %v282
    %v1361 = vunpack.c.l.b16 %v283
    %v1362 = vunpack.c.h.b16 %v283
    %v1363 = vunpack.c.l.b16 %v284
    %v1364 = vunpack.c.h.b16 %v284
    %v1365 = vunpack.c.l.b16 %v285
    %v1366 = vunpack.c.h.b16 %v285
    %v1367 = vunpack.c.l.b16 %v286
    %v1368 = vunpack.c.h.b16 %v286
    %v1369 = vunpack.c.l.b16 %v287
    %v1370 = vunpack.c.h.b16 %v287
    %v1371 = vunpack.c.l.b16 %v288
    %v1372 = vunpack.c.h.b16 %v288
    %v1373 = vunpack.c.l.b16 %v289
    %v1374 = vunpack.c.h.b16 %v289
    %v1375 = vunpack.c.l.b16 %v290
    %v1376 = vunpack.c.h.b16 %v290
    %v1377 = vunpack.c.l.b16 %v291
    %v1378 = vunpack.c.h.b16 %v291
    %v1379 = vunpack.c.l.b16 %v292
    %v1380 = vunpack.c.h.b16 %v292
    %v1381 = vunpack.c.l.b16 %v293
    %v1382 = vunpack.c.h.b16 %v293
    %v1383 = vunpack.c.l.b16 %v294
    %v1384 = vunpack.c.h.b16 %v294
    %v1385 = vunpack.c.l.b16 %v295
    %v1386 = vunpack.c.h.b16 %v295
    %v1387 = vunpack.c.l.b16 %v296
    %v1388 = vunpack.c.h.b16 %v296
    %v1389 = vunpack.c.l.b16 %v297
    %v1390 = vunpack.c.h.b16 %v297
    %v1391 = vunpack.c.l.b16 %v298
    %v1392 = vunpack.c.h.b16 %v298
    %v1393 = vunpack.c.l.b16 %v299
    %v1394 = vunpack.c.h.b16 %v299
    %v1395 = vunpack.c.l.b16 %v300
    %v1396 = vunpack.c.h.b16 %v300
    %v1397 = vunpack.c.l.b16 %v301
    %v1398 = vunpack.c.h.b16 %v301
    %v1399 = vunpack.c.l.b16 %v302
    %v1400 = vunpack.c.h.b16 %v302
    %v1401 = vunpack.c.l.b16 %v303
    %v1402 = vunpack.c.h.b16 %v303
    %v1403 = vunpack.c.l.b16 %v304
    %v1404 = vunpack.c.h.b16 %v304
    %v1405 = vunpack.c.l.b16 %v305
    %v1406 = vunpack.c.h.b16 %v305
    %v1407 = vunpack.c.l.b16 %v306
    %v1408 = vunpack.c.h.b16 %v306
    %v1409 = vunpack.c.l.b16 %v307
    %v1410 = vunpack.c.h.b16 %v307
    %v1411 = vunpack.c.l.b16 %v308
    %v1412 = vunpack.c.h.b16 %v308
    %v1413 = vunpack.c.l.b16 %v309
    %v1414 = vunpack.c.h.b16 %v309
    %v1415 = vunpack.c.l.b16 %v310
    %v1416 = vunpack.c.h.b16 %v310
    %v1417 = vunpack.c.l.b16 %v311
    %v1418 = vunpack.c.h.b16 %v311
    %v1419 = vunpack.c.l.b16 %v312
    %v1420 = vunpack.c.h.b16 %v312
    %v1421 = vunpack.c.l.b16 %v313
    %v1422 = vunpack.c.h.b16 %v313
    %v1423 = vunpack.c.l.b16 %v314
    %v1424 = vunpack.c.h.b16 %v314
    %v1425 = vunpack.c.l.b16 %v315
    %v1426 = vunpack.c.h.b16 %v315
    %v1427 = vunpack.c.l.b16 %v316
    %v1428 = vunpack.c.h.b16 %v316
    %v1429 = vunpack.c.l.b16 %v317
    %v1430 = vunpack.c.h.b16 %v317
    %v1431 = vunpack.c.l.b16 %v318
    %v1432 = vunpack.c.h.b16 %v318
    %v1433 = vunpack.c.l.b16 %v319
    %v1434 = vunpack.c.h.b16 %v319
    %v1435 = vunpack.c.l.b16 %v320
    %v1436 = vunpack.c.h.b16 %v320
    %v1437 = vunpack.c.l.b16 %v321
    %v1438 = vunpack.c.h.b16 %v321
    %v1439 = vunpack.c.l.b16 %v322
    %v1440 = vunpack.c.h.b16 %v322
    %v1441 = vunpack.c.l.b16 %v323
    %v1442 = vunpack.c.h.b16 %v323
    %v1443 = vunpack.c.l.b16 %v324
    %v1444 = vunpack.c.h.b16 %v324
    %v1445 = vunpack.c.l.b16 %v325
    %v1446 = vunpack.c.h.b16 %v325
    %v1447 = vunpack.c.l.b16 %v326
    %v1448 = vunpack.c.h.b16 %v326
    %v1449 = vunpack.c.l.b16 %v327
    %v1450 = vunpack.c.h.b16 %v327
    %v1451 = vunpack.c.l.b16 %v328
    %v1452 = vunpack.c.h.b16 %v328
    %v1453 = vunpack.c.l.b16 %v329
    %v1454 = vunpack.c.h.b16 %v329
    %v1455 = vunpack.c.l.b16 %v330
    %v1456 = vunpack.c.h.b16 %v330
    %v1457 = vunpack.c.l.b16 %v331
    %v1458 = vunpack.c.h.b16 %v331
    %v1459 = vunpack.c.l.b16 %v332
    %v1460 = vunpack.c.h.b16 %v332
    %v1461 = vunpack.c.l.b16 %v333
    %v1462 = vunpack.c.h.b16 %v333
    %v1463 = vunpack.c.l.b16 %v334
    %v1464 = vunpack.c.h.b16 %v334
    %v1465 = vunpack.c.l.b16 %v335
    %v1466 = vunpack.c.h.b16 %v335
    %v1467 = vunpack.c.l.b16 %v336
    %v1468 = vunpack.c.h.b16 %v336
    %v1469 = vunpack.c.l.b16 %v337
    %v1470 = vunpack.c.h.b16 %v337
    %v1471 = vunpack.c.l.b16 %v338
    %v1472 = vunpack.c.h.b16 %v338
    %v1473 = vunpack.c.l.b16 %v339
    %v1474 = vunpack.c.h.b16 %v339
    %v1475 = vunpack.c.l.b16 %v340
    %v1476 = vunpack.c.h.b16 %v340
    %v1477 = vunpack.c.l.b16 %v341
    %v1478 = vunpack.c.h.b16 %v341
    %v1479 = vunpack.c.l.b16 %v342
    %v1480 = vunpack.c.h.b16 %v342
    %v1481 = vunpack.c.l.b16 %v343
    %v1482 = vunpack.c.h.b16 %v343
    %v1483 = vunpack.c.l.b16 %v344
    %v1484 = vunpack.c.h.b16 %v344
    %v1485 = vunpack.c.l.b16 %v345
    %v1486 = vunpack.c.h.b16 %v345
    %v1487 = vunpack.c.l.b16 %v346
    %v1488 = vunpack.c.h.b16 %v346
    %v1489 = vunpack.c.l.b16 %v347
    %v1490 = vunpack.c.h.b16 %v347
    %v1491 = vunpack.c.l.b16 %v348
    %v1492 = vunpack.c.h.b16 %v348
    %v1493 = vunpack.c.l.b16 %v349
    %v1494 = vunpack.c.h.b16 %v349
    %v1495 = vunpack.c.l.b16 %v350
    %v1496 = vunpack.c.h.b16 %v350
    %v1497 = vunpack.c.l.b16 %v351
    %v1498 = vunpack.c.h.b16 %v351
    %v1499 = vunpack.c.l.b16 %v352
    %v1500 = vunpack.c.h.b16 %v352
    %v1501 = vunpack.c.l.b16 %v353
    %v1502 = vunpack.c.h.b16 %v353
    %v1503 = vunpack.c.l.b16 %v354
    %v1504 = vunpack.c.h.b16 %v354
    %v1505 = vunpack.c.l.b16 %v355
    %v1506 = vunpack.c.h.b16 %v355
    %v1507 = vunpack.c.l.b16 %v356
    %v1508 = vunpack.c.h.b16 %v356
    %v1509 = vunpack.c.l.b16 %v357
    %v1510 = vunpack.c.h.b16 %v357
    %v1511 = vunpack.c.l.b16 %v358
    %v1512 = vunpack.c.h.b16 %v358
    %v1513 = vunpack.c.l.b16 %v359
    %v1514 = vunpack.c.h.b16 %v359
    %v1515 = vunpack.c.l.b16 %v360
    %v1516 = vunpack.c.h.b16 %v360
    %v1517 = vunpack.c.l.b16 %v361
    %v1518 = vunpack.c.h.b16 %v361
    %v1519 = vunpack.c.l.b16 %v362
    %v1520 = vunpack.c.h.b16 %v362
    %v1521 = vunpack.c.l.b16 %v363
    %v1522 = vunpack.c.h.b16 %v363
    %v1523 = vunpack.c.l.b16 %v364
    %v1524 = vunpack.c.h.b16 %v364
    %v1525 = vunpack.c.l.b16 %v365
    %v1526 = vunpack.c.h.b16 %v365
    %v1527 = vunpack.c.l.b16 %v366
    %v1528 = vunpack.c.h.b16 %v366
    %v1529 = vunpack.c.l.b16 %v367
    %v1530 = vunpack.c.h.b16 %v367
    %v1531 = vunpack.c.l.b16 %v368
    %v1532 = vunpack.c.h.b16 %v368
    %v1533 = vunpack.c.l.b16 %v369
    %v1534 = vunpack.c.h.b16 %v369
    %v1535 = vunpack.c.l.b16 %v370
    %v1536 = vunpack.c.h.b16 %v370
    %v1537 = vunpack.c.l.b16 %v371
    %v1538 = vunpack.c.h.b16 %v371
    %v1539 = vunpack.c.l.b16 %v372
    %v1540 = vunpack.c.h.b16 %v372
    %v1541 = vunpack.c.l.b16 %v373
    %v1542 = vunpack.c.h.b16 %v373
    %v1543 = vunpack.c.l.b16 %v374
    %v1544 = vunpack.c.h.b16 %v374
    %v1545 = vunpack.c.l.b16 %v375
    %v1546 = vunpack.c.h.b16 %v375
    %v1547 = vunpack.c.l.b16 %v376
    %v1548 = vunpack.c.h.b16 %v376
    %v1549 = vunpack.c.l.b16 %v377
    %v1550 = vunpack.c.h.b16 %v377
    %v1551 = vunpack.c.l.b16 %v378
    %v1552 = vunpack.c.h.b16 %v378
    %v1553 = vunpack.c.l.b16 %v379
    %v1554 = vunpack.c.h.b16 %v379
    %v1555 = vunpack.c.l.b16 %v380
    %v1556 = vunpack.c.h.b16 %v380
    %v1557 = vunpack.c.l.b16 %v381
    %v1558 = vunpack.c.h.b16 %v381
    %v1559 = vunpack.c.l.b16 %v382
    %v1560 = vunpack.c.h.b16 %v382
    %v1561 = vunpack.c.l.b16 %v383
    %v1562 = vunpack.c.h.b16 %v383
    %v1563 = vunpack.c.l.b16 %v384
    %v1564 = vunpack.c.h.b16 %v384
    %v1565 = vunpack.c.l.b16 %v385
    %v1566 = vunpack.c.h.b16 %v385
    %v1567 = vunpack.c.l.b16 %v386
    %v1568 = vunpack.c.h.b16 %v386
    %v1569 = vunpack.c.l.b16 %v387
    %v1570 = vunpack.c.h.b16 %v387
    %v1571 = vunpack.c.l.b16 %v388
    %v1572 = vunpack.c.h.b16 %v388
    %v1573 = vunpack.c.l.b16 %v389
    %v1574 = vunpack.c.h.b16 %v389
    %v1575 = vunpack.c.l.b16 %v390
    %v1576 = vunpack.c.h.b16 %v390
    %v1577 = vunpack.c.l.b16 %v391
    %v1578 = vunpack.c.h.b16 %v391
    %v1579 = vunpack.c.l.b16 %v392
    %v1580 = vunpack.c.h.b16 %v392
    %v1581 = vunpack.c.l.b16 %v393
    %v1582 = vunpack.c.h.b16 %v393
    %v1583 = vunpack.c.l.b16 %v394
    %v1584 = vunpack.c.h.b16 %v394
    %v1585 = vunpack.c.l.b16 %v395
    %v1586 = vunpack.c.h.b16 %v395
    %v1587 = vunpack.c.l.b16 %v396
    %v1588 = vunpack.c.h.b16 %v396
    %v1589 = vunpack.c.l.b16 %v397
    %v1590 = vunpack.c.h.b16 %v397
    %v1591 = vunpack.c.l.b16 %v398
    %v1592 = vunpack.c.h.b16 %v398
    %v1593 = vunpack.c.l.b16 %v399
    %v1594 = vunpack.c.h.b16 %v399
    %v1595 = vunpack.c.l.b16 %v400
    %v1596 = vunpack.c.h.b16 %v400
    %v1597 = vunpack.c.l.b16 %v401
    %v1598 = vunpack.c.h.b16 %v401
    %v1599 = vunpack.c.l.b16 %v402
    %v1600 = vunpack.c.h.b16 %v402
    %v1601 = vunpack.c.l.b16 %v403
    %v1602 = vunpack.c.h.b16 %v403
    %v1603 = vunpack.c.l.b16 %v404
    %v1604 = vunpack.c.h.b16 %v404
    %v1605 = vunpack.c.l.b16 %v405
    %v1606 = vunpack.c.h.b16 %v405
    %v1607 = vunpack.c.l.b16 %v406
    %v1608 = vunpack.c.h.b16 %v406
    %v1609 = vunpack.c.l.b16 %v407
    %v1610 = vunpack.c.h.b16 %v407
    %v1611 = vunpack.c.l.b16 %v408
    %v1612 = vunpack.c.h.b16 %v408
    %v1613 = vunpack.c.l.b16 %v409
    %v1614 = vunpack.c.h.b16 %v409
    %v1615 = vunpack.c.l.b16 %v410
    %v1616 = vunpack.c.h.b16 %v410
    %v1617 = vunpack.c.l.b16 %v411
    %v1618 = vunpack.c.h.b16 %v411
    %v1619 = vunpack.c.l.b16 %v412
    %v1620 = vunpack.c.h.b16 %v412
    %v1621 = vunpack.c.l.b16 %v413
    %v1622 = vunpack.c.h.b16 %v413
    %v1623 = vunpack.c.l.b16 %v414
    %v1624 = vunpack.c.h.b16 %v414
    %v1625 = vunpack.c.l.b16 %v415
    %v1626 = vunpack.c.h.b16 %v415
    %v1627 = vunpack.c.l.b16 %v416
    %v1628 = vunpack.c.h.b16 %v416
    %v1629 = vunpack.c.l.b16 %v417
    %v1630 = vunpack.c.h.b16 %v417
    %v1631 = vunpack.c.l.b16 %v418
    %v1632 = vunpack.c.h.b16 %v418
    %v1633 = vunpack.c.l.b16 %v419
    %v1634 = vunpack.c.h.b16 %v419
    %v1635 = vunpack.c.l.b16 %v420
    %v1636 = vunpack.c.h.b16 %v420
    %v1637 = vunpack.c.l.b16 %v421
    %v1638 = vunpack.c.h.b16 %v421
    %v1639 = vunpack.c.l.b16 %v422
    %v1640 = vunpack.c.h.b16 %v422
    %v1641 = vunpack.c.l.b16 %v423
    %v1642 = vunpack.c.h.b16 %v423
    %v1643 = vunpack.c.l.b16 %v424
    %v1644 = vunpack.c.h.b16 %v424
    %v1645 = vunpack.c.l.b16 %v425
    %v1646 = vunpack.c.h.b16 %v425
    %v1647 = vunpack.c.l.b16 %v426
    %v1648 = vunpack.c.h.b16 %v426
    %v1649 = vunpack.c.l.b16 %v427
    %v1650 = vunpack.c.h.b16 %v427
    %v1651 = vunpack.c.l.b16 %v428
    %v1652 = vunpack.c.h.b16 %v428
    %v1653 = vunpack.c.l.b16 %v429
    %v1654 = vunpack.c.h.b16 %v429
    %v1655 = vunpack.c.l.b16 %v430
    %v1656 = vunpack.c.h.b16 %v430
    %v1657 = vunpack.c.l.b16 %v431
    %v1658 = vunpack.c.h.b16 %v431
    %v1659 = vunpack.c.l.b16 %v432
    %v1660 = vunpack.c.h.b16 %v432
    %v1661 = vunpack.c.l.b16 %v433
    %v1662 = vunpack.c.h.b16 %v433
    %v1663 = vunpack.c.l.b16 %v434
    %v1664 = vunpack.c.h.b16 %v434
    %v1665 = vunpack.c.l.b16 %v435
    %v1666 = vunpack.c.h.b16 %v435
    %v1667 = vunpack.c.l.b16 %v436
    %v1668 = vunpack.c.h.b16 %v436
    %v1669 = vunpack.c.l.b16 %v437
    %v1670 = vunpack.c.h.b16 %v437
    %v1671 = vunpack.c.l.b16 %v438
    %v1672 = vunpack.c.h.b16 %v438
    %v1673 = vunpack.c.l.b16 %v439
    %v1674 = vunpack.c.h.b16 %v439
    %v1675 = vunpack.c.l.b16 %v440
    %v1676 = vunpack.c.h.b16 %v440
    %v1677 = vunpack.c.l.b16 %v441
    %v1678 = vunpack.c.h.b16 %v441
    %v1679 = vunpack.c.l.b16 %v442
    %v1680 = vunpack.c.h.b16 %v442
    %v1681 = vunpack.c.l.b16 %v443
    %v1682 = vunpack.c.h.b16 %v443
    %v1683 = vunpack.c.l.b16 %v444
    %v1684 = vunpack.c.h.b16 %v444
    %v1685 = vunpack.c.l.b16 %v445
    %v1686 = vunpack.c.h.b16 %v445
    %v1687 = vunpack.c.l.b16 %v446
    %v1688 = vunpack.c.h.b16 %v446
    %v1689 = vunpack.c.l.b16 %v447
    %v1690 = vunpack.c.h.b16 %v447
    %v1691 = vunpack.c.l.b16 %v448
    %v1692 = vunpack.c.h.b16 %v448
    %v1693 = vunpack.c.l.b16 %v449
    %v1694 = vunpack.c.h.b16 %v449
    %v1695 = vunpack.c.l.b16 %v450
    %v1696 = vunpack.c.h.b16 %v450
    %v1697 = vunpack.c.l.b16 %v451
    %v1698 = vunpack.c.h.b16 %v451
    %v1699 = vunpack.c.l.b16 %v452
    %v1700 = vunpack.c.h.b16 %v452
    %v1701 = vunpack.c.l.b16 %v453
    %v1702 = vunpack.c.h.b16 %v453
    %v1703 = vunpack.c.l.b16 %v454
    %v1704 = vunpack.c.h.b16 %v454
    %v1705 = vunpack.c.l.b16 %v455
    %v1706 = vunpack.c.h.b16 %v455
    %v1707 = vunpack.c.l.b16 %v456
    %v1708 = vunpack.c.h.b16 %v456
    %v1709 = vunpack.c.l.b16 %v457
    %v1710 = vunpack.c.h.b16 %v457
    %v1711 = vunpack.c.l.b16 %v458
    %v1712 = vunpack.c.h.b16 %v458
    %v1713 = vunpack.c.l.b16 %v459
    %v1714 = vunpack.c.h.b16 %v459
    %v1715 = vunpack.c.l.b16 %v460
    %v1716 = vunpack.c.h.b16 %v460
    %v1717 = vunpack.c.l.b16 %v461
    %v1718 = vunpack.c.h.b16 %v461
    %v1719 = vunpack.c.l.b16 %v462
    %v1720 = vunpack.c.h.b16 %v462
    %v1721 = vunpack.c.l.b16 %v463
    %v1722 = vunpack.c.h.b16 %v463
    %v1723 = vunpack.c.l.b16 %v464
    %v1724 = vunpack.c.h.b16 %v464
    %v1725 = vunpack.c.l.b16 %v465
    %v1726 = vunpack.c.h.b16 %v465
    %v1727 = vunpack.c.l.b16 %v466
    %v1728 = vunpack.c.h.b16 %v466
    %v1729 = vunpack.c.l.b16 %v467
    %v1730 = vunpack.c.h.b16 %v467
    %v1731 = vunpack.c.l.b16 %v468
    %v1732 = vunpack.c.h.b16 %v468
    %v1733 = vunpack.c.l.b16 %v469
    %v1734 = vunpack.c.h.b16 %v469
    %v1735 = vunpack.c.l.b16 %v470
    %v1736 = vunpack.c.h.b16 %v470
    %v1737 = vunpack.c.l.b16 %v471
    %v1738 = vunpack.c.h.b16 %v471
    %v1739 = vunpack.c.l.b16 %v472
    %v1740 = vunpack.c.h.b16 %v472
    %v1741 = vunpack.c.l.b16 %v473
    %v1742 = vunpack.c.h.b16 %v473
    %v1743 = vunpack.c.l.b16 %v474
    %v1744 = vunpack.c.h.b16 %v474
    %v1745 = vunpack.c.l.b16 %v475
    %v1746 = vunpack.c.h.b16 %v475
    %v1747 = vunpack.c.l.b16 %v476
    %v1748 = vunpack.c.h.b16 %v476
    %v1749 = vunpack.c.l.b16 %v477
    %v1750 = vunpack.c.h.b16 %v477
    %v1751 = vunpack.c.l.b16 %v478
    %v1752 = vunpack.c.h.b16 %v478
    %v1753 = vunpack.c.l.b16 %v479
    %v1754 = vunpack.c.h.b16 %v479
    %v1755 = vunpack.c.l.b16 %v480
    %v1756 = vunpack.c.h.b16 %v480
    %v1757 = vunpack.c.l.b16 %v481
    %v1758 = vunpack.c.h.b16 %v481
    %v1759 = vunpack.c.l.b16 %v482
    %v1760 = vunpack.c.h.b16 %v482
    %v1761 = vunpack.c.l.b16 %v483
    %v1762 = vunpack.c.h.b16 %v483
    %v1763 = vunpack.c.l.b16 %v484
    %v1764 = vunpack.c.h.b16 %v484
    %v1765 = vunpack.c.l.b16 %v485
    %v1766 = vunpack.c.h.b16 %v485
    %v1767 = vunpack.c.l.b16 %v486
    %v1768 = vunpack.c.h.b16 %v486
    %v1769 = vunpack.c.l.b16 %v487
    %v1770 = vunpack.c.h.b16 %v487
    %v1771 = vunpack.c.l.b16 %v488
    %v1772 = vunpack.c.h.b16 %v488
    %v1773 = vunpack.c.l.b16 %v489
    %v1774 = vunpack.c.h.b16 %v489
    %v1775 = vunpack.c.l.b16 %v490
    %v1776 = vunpack.c.h.b16 %v490
    %v1777 = vunpack.c.l.b16 %v491
    %v1778 = vunpack.c.h.b16 %v491
    %v1779 = vunpack.c.l.b16 %v492
    %v1780 = vunpack.c.h.b16 %v492
    %v1781 = vunpack.c.l.b16 %v493
    %v1782 = vunpack.c.h.b16 %v493
    %v1783 = vunpack.c.l.b16 %v494
    %v1784 = vunpack.c.h.b16 %v494
    %v1785 = vunpack.c.l.b16 %v495
    %v1786 = vunpack.c.h.b16 %v495
    %v1787 = vunpack.c.l.b16 %v496
    %v1788 = vunpack.c.h.b16 %v496
    %v1789 = vunpack.c.l.b16 %v497
    %v1790 = vunpack.c.h.b16 %v497
    %v1791 = vunpack.c.l.b16 %v498
    %v1792 = vunpack.c.h.b16 %v498
    %v1793 = vunpack.c.l.b16 %v499
    %v1794 = vunpack.c.h.b16 %v499
    %v1795 = vunpack.c.l.b16 %v500
    %v1796 = vunpack.c.h.b16 %v500
    %v1797 = vunpack.c.l.b16 %v501
    %v1798 = vunpack.c.h.b16 %v501
    %v1799 = vunpack.c.l.b16 %v502
    %v1800 = vunpack.c.h.b16 %v502
    %v1801 = vunpack.c.l.b16 %v503
    %v1802 = vunpack.c.h.b16 %v503
    %v1803 = vunpack.c.l.b16 %v504
    %v1804 = vunpack.c.h.b16 %v504
    %v1805 = vunpack.c.l.b16 %v505
    %v1806 = vunpack.c.h.b16 %v505
    %v1807 = vunpack.c.l.b16 %v506
    %v1808 = vunpack.c.h.b16 %v506
    %v1809 = vunpack.c.l.b16 %v507
    %v1810 = vunpack.c.h.b16 %v507
    %v1811 = vunpack.c.l.b16 %v508
    %v1812 = vunpack.c.h.b16 %v508
    %v1813 = vunpack.c.l.b16 %v509
    %v1814 = vunpack.c.h.b16 %v509
    %v1815 = vunpack.c.l.b16 %v510
    %v1816 = vunpack.c.h.b16 %v510
    %v1817 = vunpack.c.l.b16 %v511
    %v1818 = vunpack.c.h.b16 %v511
    %v1819 = vunpack.c.l.b16 %v512
    %v1820 = vunpack.c.h.b16 %v512
    %v1821 = vunpack.c.l.b16 %v513
    %v1822 = vunpack.c.h.b16 %v513
    %v1823 = vunpack.c.l.b16 %v514
    %v1824 = vunpack.c.h.b16 %v514
    %v1825 = vunpack.c.l.b16 %v515
    %v1826 = vunpack.c.h.b16 %v515
    %v1827 = vunpack.c.l.b16 %v516
    %v1828 = vunpack.c.h.b16 %v516
    %v1829 = vunpack.c.l.b16 %v517
    %v1830 = vunpack.c.h.b16 %v517
    %v1831 = vunpack.c.l.b16 %v518
    %v1832 = vunpack.c.h.b16 %v518
    %v1833 = vunpack.c.l.b16 %v519
    %v1834 = vunpack.c.h.b16 %v519
    %v1835 = vunpack.c.l.b16 %v520
    %v1836 = vunpack.c.h.b16 %v520
    %v1837 = vunpack.c.l.b16 %v521
    %v1838 = vunpack.c.h.b16 %v521
    %v1839 = vunpack.c.l.b16 %v522
    %v1840 = vunpack.c.h.b16 %v522
    %v1841 = vunpack.c.l.b16 %v523
    %v1842 = vunpack.c.h.b16 %v523
    %v1843 = vunpack.c.l.b16 %v524
    %v1844 = vunpack.c.h.b16 %v524
    %v1845 = vunpack.c.l.b16 %v525
    %v1846 = vunpack.c.h.b16 %v525
    %v1847 = vunpack.c.l.b16 %v526
    %v1848 = vunpack.c.h.b16 %v526
    %v1849 = vunpack.c.l.b16 %v527
    %v1850 = vunpack.c.h.b16 %v527
    %v1851 = vunpack.c.l.b16 %v528
    %v1852 = vunpack.c.h.b16 %v528
    %v1853 = vunpack.c.l.b16 %v529
    %v1854 = vunpack.c.h.b16 %v529
    %v1855 = vunpack.c.l.b16 %v530
    %v1856 = vunpack.c.h.b16 %v530
    %v1857 = vunpack.c.l.b16 %v531
    %v1858 = vunpack.c.h.b16 %v531
    %v1859 = vunpack.c.l.b16 %v532
    %v1860 = vunpack.c.h.b16 %v532
    %v1861 = vunpack.c.l.b16 %v533
    %v1862 = vunpack.c.h.b16 %v533
    %v1863 = vunpack.c.l.b16 %v534
    %v1864 = vunpack.c.h.b16 %v534
    %v1865 = vunpack.c.l.b16 %v535
    %v1866 = vunpack.c.h.b16 %v535
    %v1867 = vunpack.c.l.b16 %v536
    %v1868 = vunpack.c.h.b16 %v536
    %v1869 = vunpack.c.l.b16 %v537
    %v1870 = vunpack.c.h.b16 %v537
    %v1871 = vunpack.c.l.b16 %v538
    %v1872 = vunpack.c.h.b16 %v538
    %v1873 = vunpack.c.l.b16 %v539
    %v1874 = vunpack.c.h.b16 %v539
    %v1875 = vunpack.c.l.b16 %v540
    %v1876 = vunpack.c.h.b16 %v540
    %v1877 = vunpack.c.l.b16 %v541
    %v1878 = vunpack.c.h.b16 %v541
    %v1879 = vunpack.c.l.b16 %v542
    %v1880 = vunpack.c.h.b16 %v542
    %v1881 = vunpack.c.l.b16 %v543
    %v1882 = vunpack.c.h.b16 %v543
    %v1883 = vunpack.c.l.b16 %v544
    %v1884 = vunpack.c.h.b16 %v544
    %v1885 = vunpack.c.l.b16 %v545
    %v1886 = vunpack.c.h.b16 %v545
    %v1887 = vunpack.c.l.b16 %v546
    %v1888 = vunpack.c.h.b16 %v546
    %v1889 = vunpack.c.l.b16 %v547
    %v1890 = vunpack.c.h.b16 %v547
    %v1891 = vunpack.c.l.b16 %v548
    %v1892 = vunpack.c.h.b16 %v548
    %v1893 = vunpack.c.l.b16 %v549
    %v1894 = vunpack.c.h.b16 %v549
    %v1895 = vunpack.c.l.b16 %v550
    %v1896 = vunpack.c.h.b16 %v550
    %v1897 = vunpack.c.l.b16 %v551
    %v1898 = vunpack.c.h.b16 %v551
    %v1899 = vunpack.c.l.b16 %v552
    %v1900 = vunpack.c.h.b16 %v552
    %v1901 = vunpack.c.l.b16 %v553
    %v1902 = vunpack.c.h.b16 %v553
    %v1903 = vunpack.c.l.b16 %v554
    %v1904 = vunpack.c.h.b16 %v554
    %v1905 = vunpack.c.l.b16 %v555
    %v1906 = vunpack.c.h.b16 %v555
    %v1907 = vunpack.c.l.b16 %v556
    %v1908 = vunpack.c.h.b16 %v556
    %v1909 = vunpack.c.l.b16 %v557
    %v1910 = vunpack.c.h.b16 %v557
    %v1911 = vunpack.c.l.b16 %v558
    %v1912 = vunpack.c.h.b16 %v558
    %v1913 = vunpack.c.l.b16 %v559
    %v1914 = vunpack.c.h.b16 %v559
    %v1915 = vunpack.c.l.b16 %v560
    %v1916 = vunpack.c.h.b16 %v560
    %v1917 = vunpack.c.l.b16 %v561
    %v1918 = vunpack.c.h.b16 %v561
    %v1919 = vunpack.c.l.b16 %v562
    %v1920 = vunpack.c.h.b16 %v562
    %v1921 = vunpack.c.l.b16 %v563
    %v1922 = vunpack.c.h.b16 %v563
    %v1923 = vunpack.c.l.b16 %v564
    %v1924 = vunpack.c.h.b16 %v564
    %v1925 = vunpack.c.l.b16 %v565
    %v1926 = vunpack.c.h.b16 %v565
    %v1927 = vunpack.c.l.b16 %v566
    %v1928 = vunpack.c.h.b16 %v566
    %v1929 = vunpack.c.l.b16 %v567
    %v1930 = vunpack.c.h.b16 %v567
    %v1931 = vunpack.c.l.b16 %v568
    %v1932 = vunpack.c.h.b16 %v568
    %v1933 = vunpack.c.l.b16 %v569
    %v1934 = vunpack.c.h.b16 %v569
    %v1935 = vunpack.c.l.b16 %v570
    %v1936 = vunpack.c.h.b16 %v570
    %v1937 = vunpack.c.l.b16 %v571
    %v1938 = vunpack.c.h.b16 %v571
    %v1939 = vunpack.c.l.b16 %v572
    %v1940 = vunpack.c.h.b16 %v572
    %v1941 = vunpack.c.l.b16 %v573
    %v1942 = vunpack.c.h.b16 %v573
    %v1943 = vunpack.c.l.b16 %v574
    %v1944 = vunpack.c.h.b16 %v574
    %v1945 = vunpack.c.l.b16 %v575
    %v1946 = vunpack.c.h.b16 %v575
    %v1947 = vunpack.c.l.b16 %v576
    %v1948 = vunpack.c.h.b16 %v576
    %v1949 = vunpack.c.l.b16 %v577
    %v1950 = vunpack.c.h.b16 %v577
    %v1951 = vunpack.c.l.b16 %v578
    %v1952 = vunpack.c.h.b16 %v578
    %v1953 = vunpack.c.l.b16 %v579
    %v1954 = vunpack.c.h.b16 %v579
    %v1955 = vunpack.c.l.b16 %v580
    %v1956 = vunpack.c.h.b16 %v580
    %v1957 = vunpack.c.l.b16 %v581
    %v1958 = vunpack.c.h.b16 %v581
    %v1959 = vunpack.c.l.b16 %v582
    %v1960 = vunpack.c.h.b16 %v582
    %v1961 = vunpack.c.l.b16 %v583
    %v1962 = vunpack.c.h.b16 %v583
    %v1963 = vunpack.c.l.b16 %v584
    %v1964 = vunpack.c.h.b16 %v584
    %v1965 = vunpack.c.l.b16 %v585
    %v1966 = vunpack.c.h.b16 %v585
    %v1967 = vunpack.c.l.b16 %v586
    %v1968 = vunpack.c.h.b16 %v586
    %v1969 = vpack.c.b16 %v1193, %v1185
    %v1970 = vpack.c.b16 %v1194, %v1186
    %v1971 = vpack.c.b16 %v1195, %v1187
    %v1972 = vpack.c.b16 %v1196, %v1188
    %v1973 = vpack.c.b16 %v1197, %v1189
    %v1974 = vpack.c.b16 %v1198, %v1190
    %v1975 = vpack.c.b16 %v1199, %v1191
    %v1976 = vpack.c.b16 %v1200, %v1192
    %v1977 = vpack.c.b16 %v1209, %v1201
    %v1978 = vpack.c.b16 %v1210, %v1202
    %v1979 = vpack.c.b16 %v1211, %v1203
    %v1980 = vpack.c.b16 %v1212, %v1204
    %v1981 = vpack.c.b16 %v1213, %v1205
    %v1982 = vpack.c.b16 %v1214, %v1206
    %v1983 = vpack.c.b16 %v1215, %v1207
    %v1984 = vpack.c.b16 %v1216, %v1208
    %v1985 = vpack.c.b16 %v1225, %v1217
    %v1986 = vpack.c.b16 %v1226, %v1218
    %v1987 = vpack.c.b16 %v1227, %v1219
    %v1988 = vpack.c.b16 %v1228, %v1220
    %v1989 = vpack.c.b16 %v1229, %v1221
    %v1990 = vpack.c.b16 %v1230, %v1222
    %v1991 = vpack.c.b16 %v1231, %v1223
    %v1992 = vpack.c.b16 %v1232, %v1224
    %v1993 = vpack.c.b16 %v1241, %v1233
    %v1994 = vpack.c.b16 %v1242, %v1234
    %v1995 = vpack.c.b16 %v1243, %v1235
    %v1996 = vpack.c.b16 %v1244, %v1236
    %v1997 = vpack.c.b16 %v1245, %v1237
    %v1998 = vpack.c.b16 %v1246, %v1238
    %v1999 = vpack.c.b16 %v1247, %v1239
    %v2000 = vpack.c.b16 %v1248, %v1240
    %v2001 = vpack.c.b16 %v1257, %v1249
    %v2002 = vpack.c.b16 %v1258, %v1250
    %v2003 = vpack.c.b16 %v1259, %v1251
    %v2004 = vpack.c.b16 %v1260, %v1252
    %v2005 = vpack.c.b16 %v1261, %v1253
    %v2006 = vpack.c.b16 %v1262, %v1254
    %v2007 = vpack.c.b16 %v1263, %v1255
    %v2008 = vpack.c.b16 %v1264, %v1256
    %v2009 = vpack.c.b16 %v1273, %v1265
    %v2010 = vpack.c.b16 %v1274, %v1266
    %v2011 = vpack.c.b16 %v1275, %v1267
    %v2012 = vpack.c.b16 %v1276, %v1268
    %v2013 = vpack.c.b16 %v1277, %v1269
    %v2014 = vpack.c.b16 %v1278, %v1270
    %v2015 = vpack.c.b16 %v1279, %v1271
    %v2016 = vpack.c.b16 %v1280, %v1272
    %v2017 = vpack.c.b16 %v1289, %v1281
    %v2018 = vpack.c.b16 %v1290, %v1282
    %v2019 = vpack.c.b16 %v1291, %v1283
    %v2020 = vpack.c.b16 %v1292, %v1284
    %v2021 = vpack.c.b16 %v1293, %v1285
    %v2022 = vpack.c.b16 %v1294, %v1286
    %v2023 = vpack.c.b16 %v1295, %v1287
    %v2024 = vpack.c.b16 %v1296, %v1288
    %v2025 = vpack.c.b16 %v1305, %v1297
    %v2026 = vpack.c.b16 %v1306, %v1298
    %v2027 = vpack.c.b16 %v1307, %v1299
    %v2028 = vpack.c.b16 %v1308, %v1300
    %v2029 = vpack.c.b16 %v1309, %v1301
    %v2030 = vpack.c.b16 %v1310, %v1302
    %v2031 = vpack.c.b16 %v1311, %v1303
    %v2032 = vpack.c.b16 %v1312, %v1304
    %v2033 = vpack.c.b16 %v1321, %v1313
    %v2034 = vpack.c.b16 %v1322, %v1314
    %v2035 = vpack.c.b16 %v1323, %v1315
    %v2036 = vpack.c.b16 %v1324, %v1316
    %v2037 = vpack.c.b16 %v1325, %v1317
    %v2038 = vpack.c.b16 %v1326, %v1318
    %v2039 = vpack.c.b16 %v1327, %v1319
    %v2040 = vpack.c.b16 %v1328, %v1320
    %v2041 = vpack.c.b16 %v1337, %v1329
    %v2042 = vpack.c.b16 %v1338, %v1330
    %v2043 = vpack.c.b16 %v1339, %v1331
    %v2044 = vpack.c.b16 %v1340, %v1332
    %v2045 = vpack.c.b16 %v1341, %v1333
    %v2046 = vpack.c.b16 %v1342, %v1334
    %v2047 = vpack.c.b16 %v1343, %v1335
    %v2048 = vpack.c.b16 %v1344, %v1336
    %v2049 = vpack.c.b16 %v1353, %v1345
    %v2050 = vpack.c.b16 %v1354, %v1346
    %v2051 = vpack.c.b16 %v1355, %v1347
    %v2052 = vpack.c.b16 %v1356, %v1348
    %v2053 = vpack.c.b16 %v1357, %v1349
    %v2054 = vpack.c.b16 %v1358, %v1350
    %v2055 = vpack.c.b16 %v1359, %v1351
    %v2056 = vpack.c.b16 %v1360, %v1352
    %v2057 = vpack.c.b16 %v1369, %v1361
    %v2058 = vpack.c.b16 %v1370, %v1362
    %v2059 = vpack.c.b16 %v1371, %v1363
    %v2060 = vpack.c.b16 %v1372, %v1364
    %v2061 = vpack.c.b16 %v1373, %v1365
    %v2062 = vpack.c.b16 %v1374, %v1366
    %v2063 = vpack.c.b16 %v1375, %v1367
    %v2064 = vpack.c.b16 %v1376, %v1368
    %v2065 = vpack.c.b16 %v1385, %v1377
    %v2066 = vpack.c.b16 %v1386, %v1378
    %v2067 = vpack.c.b16 %v1387, %v1379
    %v2068 = vpack.c.b16 %v1388, %v1380
    %v2069 = vpack.c.b16 %v1389, %v1381
    %v2070 = vpack.c.b16 %v1390, %v1382
    %v2071 = vpack.c.b16 %v1391, %v1383
    %v2072 = vpack.c.b16 %v1392, %v1384
    %v2073 = vpack.c.b16 %v1401, %v1393
    %v2074 = vpack.c.b16 %v1402, %v1394
    %v2075 = vpack.c.b16 %v1403, %v1395
    %v2076 = vpack.c.b16 %v1404, %v1396
    %v2077 = vpack.c.b16 %v1405, %v1397
    %v2078 = vpack.c.b16 %v1406, %v1398
    %v2079 = vpack.c.b16 %v1407, %v1399
    %v2080 = vpack.c.b16 %v1408, %v1400
    %v2081 = vpack.c.b16 %v1417, %v1409
    %v2082 = vpack.c.b16 %v1418, %v1410
    %v2083 = vpack.c.b16 %v1419, %v1411
    %v2084 = vpack.c.b16 %v1420, %v1412
    %v2085 = vpack.c.b16 %v1421, %v1413
    %v2086 = vpack.c.b16 %v1422, %v1414
    %v2087 = vpack.c.b16 %v1423, %v1415
    %v2088 = vpack.c.b16 %v1424, %v1416
    %v2089 = vpack.c.b16 %v1433, %v1425
    %v2090 = vpack.c.b16 %v1434, %v1426
    %v2091 = vpack.c.b16 %v1435, %v1427
    %v2092 = vpack.c.b16 %v1436, %v1428
    %v2093 = vpack.c.b16 %v1437, %v1429
    %v2094 = vpack.c.b16 %v1438, %v1430
    %v2095 = vpack.c.b16 %v1439, %v1431
    %v2096 = vpack.c.b16 %v1440, %v1432
    %v2097 = vpack.c.b16 %v1449, %v1441
    %v2098 = vpack.c.b16 %v1450, %v1442
    %v2099 = vpack.c.b16 %v1451, %v1443
    %v2100 = vpack.c.b16 %v1452, %v1444
    %v2101 = vpack.c.b16 %v1453, %v1445
    %v2102 = vpack.c.b16 %v1454, %v1446
    %v2103 = vpack.c.b16 %v1455, %v1447
    %v2104 = vpack.c.b16 %v1456, %v1448
    %v2105 = vpack.c.b16 %v1465, %v1457
    %v2106 = vpack.c.b16 %v1466, %v1458
    %v2107 = vpack.c.b16 %v1467, %v1459
    %v2108 = vpack.c.b16 %v1468, %v1460
    %v2109 = vpack.c.b16 %v1469, %v1461
    %v2110 = vpack.c.b16 %v1470, %v1462
    %v2111 = vpack.c.b16 %v1471, %v1463
    %v2112 = vpack.c.b16 %v1472, %v1464
    %v2113 = vpack.c.b16 %v1481, %v1473
    %v2114 = vpack.c.b16 %v1482, %v1474
    %v2115 = vpack.c.b16 %v1483, %v1475
    %v2116 = vpack.c.b16 %v1484, %v1476
    %v2117 = vpack.c.b16 %v1485, %v1477
    %v2118 = vpack.c.b16 %v1486, %v1478
    %v2119 = vpack.c.b16 %v1487, %v1479
    %v2120 = vpack.c.b16 %v1488, %v1480
    %v2121 = vpack.c.b16 %v1497, %v1489
    %v2122 = vpack.c.b16 %v1498, %v1490
    %v2123 = vpack.c.b16 %v1499, %v1491
    %v2124 = vpack.c.b16 %v1500, %v1492
    %v2125 = vpack.c.b16 %v1501, %v1493
    %v2126 = vpack.c.b16 %v1502, %v1494
    %v2127 = vpack.c.b16 %v1503, %v1495
    %v2128 = vpack.c.b16 %v1504, %v1496
    %v2129 = vpack.c.b16 %v1513, %v1505
    %v2130 = vpack.c.b16 %v1514, %v1506
    %v2131 = vpack.c.b16 %v1515, %v1507
    %v2132 = vpack.c.b16 %v1516, %v1508
    %v2133 = vpack.c.b16 %v1517, %v1509
    %v2134 = vpack.c.b16 %v1518, %v1510
    %v2135 = vpack.c.b16 %v1519, %v1511
    %v2136 = vpack.c.b16 %v1520, %v1512
    %v2137 = vpack.c.b16 %v1529, %v1521
    %v2138 = vpack.c.b16 %v1530, %v1522
    %v2139 = vpack.c.b16 %v1531, %v1523
    %v2140 = vpack.c.b16 %v1532, %v1524
    %v2141 = vpack.c.b16 %v1533, %v1525
    %v2142 = vpack.c.b16 %v1534, %v1526
    %v2143 = vpack.c.b16 %v1535, %v1527
    %v2144 = vpack.c.b16 %v1536, %v1528
    %v2145 = vpack.c.b16 %v1545, %v1537
    %v2146 = vpack.c.b16 %v1546, %v1538
    %v2147 = vpack.c.b16 %v1547, %v1539
    %v2148 = vpack.c.b16 %v1548, %v1540
    %v2149 = vpack.c.b16 %v1549, %v1541
    %v2150 = vpack.c.b16 %v1550, %v1542
    %v2151 = vpack.c.b16 %v1551, %v1543
    %v2152 = vpack.c.b16 %v1552, %v1544
    %v2153 = vpack.c.b16 %v1561, %v1553
    %v2154 = vpack.c.b16 %v1562, %v1554
    %v2155 = vpack.c.b16 %v1563, %v1555
    %v2156 = vpack.c.b16 %v1564, %v1556
    %v2157 = vpack.c.b16 %v1565, %v1557
    %v2158 = vpack.c.b16 %v1566, %v1558
    %v2159 = vpack.c.b16 %v1567, %v1559
    %v2160 = vpack.c.b16 %v1568, %v1560
    %v2161 = vpack.c.b16 %v1577, %v1569
    %v2162 = vpack.c.b16 %v1578, %v1570
    %v2163 = vpack.c.b16 %v1579, %v1571
    %v2164 = vpack.c.b16 %v1580, %v1572
    %v2165 = vpack.c.b16 %v1581, %v1573
    %v2166 = vpack.c.b16 %v1582, %v1574
    %v2167 = vpack.c.b16 %v1583, %v1575
    %v2168 = vpack.c.b16 %v1584, %v1576
    %v2169 = vpack.c.b16 %v1593, %v1585
    %v2170 = vpack.c.b16 %v1594, %v1586
    %v2171 = vpack.c.b16 %v1595, %v1587
    %v2172 = vpack.c.b16 %v1596, %v1588
    %v2173 = vpack.c.b16 %v1597, %v1589
    %v2174 = vpack.c.b16 %v1598, %v1590
    %v2175 = vpack.c.b16 %v1599, %v1591
    %v2176 = vpack.c.b16 %v1600, %v1592
    %v2177 = vpack.c.b16 %v1609, %v1601
    %v2178 = vpack.c.b16 %v1610, %v1602
    %v2179 = vpack.c.b16 %v1611, %v1603
    %v2180 = vpack.c.b16 %v1612, %v1604
    %v2181 = vpack.c.b16 %v1613, %v1605
    %v2182 = vpack.c.b16 %v1614, %v1606
    %v2183 = vpack.c.b16 %v1615, %v1607
    %v2184 = vpack.c.b16 %v1616, %v1608
    %v2185 = vpack.c.b16 %v1625, %v1617
    %v2186 = vpack.c.b16 %v1626, %v1618
    %v2187 = vpack.c.b16 %v1627, %v1619
    %v2188 = vpack.c.b16 %v1628, %v1620
    %v2189 = vpack.c.b16 %v1629, %v1621
    %v2190 = vpack.c.b16 %v1630, %v1622
    %v2191 = vpack.c.b16 %v1631, %v1623
    %v2192 = vpack.c.b16 %v1632, %v1624
    %v2193 = vpack.c.b16 %v1641, %v1633
    %v2194 = vpack.c.b16 %v1642, %v1634
    %v2195 = vpack.c.b16 %v1643, %v1635
    %v2196 = vpack.c.b16 %v1644, %v1636
    %v2197 = vpack.c.b16 %v1645, %v1637
    %v2198 = vpack.c.b16 %v1646, %v1638
    %v2199 = vpack.c.b16 %v1647, %v1639
    %v2200 = vpack.c.b16 %v1648, %v1640
    %v2201 = vpack.c.b16 %v1657, %v1649
    %v2202 = vpack.c.b16 %v1658, %v1650
    %v2203 = vpack.c.b16 %v1659, %v1651
    %v2204 = vpack.c.b16 %v1660, %v1652
    %v2205 = vpack.c.b16 %v1661, %v1653
    %v2206 = vpack.c.b16 %v1662, %v1654
    %v2207 = vpack.c.b16 %v1663, %v1655
    %v2208 = vpack.c.b16 %v1664, %v1656
    %v2209 = vpack.c.b16 %v1673, %v1665
    %v2210 = vpack.c.b16 %v1674, %v1666
    %v2211 = vpack.c.b16 %v1675, %v1667
    %v2212 = vpack.c.b16 %v1676, %v1668
    %v2213 = vpack.c.b16 %v1677, %v1669
    %v2214 = vpack.c.b16 %v1678, %v1670
    %v2215 = vpack.c.b16 %v1679, %v1671
    %v2216 = vpack.c.b16 %v1680, %v1672
    %v2217 = vpack.c.b16 %v1689, %v1681
    %v2218 = vpack.c.b16 %v1690, %v1682
    %v2219 = vpack.c.b16 %v1691, %v1683
    %v2220 = vpack.c.b16 %v1692, %v1684
    %v2221 = vpack.c.b16 %v1693, %v1685
    %v2222 = vpack.c.b16 %v1694, %v1686
    %v2223 = vpack.c.b16 %v1695, %v1687
    %v2224 = vpack.c.b16 %v1696, %v1688
    %v2225 = vpack.c.b16 %v1705, %v1697
    %v2226 = vpack.c.b16 %v1706, %v1698
    %v2227 = vpack.c.b16 %v1707, %v1699
    %v2228 = vpack.c.b16 %v1708, %v1700
    %v2229 = vpack.c.b16 %v1709, %v1701
    %v2230 = vpack.c.b16 %v1710, %v1702
    %v2231 = vpack.c.b16 %v1711, %v1703
    %v2232 = vpack.c.b16 %v1712, %v1704
    %v2233 = vpack.c.b16 %v1721, %v1713
    %v2234 = vpack.c.b16 %v1722, %v1714
    %v2235 = vpack.c.b16 %v1723, %v1715
    %v2236 = vpack.c.b16 %v1724, %v1716
    %v2237 = vpack.c.b16 %v1725, %v1717
    %v2238 = vpack.c.b16 %v1726, %v1718
    %v2239 = vpack.c.b16 %v1727, %v1719
    %v2240 = vpack.c.b16 %v1728, %v1720
    %v2241 = vpack.c.b16 %v1737, %v1729
    %v2242 = vpack.c.b16 %v1738, %v1730
    %v2243 = vpack.c.b16 %v1739, %v1731
    %v2244 = vpack.c.b16 %v1740, %v1732
    %v2245 = vpack.c.b16 %v1741, %v1733
    %v2246 = vpack.c.b16 %v1742, %v1734
    %v2247 = vpack.c.b16 %v1743, %v1735
    %v2248 = vpack.c.b16 %v1744, %v1736
    %v2249 = vpack.c.b16 %v1753, %v1745
    %v2250 = vpack.c.b16 %v1754, %v1746
    %v2251 = vpack.c.b16 %v1755, %v1747
    %v2252 = vpack.c.b16 %v1756, %v1748
    %v2253 = vpack.c.b16 %v1757, %v1749
    %v2254 = vpack.c.b16 %v1758, %v1750
    %v2255 = vpack.c.b16 %v1759, %v1751
    %v2256 = vpack.c.b16 %v1760, %v1752
    %v2257 = vpack.c.b16 %v1769, %v1761
    %v2258 = vpack.c.b16 %v1770, %v1762
    %v2259 = vpack.c.b16 %v1771, %v1763
    %v2260 = vpack.c.b16 %v1772, %v1764
    %v2261 = vpack.c.b16 %v1773, %v1765
    %v2262 = vpack.c.b16 %v1774, %v1766
    %v2263 = vpack.c.b16 %v1775, %v1767
    %v2264 = vpack.c.b16 %v1776, %v1768
    %v2265 = vpack.c.b16 %v1785, %v1777
    %v2266 = vpack.c.b16 %v1786, %v1778
    %v2267 = vpack.c.b16 %v1787, %v1779
    %v2268 = vpack.c.b16 %v1788, %v1780
    %v2269 = vpack.c.b16 %v1789, %v1781
    %v2270 = vpack.c.b16 %v1790, %v1782
    %v2271 = vpack.c.b16 %v1791, %v1783
    %v2272 = vpack.c.b16 %v1792, %v1784
    %v2273 = vpack.c.b16 %v1801, %v1793
    %v2274 = vpack.c.b16 %v1802, %v1794
    %v2275 = vpack.c.b16 %v1803, %v1795
    %v2276 = vpack.c.b16 %v1804, %v1796
    %v2277 = vpack.c.b16 %v1805, %v1797
    %v2278 = vpack.c.b16 %v1806, %v1798
    %v2279 = vpack.c.b16 %v1807, %v1799
    %v2280 = vpack.c.b16 %v1808, %v1800
    %v2281 = vpack.c.b16 %v1817, %v1809
    %v2282 = vpack.c.b16 %v1818, %v1810
    %v2283 = vpack.c.b16 %v1819, %v1811
    %v2284 = vpack.c.b16 %v1820, %v1812
    %v2285 = vpack.c.b16 %v1821, %v1813
    %v2286 = vpack.c.b16 %v1822, %v1814
    %v2287 = vpack.c.b16 %v1823, %v1815
    %v2288 = vpack.c.b16 %v1824, %v1816
    %v2289 = vpack.c.b16 %v1833, %v1825
    %v2290 = vpack.c.b16 %v1834, %v1826
    %v2291 = vpack.c.b16 %v1835, %v1827
    %v2292 = vpack.c.b16 %v1836, %v1828
    %v2293 = vpack.c.b16 %v1837, %v1829
    %v2294 = vpack.c.b16 %v1838, %v1830
    %v2295 = vpack.c.b16 %v1839, %v1831
    %v2296 = vpack.c.b16 %v1840, %v1832
    %v2297 = vpack.c.b16 %v1849, %v1841
    %v2298 = vpack.c.b16 %v1850, %v1842
    %v2299 = vpack.c.b16 %v1851, %v1843
    %v2300 = vpack.c.b16 %v1852, %v1844
    %v2301 = vpack.c.b16 %v1853, %v1845
    %v2302 = vpack.c.b16 %v1854, %v1846
    %v2303 = vpack.c.b16 %v1855, %v1847
    %v2304 = vpack.c.b16 %v1856, %v1848
    %v2305 = vpack.c.b16 %v1865, %v1857
    %v2306 = vpack.c.b16 %v1866, %v1858
    %v2307 = vpack.c.b16 %v1867, %v1859
    %v2308 = vpack.c.b16 %v1868, %v1860
    %v2309 = vpack.c.b16 %v1869, %v1861
    %v2310 = vpack.c.b16 %v1870, %v1862
    %v2311 = vpack.c.b16 %v1871, %v1863
    %v2312 = vpack.c.b16 %v1872, %v1864
    %v2313 = vpack.c.b16 %v1881, %v1873
    %v2314 = vpack.c.b16 %v1882, %v1874
    %v2315 = vpack.c.b16 %v1883, %v1875
    %v2316 = vpack.c.b16 %v1884, %v1876
    %v2317 = vpack.c.b16 %v1885, %v1877
    %v2318 = vpack.c.b16 %v1886, %v1878
    %v2319 = vpack.c.b16 %v1887, %v1879
    %v2320 = vpack.c.b16 %v1888, %v1880
    %v2321 = vpack.c.b16 %v1897, %v1889
    %v2322 = vpack.c.b16 %v1898, %v1890
    %v2323 = vpack.c.b16 %v1899, %v1891
    %v2324 = vpack.c.b16 %v1900, %v1892
    %v2325 = vpack.c.b16 %v1901, %v1893
    %v2326 = vpack.c.b16 %v1902, %v1894
    %v2327 = vpack.c.b16 %v1903, %v1895
    %v2328 = vpack.c.b16 %v1904, %v1896
    %v2329 = vpack.c.b16 %v1913, %v1905
    %v2330 = vpack.c.b16 %v1914, %v1906
    %v2331 = vpack.c.b16 %v1915, %v1907
    %v2332 = vpack.c.b16 %v1916, %v1908
    %v2333 = vpack.c.b16 %v1917, %v1909
    %v2334 = vpack.c.b16 %v1918, %v1910
    %v2335 = vpack.c.b16 %v1919, %v1911
    %v2336 = vpack.c.b16 %v1920, %v1912
    %v2337 = vpack.c.b16 %v1929, %v1921
    %v2338 = vpack.c.b16 %v1930, %v1922
    %v2339 = vpack.c.b16 %v1931, %v1923
    %v2340 = vpack.c.b16 %v1932, %v1924
    %v2341 = vpack.c.b16 %v1933, %v1925
    %v2342 = vpack.c.b16 %v1934, %v1926
    %v2343 = vpack.c.b16 %v1935, %v1927
    %v2344 = vpack.c.b16 %v1936, %v1928
    %v2345 = vpack.c.b16 %v1945, %v1937
    %v2346 = vpack.c.b16 %v1946, %v1938
    %v2347 = vpack.c.b16 %v1947, %v1939
    %v2348 = vpack.c.b16 %v1948, %v1940
    %v2349 = vpack.c.b16 %v1949, %v1941
    %v2350 = vpack.c.b16 %v1950, %v1942
    %v2351 = vpack.c.b16 %v1951, %v1943
    %v2352 = vpack.c.b16 %v1952, %v1944
    %v2353 = vpack.c.b16 %v1961, %v1953
    %v2354 = vpack.c.b16 %v1962, %v1954
    %v2355 = vpack.c.b16 %v1963, %v1955
    %v2356 = vpack.c.b16 %v1964, %v1956
    %v2357 = vpack.c.b16 %v1965, %v1957
    %v2358 = vpack.c.b16 %v1966, %v1958
    %v2359 = vpack.c.b16 %v1967, %v1959
    %v2360 = vpack.c.b16 %v1968, %v1960
    %v2754 = vsel %vm642, %v786, 0
    %2756 = vmatpush.bf16.msra.mxu0 %v2025
    %2757 = vmatpush.bf16.msra.mxu0 %v2017
    %2758 = vmatpush.bf16.msra.mxu0 %v2009
    %2759 = vmatpush.bf16.msra.mxu0 %v2001
    %2760 = vmatpush.bf16.msra.mxu0 %v1993
    %2761 = vmatpush.bf16.msra.mxu0 %v1985
    %2762 = vmatpush.bf16.msra.mxu0 %v1977
    %2763 = vmatpush.bf16.msra.mxu0 %v1969
    %2764 = vmatmul.bf16.gmra.mxu0 %v780
    %v2765 = vpop.f32.mrf.mxu0
    %v2766 = vadd.f32 %v656, %v2765
    %v2767 = vpop.f32.mrf.mxu0
    %v2768 = vadd.f32 %v658, %v2767
    %2769 = vdwg.mxu0
    %2770 = vmatpush.bf16.msra.mxu0 %v2089
    %2771 = vmatpush.bf16.msra.mxu0 %v2081
    %2772 = vmatpush.bf16.msra.mxu0 %v2073
    %2773 = vmatpush.bf16.msra.mxu0 %v2065
    %2774 = vmatpush.bf16.msra.mxu0 %v2057
    %2775 = vmatpush.bf16.msra.mxu0 %v2049
    %2776 = vmatpush.bf16.msra.mxu0 %v2041
    %2777 = vmatpush.bf16.msra.mxu0 %v2033
    %2778 = vmatmul.bf16.gmra.mxu0 %v781
    %v2779 = vpop.f32.mrf.mxu0
    %v2780 = vadd.f32 %v2766, %v2779
    %v2781 = vpop.f32.mrf.mxu0
    %v2782 = vadd.f32 %v2768, %v2781
    %2783 = vdwg.mxu0
    %2784 = vmatpush.bf16.msra.mxu0 %v2153
    %2785 = vmatpush.bf16.msra.mxu0 %v2145
    %2786 = vmatpush.bf16.msra.mxu0 %v2137
    %2787 = vmatpush.bf16.msra.mxu0 %v2129
    %2788 = vmatpush.bf16.msra.mxu0 %v2121
    %2789 = vmatpush.bf16.msra.mxu0 %v2113
    %2790 = vmatpush.bf16.msra.mxu0 %v2105
    %2791 = vmatpush.bf16.msra.mxu0 %v2097
    %2792 = vmatmul.bf16.gmra.mxu0 %v782
    %v2793 = vpop.f32.mrf.mxu0
    %v2794 = vadd.f32 %v2780, %v2793
    %v2795 = vpop.f32.mrf.mxu0
    %v2796 = vadd.f32 %v2782, %v2795
    %2797 = vdwg.mxu0
    %2798 = vmatpush.bf16.msra.mxu0 %v2217
    %2799 = vmatpush.bf16.msra.mxu0 %v2209
    %2800 = vmatpush.bf16.msra.mxu0 %v2201
    %2801 = vmatpush.bf16.msra.mxu0 %v2193
    %2802 = vmatpush.bf16.msra.mxu0 %v2185
    %2803 = vmatpush.bf16.msra.mxu0 %v2177
    %2804 = vmatpush.bf16.msra.mxu0 %v2169
    %2805 = vmatpush.bf16.msra.mxu0 %v2161
    %2806 = vmatmul.bf16.gmra.mxu0 %v783
    %v2807 = vpop.f32.mrf.mxu0
    %v2808 = vadd.f32 %v2794, %v2807
    %v2809 = vpop.f32.mrf.mxu0
    %v2810 = vadd.f32 %v2796, %v2809
    %2811 = vdwg.mxu0
    %2812 = vmatpush.bf16.msra.mxu0 %v2281
    %2813 = vmatpush.bf16.msra.mxu0 %v2273
    %2814 = vmatpush.bf16.msra.mxu0 %v2265
    %2815 = vmatpush.bf16.msra.mxu0 %v2257
    %2816 = vmatpush.bf16.msra.mxu0 %v2249
    %2817 = vmatpush.bf16.msra.mxu0 %v2241
    %2818 = vmatpush.bf16.msra.mxu0 %v2233
    %2819 = vmatpush.bf16.msra.mxu0 %v2225
    %2820 = vmatmul.bf16.gmra.mxu0 %v784
    %v2821 = vpop.f32.mrf.mxu0
    %v2822 = vadd.f32 %v2808, %v2821
    %v2823 = vpop.f32.mrf.mxu0
    %v2824 = vadd.f32 %v2810, %v2823
    %2825 = vdwg.mxu0
    %2826 = vmatpush.bf16.msra.mxu0 %v2345
    %2827 = vmatpush.bf16.msra.mxu0 %v2337
    %2828 = vmatpush.bf16.msra.mxu0 %v2329
    %2829 = vmatpush.bf16.msra.mxu0 %v2321
    %2830 = vmatpush.bf16.msra.mxu0 %v2313
    %2831 = vmatpush.bf16.msra.mxu0 %v2305
    %2832 = vmatpush.bf16.msra.mxu0 %v2297
    %2833 = vmatpush.bf16.msra.mxu0 %v2289
    %2834 = vmatmul.bf16.gmra.mxu0 %v785
    %v2835 = vpop.f32.mrf.mxu0
    %v2836 = vadd.f32 %v2822, %v2835
    %v2837 = vpop.f32.mrf.mxu0
    %v2838 = vadd.f32 %v2824, %v2837
    %2839 = vdwg.mxu0
    %2840 = vmatpush.bf16.msra.mxu0 0
    %2841 = vmatpush.bf16.msra.mxu0 0
    %2842 = vmatpush.bf16.msra.mxu0 0
    %2843 = vmatpush.bf16.msra.mxu0 0
    %2844 = vmatpush.bf16.msra.mxu0 0
    %2845 = vmatpush.bf16.msra.mxu0 0
    %2846 = vmatpush.bf16.msra.mxu0 0
    %2847 = vmatpush.bf16.msra.mxu0 %v2353
    %2848 = vmatmul.bf16.gmra.mxu0 %v2754
    %v2849 = vpop.f32.mrf.mxu0
    %v2850 = vadd.f32 %v2836, %v2849
    %v2851 = vpop.f32.mrf.mxu0
    %v2852 = vadd.f32 %v2838, %v2851
    %2853 = vdwg.mxu0
    %2854 = vmatpush.bf16.msra.mxu0 %v2026
    %2855 = vmatpush.bf16.msra.mxu0 %v2018
    %2856 = vmatpush.bf16.msra.mxu0 %v2010
    %2857 = vmatpush.bf16.msra.mxu0 %v2002
    %2858 = vmatpush.bf16.msra.mxu0 %v1994
    %2859 = vmatpush.bf16.msra.mxu0 %v1986
    %2860 = vmatpush.bf16.msra.mxu0 %v1978
    %2861 = vmatpush.bf16.msra.mxu0 %v1970
    %2862 = vmatmul.bf16.gmra.mxu0 %v780
    %v2863 = vpop.f32.mrf.mxu0
    %v2864 = vadd.f32 %v670, %v2863
    %v2865 = vpop.f32.mrf.mxu0
    %v2866 = vadd.f32 %v672, %v2865
    %2867 = vdwg.mxu0
    %2868 = vmatpush.bf16.msra.mxu0 %v2090
    %2869 = vmatpush.bf16.msra.mxu0 %v2082
    %2870 = vmatpush.bf16.msra.mxu0 %v2074
    %2871 = vmatpush.bf16.msra.mxu0 %v2066
    %2872 = vmatpush.bf16.msra.mxu0 %v2058
    %2873 = vmatpush.bf16.msra.mxu0 %v2050
    %2874 = vmatpush.bf16.msra.mxu0 %v2042
    %2875 = vmatpush.bf16.msra.mxu0 %v2034
    %2876 = vmatmul.bf16.gmra.mxu0 %v781
    %v2877 = vpop.f32.mrf.mxu0
    %v2878 = vadd.f32 %v2864, %v2877
    %v2879 = vpop.f32.mrf.mxu0
    %v2880 = vadd.f32 %v2866, %v2879
    %2881 = vdwg.mxu0
    %2882 = vmatpush.bf16.msra.mxu0 %v2154
    %2883 = vmatpush.bf16.msra.mxu0 %v2146
    %2884 = vmatpush.bf16.msra.mxu0 %v2138
    %2885 = vmatpush.bf16.msra.mxu0 %v2130
    %2886 = vmatpush.bf16.msra.mxu0 %v2122
    %2887 = vmatpush.bf16.msra.mxu0 %v2114
    %2888 = vmatpush.bf16.msra.mxu0 %v2106
    %2889 = vmatpush.bf16.msra.mxu0 %v2098
    %2890 = vmatmul.bf16.gmra.mxu0 %v782
    %v2891 = vpop.f32.mrf.mxu0
    %v2892 = vadd.f32 %v2878, %v2891
    %v2893 = vpop.f32.mrf.mxu0
    %v2894 = vadd.f32 %v2880, %v2893
    %2895 = vdwg.mxu0
    %2896 = vmatpush.bf16.msra.mxu0 %v2218
    %2897 = vmatpush.bf16.msra.mxu0 %v2210
    %2898 = vmatpush.bf16.msra.mxu0 %v2202
    %2899 = vmatpush.bf16.msra.mxu0 %v2194
    %2900 = vmatpush.bf16.msra.mxu0 %v2186
    %2901 = vmatpush.bf16.msra.mxu0 %v2178
    %2902 = vmatpush.bf16.msra.mxu0 %v2170
    %2903 = vmatpush.bf16.msra.mxu0 %v2162
    %2904 = vmatmul.bf16.gmra.mxu0 %v783
    %v2905 = vpop.f32.mrf.mxu0
    %v2906 = vadd.f32 %v2892, %v2905
    %v2907 = vpop.f32.mrf.mxu0
    %v2908 = vadd.f32 %v2894, %v2907
    %2909 = vdwg.mxu0
    %2910 = vmatpush.bf16.msra.mxu0 %v2282
    %2911 = vmatpush.bf16.msra.mxu0 %v2274
    %2912 = vmatpush.bf16.msra.mxu0 %v2266
    %2913 = vmatpush.bf16.msra.mxu0 %v2258
    %2914 = vmatpush.bf16.msra.mxu0 %v2250
    %2915 = vmatpush.bf16.msra.mxu0 %v2242
    %2916 = vmatpush.bf16.msra.mxu0 %v2234
    %2917 = vmatpush.bf16.msra.mxu0 %v2226
    %2918 = vmatmul.bf16.gmra.mxu0 %v784
    %v2919 = vpop.f32.mrf.mxu0
    %v2920 = vadd.f32 %v2906, %v2919
    %v2921 = vpop.f32.mrf.mxu0
    %v2922 = vadd.f32 %v2908, %v2921
    %2923 = vdwg.mxu0
    %2924 = vmatpush.bf16.msra.mxu0 %v2346
    %2925 = vmatpush.bf16.msra.mxu0 %v2338
    %2926 = vmatpush.bf16.msra.mxu0 %v2330
    %2927 = vmatpush.bf16.msra.mxu0 %v2322
    %2928 = vmatpush.bf16.msra.mxu0 %v2314
    %2929 = vmatpush.bf16.msra.mxu0 %v2306
    %2930 = vmatpush.bf16.msra.mxu0 %v2298
    %2931 = vmatpush.bf16.msra.mxu0 %v2290
    %2932 = vmatmul.bf16.gmra.mxu0 %v785
    %v2933 = vpop.f32.mrf.mxu0
    %v2934 = vadd.f32 %v2920, %v2933
    %v2935 = vpop.f32.mrf.mxu0
    %v2936 = vadd.f32 %v2922, %v2935
    %2937 = vdwg.mxu0
    %2938 = vmatpush.bf16.msra.mxu0 0
    %2939 = vmatpush.bf16.msra.mxu0 0
    %2940 = vmatpush.bf16.msra.mxu0 0
    %2941 = vmatpush.bf16.msra.mxu0 0
    %2942 = vmatpush.bf16.msra.mxu0 0
    %2943 = vmatpush.bf16.msra.mxu0 0
    %2944 = vmatpush.bf16.msra.mxu0 0
    %2945 = vmatpush.bf16.msra.mxu0 %v2354
    %2946 = vmatmul.bf16.gmra.mxu0 %v2754
    %v2947 = vpop.f32.mrf.mxu0
    %v2948 = vadd.f32 %v2934, %v2947
    %v2949 = vpop.f32.mrf.mxu0
    %v2950 = vadd.f32 %v2936, %v2949
    %2951 = vdwg.mxu0
    %2952 = vmatpush.bf16.msra.mxu0 %v2027
    %2953 = vmatpush.bf16.msra.mxu0 %v2019
    %2954 = vmatpush.bf16.msra.mxu0 %v2011
    %2955 = vmatpush.bf16.msra.mxu0 %v2003
    %2956 = vmatpush.bf16.msra.mxu0 %v1995
    %2957 = vmatpush.bf16.msra.mxu0 %v1987
    %2958 = vmatpush.bf16.msra.mxu0 %v1979
    %2959 = vmatpush.bf16.msra.mxu0 %v1971
    %2960 = vmatmul.bf16.gmra.mxu0 %v780
    %v2961 = vpop.f32.mrf.mxu0
    %v2962 = vadd.f32 %v684, %v2961
    %v2963 = vpop.f32.mrf.mxu0
    %v2964 = vadd.f32 %v686, %v2963
    %2965 = vdwg.mxu0
    %2966 = vmatpush.bf16.msra.mxu0 %v2091
    %2967 = vmatpush.bf16.msra.mxu0 %v2083
    %2968 = vmatpush.bf16.msra.mxu0 %v2075
    %2969 = vmatpush.bf16.msra.mxu0 %v2067
    %2970 = vmatpush.bf16.msra.mxu0 %v2059
    %2971 = vmatpush.bf16.msra.mxu0 %v2051
    %2972 = vmatpush.bf16.msra.mxu0 %v2043
    %2973 = vmatpush.bf16.msra.mxu0 %v2035
    %2974 = vmatmul.bf16.gmra.mxu0 %v781
    %v2975 = vpop.f32.mrf.mxu0
    %v2976 = vadd.f32 %v2962, %v2975
    %v2977 = vpop.f32.mrf.mxu0
    %v2978 = vadd.f32 %v2964, %v2977
    %2979 = vdwg.mxu0
    %2980 = vmatpush.bf16.msra.mxu0 %v2155
    %2981 = vmatpush.bf16.msra.mxu0 %v2147
    %2982 = vmatpush.bf16.msra.mxu0 %v2139
    %2983 = vmatpush.bf16.msra.mxu0 %v2131
    %2984 = vmatpush.bf16.msra.mxu0 %v2123
    %2985 = vmatpush.bf16.msra.mxu0 %v2115
    %2986 = vmatpush.bf16.msra.mxu0 %v2107
    %2987 = vmatpush.bf16.msra.mxu0 %v2099
    %2988 = vmatmul.bf16.gmra.mxu0 %v782
    %v2989 = vpop.f32.mrf.mxu0
    %v2990 = vadd.f32 %v2976, %v2989
    %v2991 = vpop.f32.mrf.mxu0
    %v2992 = vadd.f32 %v2978, %v2991
    %2993 = vdwg.mxu0
    %2994 = vmatpush.bf16.msra.mxu0 %v2219
    %2995 = vmatpush.bf16.msra.mxu0 %v2211
    %2996 = vmatpush.bf16.msra.mxu0 %v2203
    %2997 = vmatpush.bf16.msra.mxu0 %v2195
    %2998 = vmatpush.bf16.msra.mxu0 %v2187
    %2999 = vmatpush.bf16.msra.mxu0 %v2179
    %3000 = vmatpush.bf16.msra.mxu0 %v2171
    %3001 = vmatpush.bf16.msra.mxu0 %v2163
    %3002 = vmatmul.bf16.gmra.mxu0 %v783
    %v3003 = vpop.f32.mrf.mxu0
    %v3004 = vadd.f32 %v2990, %v3003
    %v3005 = vpop.f32.mrf.mxu0
    %v3006 = vadd.f32 %v2992, %v3005
    %3007 = vdwg.mxu0
    %3008 = vmatpush.bf16.msra.mxu0 %v2283
    %3009 = vmatpush.bf16.msra.mxu0 %v2275
    %3010 = vmatpush.bf16.msra.mxu0 %v2267
    %3011 = vmatpush.bf16.msra.mxu0 %v2259
    %3012 = vmatpush.bf16.msra.mxu0 %v2251
    %3013 = vmatpush.bf16.msra.mxu0 %v2243
    %3014 = vmatpush.bf16.msra.mxu0 %v2235
    %3015 = vmatpush.bf16.msra.mxu0 %v2227
    %3016 = vmatmul.bf16.gmra.mxu0 %v784
    %v3017 = vpop.f32.mrf.mxu0
    %v3018 = vadd.f32 %v3004, %v3017
    %v3019 = vpop.f32.mrf.mxu0
    %v3020 = vadd.f32 %v3006, %v3019
    %3021 = vdwg.mxu0
    %3022 = vmatpush.bf16.msra.mxu0 %v2347
    %3023 = vmatpush.bf16.msra.mxu0 %v2339
    %3024 = vmatpush.bf16.msra.mxu0 %v2331
    %3025 = vmatpush.bf16.msra.mxu0 %v2323
    %3026 = vmatpush.bf16.msra.mxu0 %v2315
    %3027 = vmatpush.bf16.msra.mxu0 %v2307
    %3028 = vmatpush.bf16.msra.mxu0 %v2299
    %3029 = vmatpush.bf16.msra.mxu0 %v2291
    %3030 = vmatmul.bf16.gmra.mxu0 %v785
    %v3031 = vpop.f32.mrf.mxu0
    %v3032 = vadd.f32 %v3018, %v3031
    %v3033 = vpop.f32.mrf.mxu0
    %v3034 = vadd.f32 %v3020, %v3033
    %3035 = vdwg.mxu0
    %3036 = vmatpush.bf16.msra.mxu0 0
    %3037 = vmatpush.bf16.msra.mxu0 0
    %3038 = vmatpush.bf16.msra.mxu0 0
    %3039 = vmatpush.bf16.msra.mxu0 0
    %3040 = vmatpush.bf16.msra.mxu0 0
    %3041 = vmatpush.bf16.msra.mxu0 0
    %3042 = vmatpush.bf16.msra.mxu0 0
    %3043 = vmatpush.bf16.msra.mxu0 %v2355
    %3044 = vmatmul.bf16.gmra.mxu0 %v2754
    %v3045 = vpop.f32.mrf.mxu0
    %v3046 = vadd.f32 %v3032, %v3045
    %v3047 = vpop.f32.mrf.mxu0
    %v3048 = vadd.f32 %v3034, %v3047
    %3049 = vdwg.mxu0
    %3050 = vmatpush.bf16.msra.mxu0 %v2028
    %3051 = vmatpush.bf16.msra.mxu0 %v2020
    %3052 = vmatpush.bf16.msra.mxu0 %v2012
    %3053 = vmatpush.bf16.msra.mxu0 %v2004
    %3054 = vmatpush.bf16.msra.mxu0 %v1996
    %3055 = vmatpush.bf16.msra.mxu0 %v1988
    %3056 = vmatpush.bf16.msra.mxu0 %v1980
    %3057 = vmatpush.bf16.msra.mxu0 %v1972
    %3058 = vmatmul.bf16.gmra.mxu0 %v780
    %v3059 = vpop.f32.mrf.mxu0
    %v3060 = vadd.f32 %v698, %v3059
    %v3061 = vpop.f32.mrf.mxu0
    %v3062 = vadd.f32 %v700, %v3061
    %3063 = vdwg.mxu0
    %3064 = vmatpush.bf16.msra.mxu0 %v2092
    %3065 = vmatpush.bf16.msra.mxu0 %v2084
    %3066 = vmatpush.bf16.msra.mxu0 %v2076
    %3067 = vmatpush.bf16.msra.mxu0 %v2068
    %3068 = vmatpush.bf16.msra.mxu0 %v2060
    %3069 = vmatpush.bf16.msra.mxu0 %v2052
    %3070 = vmatpush.bf16.msra.mxu0 %v2044
    %3071 = vmatpush.bf16.msra.mxu0 %v2036
    %3072 = vmatmul.bf16.gmra.mxu0 %v781
    %v3073 = vpop.f32.mrf.mxu0
    %v3074 = vadd.f32 %v3060, %v3073
    %v3075 = vpop.f32.mrf.mxu0
    %v3076 = vadd.f32 %v3062, %v3075
    %3077 = vdwg.mxu0
    %3078 = vmatpush.bf16.msra.mxu0 %v2156
    %3079 = vmatpush.bf16.msra.mxu0 %v2148
    %3080 = vmatpush.bf16.msra.mxu0 %v2140
    %3081 = vmatpush.bf16.msra.mxu0 %v2132
    %3082 = vmatpush.bf16.msra.mxu0 %v2124
    %3083 = vmatpush.bf16.msra.mxu0 %v2116
    %3084 = vmatpush.bf16.msra.mxu0 %v2108
    %3085 = vmatpush.bf16.msra.mxu0 %v2100
    %3086 = vmatmul.bf16.gmra.mxu0 %v782
    %v3087 = vpop.f32.mrf.mxu0
    %v3088 = vadd.f32 %v3074, %v3087
    %v3089 = vpop.f32.mrf.mxu0
    %v3090 = vadd.f32 %v3076, %v3089
    %3091 = vdwg.mxu0
    %3092 = vmatpush.bf16.msra.mxu0 %v2220
    %3093 = vmatpush.bf16.msra.mxu0 %v2212
    %3094 = vmatpush.bf16.msra.mxu0 %v2204
    %3095 = vmatpush.bf16.msra.mxu0 %v2196
    %3096 = vmatpush.bf16.msra.mxu0 %v2188
    %3097 = vmatpush.bf16.msra.mxu0 %v2180
    %3098 = vmatpush.bf16.msra.mxu0 %v2172
    %3099 = vmatpush.bf16.msra.mxu0 %v2164
    %3100 = vmatmul.bf16.gmra.mxu0 %v783
    %v3101 = vpop.f32.mrf.mxu0
    %v3102 = vadd.f32 %v3088, %v3101
    %v3103 = vpop.f32.mrf.mxu0
    %v3104 = vadd.f32 %v3090, %v3103
    %3105 = vdwg.mxu0
    %3106 = vmatpush.bf16.msra.mxu0 %v2284
    %3107 = vmatpush.bf16.msra.mxu0 %v2276
    %3108 = vmatpush.bf16.msra.mxu0 %v2268
    %3109 = vmatpush.bf16.msra.mxu0 %v2260
    %3110 = vmatpush.bf16.msra.mxu0 %v2252
    %3111 = vmatpush.bf16.msra.mxu0 %v2244
    %3112 = vmatpush.bf16.msra.mxu0 %v2236
    %3113 = vmatpush.bf16.msra.mxu0 %v2228
    %3114 = vmatmul.bf16.gmra.mxu0 %v784
    %v3115 = vpop.f32.mrf.mxu0
    %v3116 = vadd.f32 %v3102, %v3115
    %v3117 = vpop.f32.mrf.mxu0
    %v3118 = vadd.f32 %v3104, %v3117
    %3119 = vdwg.mxu0
    %3120 = vmatpush.bf16.msra.mxu0 %v2348
    %3121 = vmatpush.bf16.msra.mxu0 %v2340
    %3122 = vmatpush.bf16.msra.mxu0 %v2332
    %3123 = vmatpush.bf16.msra.mxu0 %v2324
    %3124 = vmatpush.bf16.msra.mxu0 %v2316
    %3125 = vmatpush.bf16.msra.mxu0 %v2308
    %3126 = vmatpush.bf16.msra.mxu0 %v2300
    %3127 = vmatpush.bf16.msra.mxu0 %v2292
    %3128 = vmatmul.bf16.gmra.mxu0 %v785
    %v3129 = vpop.f32.mrf.mxu0
    %v3130 = vadd.f32 %v3116, %v3129
    %v3131 = vpop.f32.mrf.mxu0
    %v3132 = vadd.f32 %v3118, %v3131
    %3133 = vdwg.mxu0
    %3134 = vmatpush.bf16.msra.mxu0 0
    %3135 = vmatpush.bf16.msra.mxu0 0
    %3136 = vmatpush.bf16.msra.mxu0 0
    %3137 = vmatpush.bf16.msra.mxu0 0
    %3138 = vmatpush.bf16.msra.mxu0 0
    %3139 = vmatpush.bf16.msra.mxu0 0
    %3140 = vmatpush.bf16.msra.mxu0 0
    %3141 = vmatpush.bf16.msra.mxu0 %v2356
    %3142 = vmatmul.bf16.gmra.mxu0 %v2754
    %v3143 = vpop.f32.mrf.mxu0
    %v3144 = vadd.f32 %v3130, %v3143
    %v3145 = vpop.f32.mrf.mxu0
    %v3146 = vadd.f32 %v3132, %v3145
    %3147 = vdwg.mxu0
    %3148 = vmatpush.bf16.msra.mxu0 %v2029
    %3149 = vmatpush.bf16.msra.mxu0 %v2021
    %3150 = vmatpush.bf16.msra.mxu0 %v2013
    %3151 = vmatpush.bf16.msra.mxu0 %v2005
    %3152 = vmatpush.bf16.msra.mxu0 %v1997
    %3153 = vmatpush.bf16.msra.mxu0 %v1989
    %3154 = vmatpush.bf16.msra.mxu0 %v1981
    %3155 = vmatpush.bf16.msra.mxu0 %v1973
    %3156 = vmatmul.bf16.gmra.mxu0 %v780
    %v3157 = vpop.f32.mrf.mxu0
    %v3158 = vadd.f32 %v712, %v3157
    %v3159 = vpop.f32.mrf.mxu0
    %v3160 = vadd.f32 %v714, %v3159
    %3161 = vdwg.mxu0
    %3162 = vmatpush.bf16.msra.mxu0 %v2093
    %3163 = vmatpush.bf16.msra.mxu0 %v2085
    %3164 = vmatpush.bf16.msra.mxu0 %v2077
    %3165 = vmatpush.bf16.msra.mxu0 %v2069
    %3166 = vmatpush.bf16.msra.mxu0 %v2061
    %3167 = vmatpush.bf16.msra.mxu0 %v2053
    %3168 = vmatpush.bf16.msra.mxu0 %v2045
    %3169 = vmatpush.bf16.msra.mxu0 %v2037
    %3170 = vmatmul.bf16.gmra.mxu0 %v781
    %v3171 = vpop.f32.mrf.mxu0
    %v3172 = vadd.f32 %v3158, %v3171
    %v3173 = vpop.f32.mrf.mxu0
    %v3174 = vadd.f32 %v3160, %v3173
    %3175 = vdwg.mxu0
    %3176 = vmatpush.bf16.msra.mxu0 %v2157
    %3177 = vmatpush.bf16.msra.mxu0 %v2149
    %3178 = vmatpush.bf16.msra.mxu0 %v2141
    %3179 = vmatpush.bf16.msra.mxu0 %v2133
    %3180 = vmatpush.bf16.msra.mxu0 %v2125
    %3181 = vmatpush.bf16.msra.mxu0 %v2117
    %3182 = vmatpush.bf16.msra.mxu0 %v2109
    %3183 = vmatpush.bf16.msra.mxu0 %v2101
    %3184 = vmatmul.bf16.gmra.mxu0 %v782
    %v3185 = vpop.f32.mrf.mxu0
    %v3186 = vadd.f32 %v3172, %v3185
    %v3187 = vpop.f32.mrf.mxu0
    %v3188 = vadd.f32 %v3174, %v3187
    %3189 = vdwg.mxu0
    %3190 = vmatpush.bf16.msra.mxu0 %v2221
    %3191 = vmatpush.bf16.msra.mxu0 %v2213
    %3192 = vmatpush.bf16.msra.mxu0 %v2205
    %3193 = vmatpush.bf16.msra.mxu0 %v2197
    %3194 = vmatpush.bf16.msra.mxu0 %v2189
    %3195 = vmatpush.bf16.msra.mxu0 %v2181
    %3196 = vmatpush.bf16.msra.mxu0 %v2173
    %3197 = vmatpush.bf16.msra.mxu0 %v2165
    %3198 = vmatmul.bf16.gmra.mxu0 %v783
    %v3199 = vpop.f32.mrf.mxu0
    %v3200 = vadd.f32 %v3186, %v3199
    %v3201 = vpop.f32.mrf.mxu0
    %v3202 = vadd.f32 %v3188, %v3201
    %3203 = vdwg.mxu0
    %3204 = vmatpush.bf16.msra.mxu0 %v2285
    %3205 = vmatpush.bf16.msra.mxu0 %v2277
    %3206 = vmatpush.bf16.msra.mxu0 %v2269
    %3207 = vmatpush.bf16.msra.mxu0 %v2261
    %3208 = vmatpush.bf16.msra.mxu0 %v2253
    %3209 = vmatpush.bf16.msra.mxu0 %v2245
    %3210 = vmatpush.bf16.msra.mxu0 %v2237
    %3211 = vmatpush.bf16.msra.mxu0 %v2229
    %3212 = vmatmul.bf16.gmra.mxu0 %v784
    %v3213 = vpop.f32.mrf.mxu0
    %v3214 = vadd.f32 %v3200, %v3213
    %v3215 = vpop.f32.mrf.mxu0
    %v3216 = vadd.f32 %v3202, %v3215
    %3217 = vdwg.mxu0
    %3218 = vmatpush.bf16.msra.mxu0 %v2349
    %3219 = vmatpush.bf16.msra.mxu0 %v2341
    %3220 = vmatpush.bf16.msra.mxu0 %v2333
    %3221 = vmatpush.bf16.msra.mxu0 %v2325
    %3222 = vmatpush.bf16.msra.mxu0 %v2317
    %3223 = vmatpush.bf16.msra.mxu0 %v2309
    %3224 = vmatpush.bf16.msra.mxu0 %v2301
    %3225 = vmatpush.bf16.msra.mxu0 %v2293
    %3226 = vmatmul.bf16.gmra.mxu0 %v785
    %v3227 = vpop.f32.mrf.mxu0
    %v3228 = vadd.f32 %v3214, %v3227
    %v3229 = vpop.f32.mrf.mxu0
    %v3230 = vadd.f32 %v3216, %v3229
    %3231 = vdwg.mxu0
    %3232 = vmatpush.bf16.msra.mxu0 0
    %3233 = vmatpush.bf16.msra.mxu0 0
    %3234 = vmatpush.bf16.msra.mxu0 0
    %3235 = vmatpush.bf16.msra.mxu0 0
    %3236 = vmatpush.bf16.msra.mxu0 0
    %3237 = vmatpush.bf16.msra.mxu0 0
    %3238 = vmatpush.bf16.msra.mxu0 0
    %3239 = vmatpush.bf16.msra.mxu0 %v2357
    %3240 = vmatmul.bf16.gmra.mxu0 %v2754
    %v3241 = vpop.f32.mrf.mxu0
    %v3242 = vadd.f32 %v3228, %v3241
    %v3243 = vpop.f32.mrf.mxu0
    %v3244 = vadd.f32 %v3230, %v3243
    %3245 = vdwg.mxu0
    %3246 = vmatpush.bf16.msra.mxu0 %v2030
    %3247 = vmatpush.bf16.msra.mxu0 %v2022
    %3248 = vmatpush.bf16.msra.mxu0 %v2014
    %3249 = vmatpush.bf16.msra.mxu0 %v2006
    %3250 = vmatpush.bf16.msra.mxu0 %v1998
    %3251 = vmatpush.bf16.msra.mxu0 %v1990
    %3252 = vmatpush.bf16.msra.mxu0 %v1982
    %3253 = vmatpush.bf16.msra.mxu0 %v1974
    %3254 = vmatmul.bf16.gmra.mxu0 %v780
    %v3255 = vpop.f32.mrf.mxu0
    %v3256 = vadd.f32 %v726, %v3255
    %v3257 = vpop.f32.mrf.mxu0
    %v3258 = vadd.f32 %v728, %v3257
    %3259 = vdwg.mxu0
    %3260 = vmatpush.bf16.msra.mxu0 %v2094
    %3261 = vmatpush.bf16.msra.mxu0 %v2086
    %3262 = vmatpush.bf16.msra.mxu0 %v2078
    %3263 = vmatpush.bf16.msra.mxu0 %v2070
    %3264 = vmatpush.bf16.msra.mxu0 %v2062
    %3265 = vmatpush.bf16.msra.mxu0 %v2054
    %3266 = vmatpush.bf16.msra.mxu0 %v2046
    %3267 = vmatpush.bf16.msra.mxu0 %v2038
    %3268 = vmatmul.bf16.gmra.mxu0 %v781
    %v3269 = vpop.f32.mrf.mxu0
    %v3270 = vadd.f32 %v3256, %v3269
    %v3271 = vpop.f32.mrf.mxu0
    %v3272 = vadd.f32 %v3258, %v3271
    %3273 = vdwg.mxu0
    %3274 = vmatpush.bf16.msra.mxu0 %v2158
    %3275 = vmatpush.bf16.msra.mxu0 %v2150
    %3276 = vmatpush.bf16.msra.mxu0 %v2142
    %3277 = vmatpush.bf16.msra.mxu0 %v2134
    %3278 = vmatpush.bf16.msra.mxu0 %v2126
    %3279 = vmatpush.bf16.msra.mxu0 %v2118
    %3280 = vmatpush.bf16.msra.mxu0 %v2110
    %3281 = vmatpush.bf16.msra.mxu0 %v2102
    %3282 = vmatmul.bf16.gmra.mxu0 %v782
    %v3283 = vpop.f32.mrf.mxu0
    %v3284 = vadd.f32 %v3270, %v3283
    %v3285 = vpop.f32.mrf.mxu0
    %v3286 = vadd.f32 %v3272, %v3285
    %3287 = vdwg.mxu0
    %3288 = vmatpush.bf16.msra.mxu0 %v2222
    %3289 = vmatpush.bf16.msra.mxu0 %v2214
    %3290 = vmatpush.bf16.msra.mxu0 %v2206
    %3291 = vmatpush.bf16.msra.mxu0 %v2198
    %3292 = vmatpush.bf16.msra.mxu0 %v2190
    %3293 = vmatpush.bf16.msra.mxu0 %v2182
    %3294 = vmatpush.bf16.msra.mxu0 %v2174
    %3295 = vmatpush.bf16.msra.mxu0 %v2166
    %3296 = vmatmul.bf16.gmra.mxu0 %v783
    %v3297 = vpop.f32.mrf.mxu0
    %v3298 = vadd.f32 %v3284, %v3297
    %v3299 = vpop.f32.mrf.mxu0
    %v3300 = vadd.f32 %v3286, %v3299
    %3301 = vdwg.mxu0
    %3302 = vmatpush.bf16.msra.mxu0 %v2286
    %3303 = vmatpush.bf16.msra.mxu0 %v2278
    %3304 = vmatpush.bf16.msra.mxu0 %v2270
    %3305 = vmatpush.bf16.msra.mxu0 %v2262
    %3306 = vmatpush.bf16.msra.mxu0 %v2254
    %3307 = vmatpush.bf16.msra.mxu0 %v2246
    %3308 = vmatpush.bf16.msra.mxu0 %v2238
    %3309 = vmatpush.bf16.msra.mxu0 %v2230
    %3310 = vmatmul.bf16.gmra.mxu0 %v784
    %v3311 = vpop.f32.mrf.mxu0
    %v3312 = vadd.f32 %v3298, %v3311
    %v3313 = vpop.f32.mrf.mxu0
    %v3314 = vadd.f32 %v3300, %v3313
    %3315 = vdwg.mxu0
    %3316 = vmatpush.bf16.msra.mxu0 %v2350
    %3317 = vmatpush.bf16.msra.mxu0 %v2342
    %3318 = vmatpush.bf16.msra.mxu0 %v2334
    %3319 = vmatpush.bf16.msra.mxu0 %v2326
    %3320 = vmatpush.bf16.msra.mxu0 %v2318
    %3321 = vmatpush.bf16.msra.mxu0 %v2310
    %3322 = vmatpush.bf16.msra.mxu0 %v2302
    %3323 = vmatpush.bf16.msra.mxu0 %v2294
    %3324 = vmatmul.bf16.gmra.mxu0 %v785
    %v3325 = vpop.f32.mrf.mxu0
    %v3326 = vadd.f32 %v3312, %v3325
    %v3327 = vpop.f32.mrf.mxu0
    %v3328 = vadd.f32 %v3314, %v3327
    %3329 = vdwg.mxu0
    %3330 = vmatpush.bf16.msra.mxu0 0
    %3331 = vmatpush.bf16.msra.mxu0 0
    %3332 = vmatpush.bf16.msra.mxu0 0
    %3333 = vmatpush.bf16.msra.mxu0 0
    %3334 = vmatpush.bf16.msra.mxu0 0
    %3335 = vmatpush.bf16.msra.mxu0 0
    %3336 = vmatpush.bf16.msra.mxu0 0
    %3337 = vmatpush.bf16.msra.mxu0 %v2358
    %3338 = vmatmul.bf16.gmra.mxu0 %v2754
    %v3339 = vpop.f32.mrf.mxu0
    %v3340 = vadd.f32 %v3326, %v3339
    %v3341 = vpop.f32.mrf.mxu0
    %v3342 = vadd.f32 %v3328, %v3341
    %3343 = vdwg.mxu0
    %3344 = vmatpush.bf16.msra.mxu0 %v2031
    %3345 = vmatpush.bf16.msra.mxu0 %v2023
    %3346 = vmatpush.bf16.msra.mxu0 %v2015
    %3347 = vmatpush.bf16.msra.mxu0 %v2007
    %3348 = vmatpush.bf16.msra.mxu0 %v1999
    %3349 = vmatpush.bf16.msra.mxu0 %v1991
    %3350 = vmatpush.bf16.msra.mxu0 %v1983
    %3351 = vmatpush.bf16.msra.mxu0 %v1975
    %3352 = vmatmul.bf16.gmra.mxu0 %v780
    %v3353 = vpop.f32.mrf.mxu0
    %v3354 = vadd.f32 %v740, %v3353
    %v3355 = vpop.f32.mrf.mxu0
    %v3356 = vadd.f32 %v742, %v3355
    %3357 = vdwg.mxu0
    %3358 = vmatpush.bf16.msra.mxu0 %v2095
    %3359 = vmatpush.bf16.msra.mxu0 %v2087
    %3360 = vmatpush.bf16.msra.mxu0 %v2079
    %3361 = vmatpush.bf16.msra.mxu0 %v2071
    %3362 = vmatpush.bf16.msra.mxu0 %v2063
    %3363 = vmatpush.bf16.msra.mxu0 %v2055
    %3364 = vmatpush.bf16.msra.mxu0 %v2047
    %3365 = vmatpush.bf16.msra.mxu0 %v2039
    %3366 = vmatmul.bf16.gmra.mxu0 %v781
    %v3367 = vpop.f32.mrf.mxu0
    %v3368 = vadd.f32 %v3354, %v3367
    %v3369 = vpop.f32.mrf.mxu0
    %v3370 = vadd.f32 %v3356, %v3369
    %3371 = vdwg.mxu0
    %3372 = vmatpush.bf16.msra.mxu0 %v2159
    %3373 = vmatpush.bf16.msra.mxu0 %v2151
    %3374 = vmatpush.bf16.msra.mxu0 %v2143
    %3375 = vmatpush.bf16.msra.mxu0 %v2135
    %3376 = vmatpush.bf16.msra.mxu0 %v2127
    %3377 = vmatpush.bf16.msra.mxu0 %v2119
    %3378 = vmatpush.bf16.msra.mxu0 %v2111
    %3379 = vmatpush.bf16.msra.mxu0 %v2103
    %3380 = vmatmul.bf16.gmra.mxu0 %v782
    %v3381 = vpop.f32.mrf.mxu0
    %v3382 = vadd.f32 %v3368, %v3381
    %v3383 = vpop.f32.mrf.mxu0
    %v3384 = vadd.f32 %v3370, %v3383
    %3385 = vdwg.mxu0
    %3386 = vmatpush.bf16.msra.mxu0 %v2223
    %3387 = vmatpush.bf16.msra.mxu0 %v2215
    %3388 = vmatpush.bf16.msra.mxu0 %v2207
    %3389 = vmatpush.bf16.msra.mxu0 %v2199
    %3390 = vmatpush.bf16.msra.mxu0 %v2191
    %3391 = vmatpush.bf16.msra.mxu0 %v2183
    %3392 = vmatpush.bf16.msra.mxu0 %v2175
    %3393 = vmatpush.bf16.msra.mxu0 %v2167
    %3394 = vmatmul.bf16.gmra.mxu0 %v783
    %v3395 = vpop.f32.mrf.mxu0
    %v3396 = vadd.f32 %v3382, %v3395
    %v3397 = vpop.f32.mrf.mxu0
    %v3398 = vadd.f32 %v3384, %v3397
    %3399 = vdwg.mxu0
    %3400 = vmatpush.bf16.msra.mxu0 %v2287
    %3401 = vmatpush.bf16.msra.mxu0 %v2279
    %3402 = vmatpush.bf16.msra.mxu0 %v2271
    %3403 = vmatpush.bf16.msra.mxu0 %v2263
    %3404 = vmatpush.bf16.msra.mxu0 %v2255
    %3405 = vmatpush.bf16.msra.mxu0 %v2247
    %3406 = vmatpush.bf16.msra.mxu0 %v2239
    %3407 = vmatpush.bf16.msra.mxu0 %v2231
    %3408 = vmatmul.bf16.gmra.mxu0 %v784
    %v3409 = vpop.f32.mrf.mxu0
    %v3410 = vadd.f32 %v3396, %v3409
    %v3411 = vpop.f32.mrf.mxu0
    %v3412 = vadd.f32 %v3398, %v3411
    %3413 = vdwg.mxu0
    %3414 = vmatpush.bf16.msra.mxu0 %v2351
    %3415 = vmatpush.bf16.msra.mxu0 %v2343
    %3416 = vmatpush.bf16.msra.mxu0 %v2335
    %3417 = vmatpush.bf16.msra.mxu0 %v2327
    %3418 = vmatpush.bf16.msra.mxu0 %v2319
    %3419 = vmatpush.bf16.msra.mxu0 %v2311
    %3420 = vmatpush.bf16.msra.mxu0 %v2303
    %3421 = vmatpush.bf16.msra.mxu0 %v2295
    %3422 = vmatmul.bf16.gmra.mxu0 %v785
    %v3423 = vpop.f32.mrf.mxu0
    %v3424 = vadd.f32 %v3410, %v3423
    %v3425 = vpop.f32.mrf.mxu0
    %v3426 = vadd.f32 %v3412, %v3425
    %3427 = vdwg.mxu0
    %3428 = vmatpush.bf16.msra.mxu0 0
    %3429 = vmatpush.bf16.msra.mxu0 0
    %3430 = vmatpush.bf16.msra.mxu0 0
    %3431 = vmatpush.bf16.msra.mxu0 0
    %3432 = vmatpush.bf16.msra.mxu0 0
    %3433 = vmatpush.bf16.msra.mxu0 0
    %3434 = vmatpush.bf16.msra.mxu0 0
    %3435 = vmatpush.bf16.msra.mxu0 %v2359
    %3436 = vmatmul.bf16.gmra.mxu0 %v2754
    %v3437 = vpop.f32.mrf.mxu0
    %v3438 = vadd.f32 %v3424, %v3437
    %v3439 = vpop.f32.mrf.mxu0
    %v3440 = vadd.f32 %v3426, %v3439
    %3441 = vdwg.mxu0
    %3442 = vmatpush.bf16.msra.mxu0 %v2032
    %3443 = vmatpush.bf16.msra.mxu0 %v2024
    %3444 = vmatpush.bf16.msra.mxu0 %v2016
    %3445 = vmatpush.bf16.msra.mxu0 %v2008
    %3446 = vmatpush.bf16.msra.mxu0 %v2000
    %3447 = vmatpush.bf16.msra.mxu0 %v1992
    %3448 = vmatpush.bf16.msra.mxu0 %v1984
    %3449 = vmatpush.bf16.msra.mxu0 %v1976
    %3450 = vmatmul.bf16.gmra.mxu0 %v780
    %v3451 = vpop.f32.mrf.mxu0
    %v3452 = vadd.f32 %v754, %v3451
    %v3453 = vpop.f32.mrf.mxu0
    %v3454 = vadd.f32 %v756, %v3453
    %3455 = vdwg.mxu0
    %3456 = vmatpush.bf16.msra.mxu0 %v2096
    %3457 = vmatpush.bf16.msra.mxu0 %v2088
    %3458 = vmatpush.bf16.msra.mxu0 %v2080
    %3459 = vmatpush.bf16.msra.mxu0 %v2072
    %3460 = vmatpush.bf16.msra.mxu0 %v2064
    %3461 = vmatpush.bf16.msra.mxu0 %v2056
    %3462 = vmatpush.bf16.msra.mxu0 %v2048
    %3463 = vmatpush.bf16.msra.mxu0 %v2040
    %3464 = vmatmul.bf16.gmra.mxu0 %v781
    %v3465 = vpop.f32.mrf.mxu0
    %v3466 = vadd.f32 %v3452, %v3465
    %v3467 = vpop.f32.mrf.mxu0
    %v3468 = vadd.f32 %v3454, %v3467
    %3469 = vdwg.mxu0
    %3470 = vmatpush.bf16.msra.mxu0 %v2160
    %3471 = vmatpush.bf16.msra.mxu0 %v2152
    %3472 = vmatpush.bf16.msra.mxu0 %v2144
    %3473 = vmatpush.bf16.msra.mxu0 %v2136
    %3474 = vmatpush.bf16.msra.mxu0 %v2128
    %3475 = vmatpush.bf16.msra.mxu0 %v2120
    %3476 = vmatpush.bf16.msra.mxu0 %v2112
    %3477 = vmatpush.bf16.msra.mxu0 %v2104
    %3478 = vmatmul.bf16.gmra.mxu0 %v782
    %v3479 = vpop.f32.mrf.mxu0
    %v3480 = vadd.f32 %v3466, %v3479
    %v3481 = vpop.f32.mrf.mxu0
    %v3482 = vadd.f32 %v3468, %v3481
    %3483 = vdwg.mxu0
    %3484 = vmatpush.bf16.msra.mxu0 %v2224
    %3485 = vmatpush.bf16.msra.mxu0 %v2216
    %3486 = vmatpush.bf16.msra.mxu0 %v2208
    %3487 = vmatpush.bf16.msra.mxu0 %v2200
    %3488 = vmatpush.bf16.msra.mxu0 %v2192
    %3489 = vmatpush.bf16.msra.mxu0 %v2184
    %3490 = vmatpush.bf16.msra.mxu0 %v2176
    %3491 = vmatpush.bf16.msra.mxu0 %v2168
    %3492 = vmatmul.bf16.gmra.mxu0 %v783
    %v3493 = vpop.f32.mrf.mxu0
    %v3494 = vadd.f32 %v3480, %v3493
    %v3495 = vpop.f32.mrf.mxu0
    %v3496 = vadd.f32 %v3482, %v3495
    %3497 = vdwg.mxu0
    %3498 = vmatpush.bf16.msra.mxu0 %v2288
    %3499 = vmatpush.bf16.msra.mxu0 %v2280
    %3500 = vmatpush.bf16.msra.mxu0 %v2272
    %3501 = vmatpush.bf16.msra.mxu0 %v2264
    %3502 = vmatpush.bf16.msra.mxu0 %v2256
    %3503 = vmatpush.bf16.msra.mxu0 %v2248
    %3504 = vmatpush.bf16.msra.mxu0 %v2240
    %3505 = vmatpush.bf16.msra.mxu0 %v2232
    %3506 = vmatmul.bf16.gmra.mxu0 %v784
    %v3507 = vpop.f32.mrf.mxu0
    %v3508 = vadd.f32 %v3494, %v3507
    %v3509 = vpop.f32.mrf.mxu0
    %v3510 = vadd.f32 %v3496, %v3509
    %3511 = vdwg.mxu0
    %3512 = vmatpush.bf16.msra.mxu0 %v2352
    %3513 = vmatpush.bf16.msra.mxu0 %v2344
    %3514 = vmatpush.bf16.msra.mxu0 %v2336
    %3515 = vmatpush.bf16.msra.mxu0 %v2328
    %3516 = vmatpush.bf16.msra.mxu0 %v2320
    %3517 = vmatpush.bf16.msra.mxu0 %v2312
    %3518 = vmatpush.bf16.msra.mxu0 %v2304
    %3519 = vmatpush.bf16.msra.mxu0 %v2296
    %3520 = vmatmul.bf16.gmra.mxu0 %v785
    %v3521 = vpop.f32.mrf.mxu0
    %v3522 = vadd.f32 %v3508, %v3521
    %v3523 = vpop.f32.mrf.mxu0
    %v3524 = vadd.f32 %v3510, %v3523
    %3525 = vdwg.mxu0
    %3526 = vmatpush.bf16.msra.mxu0 0
    %3527 = vmatpush.bf16.msra.mxu0 0
    %3528 = vmatpush.bf16.msra.mxu0 0
    %3529 = vmatpush.bf16.msra.mxu0 0
    %3530 = vmatpush.bf16.msra.mxu0 0
    %3531 = vmatpush.bf16.msra.mxu0 0
    %3532 = vmatpush.bf16.msra.mxu0 0
    %3533 = vmatpush.bf16.msra.mxu0 %v2360
    %3534 = vmatmul.bf16.gmra.mxu0 %v2754
    %v3535 = vpop.f32.mrf.mxu0
    %v3536 = vadd.f32 %v3522, %v3535
    %v3537 = vpop.f32.mrf.mxu0
    %v3538 = vadd.f32 %v3524, %v3537
    %3539 = vdwg.mxu0
    %v3540 = vld [vmem:[#allocation9] sm:$0xff]
    %v3542 = vperm.slane %v3540, 0
    %v3543 = vperm.slane %v3540, 1
    %v3544 = vperm.slane %v3540, 2
    %v3545 = vperm.slane %v3540, 3
    %v3546 = vperm.slane %v3540, 4
    %v3547 = vperm.slane %v3540, 5
    %v3548 = vperm.slane %v3540, 6
    %v3549 = vperm.slane %v3540, 7
    %v3558 = vadd.f32 %v2850, %v3542
    %v3559 = vadd.f32 %v2948, %v3543
    %v3560 = vadd.f32 %v3046, %v3544
    %v3561 = vadd.f32 %v3144, %v3545
    %v3562 = vadd.f32 %v3242, %v3546
    %v3563 = vadd.f32 %v3340, %v3547
    %v3564 = vadd.f32 %v3438, %v3548
    %v3565 = vadd.f32 %v3536, %v3549
    %v3566 = vadd.f32 %v2852, %v3542
    %v3567 = vadd.f32 %v2950, %v3543
    %v3568 = vadd.f32 %v3048, %v3544
    %v3569 = vadd.f32 %v3146, %v3545
    %v3570 = vadd.f32 %v3244, %v3546
    %v3571 = vadd.f32 %v3342, %v3547
    %v3572 = vadd.f32 %v3440, %v3548
    %v3573 = vadd.f32 %v3538, %v3549
    %vm3574 = vcmp.gt.f32.partialorder %v3558, 0.0
    %vm3575 = vcmp.gt.f32.partialorder %v3559, 0.0
    %vm3576 = vcmp.gt.f32.partialorder %v3560, 0.0
    %vm3577 = vcmp.gt.f32.partialorder %v3561, 0.0
    %vm3578 = vcmp.gt.f32.partialorder %v3562, 0.0
    %vm3579 = vcmp.gt.f32.partialorder %v3563, 0.0
    %vm3580 = vcmp.gt.f32.partialorder %v3564, 0.0
    %vm3581 = vcmp.gt.f32.partialorder %v3565, 0.0
    %vm3582 = vcmp.gt.f32.partialorder %v3566, 0.0
    %vm3583 = vcmp.gt.f32.partialorder %v3567, 0.0
    %vm3584 = vcmp.gt.f32.partialorder %v3568, 0.0
    %vm3585 = vcmp.gt.f32.partialorder %v3569, 0.0
    %vm3586 = vcmp.gt.f32.partialorder %v3570, 0.0
    %vm3587 = vcmp.gt.f32.partialorder %v3571, 0.0
    %vm3588 = vcmp.gt.f32.partialorder %v3572, 0.0
    %vm3589 = vcmp.gt.f32.partialorder %v3573, 0.0
    %v3590 = vmul.f32 %v3558, 0.2
    %v3591 = vmul.f32 %v3559, 0.2
    %v3592 = vmul.f32 %v3560, 0.2
    %v3593 = vmul.f32 %v3561, 0.2
    %v3594 = vmul.f32 %v3562, 0.2
    %v3595 = vmul.f32 %v3563, 0.2
    %v3596 = vmul.f32 %v3564, 0.2
    %v3597 = vmul.f32 %v3565, 0.2
    %v3598 = vmul.f32 %v3566, 0.2
    %v3599 = vmul.f32 %v3567, 0.2
    %v3600 = vmul.f32 %v3568, 0.2
    %v3601 = vmul.f32 %v3569, 0.2
    %v3602 = vmul.f32 %v3570, 0.2
    %v3603 = vmul.f32 %v3571, 0.2
    %v3604 = vmul.f32 %v3572, 0.2
    %v3605 = vmul.f32 %v3573, 0.2
    %v3606 = vsel %vm3574, %v3558, %v3590
    %v3607 = vsel %vm3575, %v3559, %v3591
    %v3608 = vsel %vm3576, %v3560, %v3592
    %v3609 = vsel %vm3577, %v3561, %v3593
    %v3610 = vsel %vm3578, %v3562, %v3594
    %v3611 = vsel %vm3579, %v3563, %v3595
    %v3612 = vsel %vm3580, %v3564, %v3596
    %v3613 = vsel %vm3581, %v3565, %v3597
    %v3614 = vsel %vm3582, %v3566, %v3598
    %v3615 = vsel %vm3583, %v3567, %v3599
    %v3616 = vsel %vm3584, %v3568, %v3600
    %v3617 = vsel %vm3585, %v3569, %v3601
    %v3618 = vsel %vm3586, %v3570, %v3602
    %v3619 = vsel %vm3587, %v3571, %v3603
    %v3620 = vsel %vm3588, %v3572, %v3604
    %v3621 = vsel %vm3589, %v3573, %v3605
    %v3622 = vpack.c.bf16 %v3614, %v3606
    %v3623 = vpack.c.bf16 %v3615, %v3607
    %v3624 = vpack.c.bf16 %v3616, %v3608
    %v3625 = vpack.c.bf16 %v3617, %v3609
    %v3626 = vpack.c.bf16 %v3618, %v3610
    %v3627 = vpack.c.bf16 %v3619, %v3611
    %v3628 = vpack.c.bf16 %v3620, %v3612
    %v3629 = vpack.c.bf16 %v3621, %v3613
    %v3630 = vld [vmem:[#allocation10] sm:$0xff]
    %v3631 = vld [vmem:[#allocation10 + $0x8] sm:$0xff]
    %v3632 = vld [vmem:[#allocation10 + $0x10] sm:$0xff]
    %v3633 = vld [vmem:[#allocation10 + $0x18] sm:$0xff]
    %v3634 = vld [vmem:[#allocation10 + $0x20] sm:$0xff]
    %v3635 = vld [vmem:[#allocation10 + $0x28] sm:$0xff]
    %v3636 = vld [vmem:[#allocation10 + $0x30] sm:$0xff]
    %v3637 = vld [vmem:[#allocation10 + $0x38] sm:$0xff]
    %v3638 = vld [vmem:[#allocation10 + $0x40] sm:$0xff]
    %v3639 = vld [vmem:[#allocation10 + $0x48] sm:$0xff]
    %v3640 = vld [vmem:[#allocation10 + $0x50] sm:$0xff]
    %v3641 = vld [vmem:[#allocation10 + $0x58] sm:$0xff]
    %v3642 = vld [vmem:[#allocation10 + $0x60] sm:$0xff]
    %v3643 = vld [vmem:[#allocation10 + $0x68] sm:$0xff]
    %v3644 = vld [vmem:[#allocation10 + $0x70] sm:$0xff]
    %v3645 = vld [vmem:[#allocation10 + $0x78] sm:$0xff]
    %v3646 = vld [vmem:[#allocation10 + $0x80] sm:$0xff]
    %v3647 = vld [vmem:[#allocation10 + $0x88] sm:$0xff]
    %v3648 = vld [vmem:[#allocation10 + $0x90] sm:$0xff]
    %v3649 = vld [vmem:[#allocation10 + $0x98] sm:$0xff]
    %v3650 = vld [vmem:[#allocation10 + $0xa0] sm:$0xff]
    %v3651 = vld [vmem:[#allocation10 + $0xa8] sm:$0xff]
    %v3652 = vld [vmem:[#allocation10 + $0xb0] sm:$0xff]
    %v3653 = vld [vmem:[#allocation10 + $0xb8] sm:$0xff]
    %v3654 = vld [vmem:[#allocation10 + $0xc0] sm:$0xff]
    %v3655 = vld [vmem:[#allocation10 + $0xc8] sm:$0xff]
    %v3656 = vld [vmem:[#allocation10 + $0xd0] sm:$0xff]
    %v3657 = vld [vmem:[#allocation10 + $0xd8] sm:$0xff]
    %v3658 = vld [vmem:[#allocation10 + $0xe0] sm:$0xff]
    %v3659 = vld [vmem:[#allocation10 + $0xe8] sm:$0xff]
    %v3660 = vld [vmem:[#allocation10 + $0xf0] sm:$0xff]
    %v3661 = vld [vmem:[#allocation10 + $0xf8] sm:$0xff]
    %v3662 = vld [vmem:[#allocation10 + $0x100] sm:$0xff]
    %v3663 = vld [vmem:[#allocation10 + $0x108] sm:$0xff]
    %v3664 = vld [vmem:[#allocation10 + $0x110] sm:$0xff]
    %v3665 = vld [vmem:[#allocation10 + $0x118] sm:$0xff]
    %v3666 = vld [vmem:[#allocation10 + $0x120] sm:$0xff]
    %v3667 = vld [vmem:[#allocation10 + $0x128] sm:$0xff]
    %v3668 = vld [vmem:[#allocation10 + $0x130] sm:$0xff]
    %v3669 = vld [vmem:[#allocation10 + $0x138] sm:$0xff]
    %v3670 = vld [vmem:[#allocation10 + $0x140] sm:$0xff]
    %v3671 = vld [vmem:[#allocation10 + $0x148] sm:$0xff]
    %v3672 = vld [vmem:[#allocation10 + $0x150] sm:$0xff]
    %v3673 = vld [vmem:[#allocation10 + $0x158] sm:$0xff]
    %v3674 = vld [vmem:[#allocation10 + $0x160] sm:$0xff]
    %v3675 = vld [vmem:[#allocation10 + $0x168] sm:$0xff]
    %v3676 = vld [vmem:[#allocation10 + $0x170] sm:$0xff]
    %v3677 = vld [vmem:[#allocation10 + $0x178] sm:$0xff]
    %v3678 = vld [vmem:[#allocation10 + $0x180] sm:$0xff]
    %v3679 = vld [vmem:[#allocation10 + $0x188] sm:$0xff]
    %v3680 = vld [vmem:[#allocation10 + $0x190] sm:$0xff]
    %v3681 = vld [vmem:[#allocation10 + $0x198] sm:$0xff]
    %v3682 = vld [vmem:[#allocation10 + $0x1a0] sm:$0xff]
    %v3683 = vld [vmem:[#allocation10 + $0x1a8] sm:$0xff]
    %v3684 = vld [vmem:[#allocation10 + $0x1b0] sm:$0xff]
    %v3685 = vld [vmem:[#allocation10 + $0x1b8] sm:$0xff]
    %v3686 = vld [vmem:[#allocation10 + $0x1c0] sm:$0xff]
    %v3687 = vld [vmem:[#allocation10 + $0x1c8] sm:$0xff]
    %v3688 = vld [vmem:[#allocation10 + $0x1d0] sm:$0xff]
    %v3689 = vld [vmem:[#allocation10 + $0x1d8] sm:$0xff]
    %v3690 = vld [vmem:[#allocation10 + $0x1e0] sm:$0xff]
    %v3691 = vld [vmem:[#allocation10 + $0x1e8] sm:$0xff]
    %v3692 = vld [vmem:[#allocation10 + $0x1f0] sm:$0xff]
    %v3693 = vld [vmem:[#allocation10 + $0x1f8] sm:$0xff]
    %v3694 = vld [vmem:[#allocation10 + $0x200] sm:$0xff]
    %v3695 = vld [vmem:[#allocation10 + $0x208] sm:$0xff]
    %v3696 = vld [vmem:[#allocation10 + $0x210] sm:$0xff]
    %v3697 = vld [vmem:[#allocation10 + $0x218] sm:$0xff]
    %v3698 = vld [vmem:[#allocation10 + $0x220] sm:$0xff]
    %v3699 = vld [vmem:[#allocation10 + $0x228] sm:$0xff]
    %v3700 = vld [vmem:[#allocation10 + $0x230] sm:$0xff]
    %v3701 = vld [vmem:[#allocation10 + $0x238] sm:$0xff]
    %v3702 = vld [vmem:[#allocation10 + $0x240] sm:$0xff]
    %v3703 = vld [vmem:[#allocation10 + $0x248] sm:$0xff]
    %v3704 = vld [vmem:[#allocation10 + $0x250] sm:$0xff]
    %v3705 = vld [vmem:[#allocation10 + $0x258] sm:$0xff]
    %v3706 = vld [vmem:[#allocation10 + $0x260] sm:$0xff]
    %v3707 = vld [vmem:[#allocation10 + $0x268] sm:$0xff]
    %v3708 = vld [vmem:[#allocation10 + $0x270] sm:$0xff]
    %v3709 = vld [vmem:[#allocation10 + $0x278] sm:$0xff]
    %v3710 = vld [vmem:[#allocation10 + $0x280] sm:$0xff]
    %v3711 = vld [vmem:[#allocation10 + $0x288] sm:$0xff]
    %v3712 = vld [vmem:[#allocation10 + $0x290] sm:$0xff]
    %v3713 = vld [vmem:[#allocation10 + $0x298] sm:$0xff]
    %v3714 = vld [vmem:[#allocation10 + $0x2a0] sm:$0xff]
    %v3715 = vld [vmem:[#allocation10 + $0x2a8] sm:$0xff]
    %v3716 = vld [vmem:[#allocation10 + $0x2b0] sm:$0xff]
    %v3717 = vld [vmem:[#allocation10 + $0x2b8] sm:$0xff]
    %v3718 = vld [vmem:[#allocation10 + $0x2c0] sm:$0xff]
    %v3719 = vld [vmem:[#allocation10 + $0x2c8] sm:$0xff]
    %v3720 = vld [vmem:[#allocation10 + $0x2d0] sm:$0xff]
    %v3721 = vld [vmem:[#allocation10 + $0x2d8] sm:$0xff]
    %v3722 = vld [vmem:[#allocation10 + $0x2e0] sm:$0xff]
    %v3723 = vld [vmem:[#allocation10 + $0x2e8] sm:$0xff]
    %v3724 = vld [vmem:[#allocation10 + $0x2f0] sm:$0xff]
    %v3725 = vld [vmem:[#allocation10 + $0x2f8] sm:$0xff]
    %v3726 = vld [vmem:[#allocation10 + $0x300] sm:$0xff]
    %v3727 = vld [vmem:[#allocation10 + $0x308] sm:$0xff]
    %v3728 = vld [vmem:[#allocation10 + $0x310] sm:$0xff]
    %v3729 = vld [vmem:[#allocation10 + $0x318] sm:$0xff]
    %v3730 = vld [vmem:[#allocation10 + $0x320] sm:$0xff]
    %v3731 = vld [vmem:[#allocation10 + $0x328] sm:$0xff]
    %v3732 = vld [vmem:[#allocation10 + $0x330] sm:$0xff]
    %v3733 = vld [vmem:[#allocation10 + $0x338] sm:$0xff]
    %v3734 = vld [vmem:[#allocation10 + $0x340] sm:$0xff]
    %v3735 = vld [vmem:[#allocation10 + $0x348] sm:$0xff]
    %v3736 = vld [vmem:[#allocation10 + $0x350] sm:$0xff]
    %v3737 = vld [vmem:[#allocation10 + $0x358] sm:$0xff]
    %v3738 = vld [vmem:[#allocation10 + $0x360] sm:$0xff]
    %v3739 = vld [vmem:[#allocation10 + $0x368] sm:$0xff]
    %v3740 = vld [vmem:[#allocation10 + $0x370] sm:$0xff]
    %v3741 = vld [vmem:[#allocation10 + $0x378] sm:$0xff]
    %v3742 = vld [vmem:[#allocation10 + $0x380] sm:$0xff]
    %v3743 = vld [vmem:[#allocation10 + $0x388] sm:$0xff]
    %v3744 = vld [vmem:[#allocation10 + $0x390] sm:$0xff]
    %v3745 = vld [vmem:[#allocation10 + $0x398] sm:$0xff]
    %v3746 = vld [vmem:[#allocation10 + $0x3a0] sm:$0xff]
    %v3747 = vld [vmem:[#allocation10 + $0x3a8] sm:$0xff]
    %v3748 = vld [vmem:[#allocation10 + $0x3b0] sm:$0xff]
    %v3749 = vld [vmem:[#allocation10 + $0x3b8] sm:$0xff]
    %v3750 = vld [vmem:[#allocation10 + $0x3c0] sm:$0xff]
    %v3751 = vld [vmem:[#allocation10 + $0x3c8] sm:$0xff]
    %v3752 = vld [vmem:[#allocation10 + $0x3d0] sm:$0xff]
    %v3753 = vld [vmem:[#allocation10 + $0x3d8] sm:$0xff]
    %v3754 = vld [vmem:[#allocation10 + $0x3e0] sm:$0xff]
    %v3755 = vld [vmem:[#allocation10 + $0x3e8] sm:$0xff]
    %v3756 = vld [vmem:[#allocation10 + $0x3f0] sm:$0xff]
    %v3757 = vld [vmem:[#allocation10 + $0x3f8] sm:$0xff]
    %v3758 = vld [vmem:[#allocation10 + $0x400] sm:$0xff]
    %v3759 = vld [vmem:[#allocation10 + $0x408] sm:$0xff]
    %v3760 = vld [vmem:[#allocation10 + $0x410] sm:$0xff]
    %v3761 = vld [vmem:[#allocation10 + $0x418] sm:$0xff]
    %v3762 = vld [vmem:[#allocation10 + $0x420] sm:$0xff]
    %v3763 = vld [vmem:[#allocation10 + $0x428] sm:$0xff]
    %v3764 = vld [vmem:[#allocation10 + $0x430] sm:$0xff]
    %v3765 = vld [vmem:[#allocation10 + $0x438] sm:$0xff]
    %v3766 = vld [vmem:[#allocation10 + $0x440] sm:$0xff]
    %v3767 = vld [vmem:[#allocation10 + $0x448] sm:$0xff]
    %v3768 = vld [vmem:[#allocation10 + $0x450] sm:$0xff]
    %v3769 = vld [vmem:[#allocation10 + $0x458] sm:$0xff]
    %v3770 = vld [vmem:[#allocation10 + $0x460] sm:$0xff]
    %v3771 = vld [vmem:[#allocation10 + $0x468] sm:$0xff]
    %v3772 = vld [vmem:[#allocation10 + $0x470] sm:$0xff]
    %v3773 = vld [vmem:[#allocation10 + $0x478] sm:$0xff]
    %v3774 = vld [vmem:[#allocation10 + $0x480] sm:$0xff]
    %v3775 = vld [vmem:[#allocation10 + $0x488] sm:$0xff]
    %v3776 = vld [vmem:[#allocation10 + $0x490] sm:$0xff]
    %v3777 = vld [vmem:[#allocation10 + $0x498] sm:$0xff]
    %v3778 = vld [vmem:[#allocation10 + $0x4a0] sm:$0xff]
    %v3779 = vld [vmem:[#allocation10 + $0x4a8] sm:$0xff]
    %v3780 = vld [vmem:[#allocation10 + $0x4b0] sm:$0xff]
    %v3781 = vld [vmem:[#allocation10 + $0x4b8] sm:$0xff]
    %v3782 = vld [vmem:[#allocation10 + $0x4c0] sm:$0xff]
    %v3783 = vld [vmem:[#allocation10 + $0x4c8] sm:$0xff]
    %v3784 = vld [vmem:[#allocation10 + $0x4d0] sm:$0xff]
    %v3785 = vld [vmem:[#allocation10 + $0x4d8] sm:$0xff]
    %v3786 = vld [vmem:[#allocation10 + $0x4e0] sm:$0xff]
    %v3787 = vld [vmem:[#allocation10 + $0x4e8] sm:$0xff]
    %v3788 = vld [vmem:[#allocation10 + $0x4f0] sm:$0xff]
    %v3789 = vld [vmem:[#allocation10 + $0x4f8] sm:$0xff]
    %v3790 = vld [vmem:[#allocation10 + $0x500] sm:$0xff]
    %v3791 = vld [vmem:[#allocation10 + $0x508] sm:$0xff]
    %v3792 = vld [vmem:[#allocation10 + $0x510] sm:$0xff]
    %v3793 = vld [vmem:[#allocation10 + $0x518] sm:$0xff]
    %v3794 = vld [vmem:[#allocation10 + $0x520] sm:$0xff]
    %v3795 = vld [vmem:[#allocation10 + $0x528] sm:$0xff]
    %v3796 = vld [vmem:[#allocation10 + $0x530] sm:$0xff]
    %v3797 = vld [vmem:[#allocation10 + $0x538] sm:$0xff]
    %v3798 = vld [vmem:[#allocation10 + $0x540] sm:$0xff]
    %v3799 = vld [vmem:[#allocation10 + $0x548] sm:$0xff]
    %v3800 = vld [vmem:[#allocation10 + $0x550] sm:$0xff]
    %v3801 = vld [vmem:[#allocation10 + $0x558] sm:$0xff]
    %v3802 = vld [vmem:[#allocation10 + $0x560] sm:$0xff]
    %v3803 = vld [vmem:[#allocation10 + $0x568] sm:$0xff]
    %v3804 = vld [vmem:[#allocation10 + $0x570] sm:$0xff]
    %v3805 = vld [vmem:[#allocation10 + $0x578] sm:$0xff]
    %v3806 = vld [vmem:[#allocation10 + $0x580] sm:$0xff]
    %v3807 = vld [vmem:[#allocation10 + $0x588] sm:$0xff]
    %v3808 = vld [vmem:[#allocation10 + $0x590] sm:$0xff]
    %v3809 = vld [vmem:[#allocation10 + $0x598] sm:$0xff]
    %v3810 = vld [vmem:[#allocation10 + $0x5a0] sm:$0xff]
    %v3811 = vld [vmem:[#allocation10 + $0x5a8] sm:$0xff]
    %v3812 = vld [vmem:[#allocation10 + $0x5b0] sm:$0xff]
    %v3813 = vld [vmem:[#allocation10 + $0x5b8] sm:$0xff]
    %v3814 = vld [vmem:[#allocation10 + $0x5c0] sm:$0xff]
    %v3815 = vld [vmem:[#allocation10 + $0x5c8] sm:$0xff]
    %v3816 = vld [vmem:[#allocation10 + $0x5d0] sm:$0xff]
    %v3817 = vld [vmem:[#allocation10 + $0x5d8] sm:$0xff]
    %v3818 = vld [vmem:[#allocation10 + $0x5e0] sm:$0xff]
    %v3819 = vld [vmem:[#allocation10 + $0x5e8] sm:$0xff]
    %v3820 = vld [vmem:[#allocation10 + $0x5f0] sm:$0xff]
    %v3821 = vld [vmem:[#allocation10 + $0x5f8] sm:$0xff]
    %v3822 = vld [vmem:[#allocation10 + $0x600] sm:$0xff]
    %v3823 = vld [vmem:[#allocation10 + $0x608] sm:$0xff]
    %v3824 = vld [vmem:[#allocation10 + $0x610] sm:$0xff]
    %v3825 = vld [vmem:[#allocation10 + $0x618] sm:$0xff]
    %v3826 = vld [vmem:[#allocation10 + $0x620] sm:$0xff]
    %v3827 = vld [vmem:[#allocation10 + $0x628] sm:$0xff]
    %v3828 = vld [vmem:[#allocation10 + $0x630] sm:$0xff]
    %v3829 = vld [vmem:[#allocation10 + $0x638] sm:$0xff]
    %v3830 = vld [vmem:[#allocation10 + $0x640] sm:$0xff]
    %v3831 = vld [vmem:[#allocation10 + $0x648] sm:$0xff]
    %v3832 = vld [vmem:[#allocation10 + $0x650] sm:$0xff]
    %v3833 = vld [vmem:[#allocation10 + $0x658] sm:$0xff]
    %v3834 = vld [vmem:[#allocation10 + $0x660] sm:$0xff]
    %v3835 = vld [vmem:[#allocation10 + $0x668] sm:$0xff]
    %v3836 = vld [vmem:[#allocation10 + $0x670] sm:$0xff]
    %v3837 = vld [vmem:[#allocation10 + $0x678] sm:$0xff]
    %v3838 = vld [vmem:[#allocation10 + $0x680] sm:$0xff]
    %v3839 = vld [vmem:[#allocation10 + $0x688] sm:$0xff]
    %v3840 = vld [vmem:[#allocation10 + $0x690] sm:$0xff]
    %v3841 = vld [vmem:[#allocation10 + $0x698] sm:$0xff]
    %v3842 = vld [vmem:[#allocation10 + $0x6a0] sm:$0xff]
    %v3843 = vld [vmem:[#allocation10 + $0x6a8] sm:$0xff]
    %v3844 = vld [vmem:[#allocation10 + $0x6b0] sm:$0xff]
    %v3845 = vld [vmem:[#allocation10 + $0x6b8] sm:$0xff]
    %v3846 = vld [vmem:[#allocation10 + $0x6c0] sm:$0xff]
    %v3847 = vld [vmem:[#allocation10 + $0x6c8] sm:$0xff]
    %v3848 = vld [vmem:[#allocation10 + $0x6d0] sm:$0xff]
    %v3849 = vld [vmem:[#allocation10 + $0x6d8] sm:$0xff]
    %v3850 = vld [vmem:[#allocation10 + $0x6e0] sm:$0xff]
    %v3851 = vld [vmem:[#allocation10 + $0x6e8] sm:$0xff]
    %v3852 = vld [vmem:[#allocation10 + $0x6f0] sm:$0xff]
    %v3853 = vld [vmem:[#allocation10 + $0x6f8] sm:$0xff]
    %v3854 = vld [vmem:[#allocation10 + $0x700] sm:$0xff]
    %v3855 = vld [vmem:[#allocation10 + $0x708] sm:$0xff]
    %v3856 = vld [vmem:[#allocation10 + $0x710] sm:$0xff]
    %v3857 = vld [vmem:[#allocation10 + $0x718] sm:$0xff]
    %v3858 = vld [vmem:[#allocation10 + $0x720] sm:$0xff]
    %v3859 = vld [vmem:[#allocation10 + $0x728] sm:$0xff]
    %v3860 = vld [vmem:[#allocation10 + $0x730] sm:$0xff]
    %v3861 = vld [vmem:[#allocation10 + $0x738] sm:$0xff]
    %v3862 = vld [vmem:[#allocation10 + $0x740] sm:$0xff]
    %v3863 = vld [vmem:[#allocation10 + $0x748] sm:$0xff]
    %v3864 = vld [vmem:[#allocation10 + $0x750] sm:$0xff]
    %v3865 = vld [vmem:[#allocation10 + $0x758] sm:$0xff]
    %v3866 = vld [vmem:[#allocation10 + $0x760] sm:$0xff]
    %v3867 = vld [vmem:[#allocation10 + $0x768] sm:$0xff]
    %v3868 = vld [vmem:[#allocation10 + $0x770] sm:$0xff]
    %v3869 = vld [vmem:[#allocation10 + $0x778] sm:$0xff]
    %v3870 = vld [vmem:[#allocation10 + $0x780] sm:$0xff]
    %v3871 = vld [vmem:[#allocation10 + $0x788] sm:$0xff]
    %v3872 = vld [vmem:[#allocation10 + $0x790] sm:$0xff]
    %v3873 = vld [vmem:[#allocation10 + $0x798] sm:$0xff]
    %v3874 = vld [vmem:[#allocation10 + $0x7a0] sm:$0xff]
    %v3875 = vld [vmem:[#allocation10 + $0x7a8] sm:$0xff]
    %v3876 = vld [vmem:[#allocation10 + $0x7b0] sm:$0xff]
    %v3877 = vld [vmem:[#allocation10 + $0x7b8] sm:$0xff]
    %v3878 = vld [vmem:[#allocation10 + $0x7c0] sm:$0xff]
    %v3879 = vld [vmem:[#allocation10 + $0x7c8] sm:$0xff]
    %v3880 = vld [vmem:[#allocation10 + $0x7d0] sm:$0xff]
    %v3881 = vld [vmem:[#allocation10 + $0x7d8] sm:$0xff]
    %v3882 = vld [vmem:[#allocation10 + $0x7e0] sm:$0xff]
    %v3883 = vld [vmem:[#allocation10 + $0x7e8] sm:$0xff]
    %v3884 = vld [vmem:[#allocation10 + $0x7f0] sm:$0xff]
    %v3885 = vld [vmem:[#allocation10 + $0x7f8] sm:$0xff]
    %v3886 = vld [vmem:[#allocation12] sm:$0xf]
    %v3888 = vperm.slane %v3886, 0
    %v3889 = vperm.slane %v3886, 1
    %v3890 = vperm.slane %v3886, 2
    %v3891 = vperm.slane %v3886, 3
    %v4152 = vunpack.c.l.b16 %v3630
    %v4153 = vunpack.c.h.b16 %v3630
    %v4154 = vunpack.c.l.b16 %v3631
    %v4155 = vunpack.c.h.b16 %v3631
    %v4156 = vunpack.c.l.b16 %v3632
    %v4157 = vunpack.c.h.b16 %v3632
    %v4158 = vunpack.c.l.b16 %v3633
    %v4159 = vunpack.c.h.b16 %v3633
    %v4160 = vunpack.c.l.b16 %v3634
    %v4161 = vunpack.c.h.b16 %v3634
    %v4162 = vunpack.c.l.b16 %v3635
    %v4163 = vunpack.c.h.b16 %v3635
    %v4164 = vunpack.c.l.b16 %v3636
    %v4165 = vunpack.c.h.b16 %v3636
    %v4166 = vunpack.c.l.b16 %v3637
    %v4167 = vunpack.c.h.b16 %v3637
    %v4168 = vunpack.c.l.b16 %v3638
    %v4169 = vunpack.c.h.b16 %v3638
    %v4170 = vunpack.c.l.b16 %v3639
    %v4171 = vunpack.c.h.b16 %v3639
    %v4172 = vunpack.c.l.b16 %v3640
    %v4173 = vunpack.c.h.b16 %v3640
    %v4174 = vunpack.c.l.b16 %v3641
    %v4175 = vunpack.c.h.b16 %v3641
    %v4176 = vunpack.c.l.b16 %v3642
    %v4177 = vunpack.c.h.b16 %v3642
    %v4178 = vunpack.c.l.b16 %v3643
    %v4179 = vunpack.c.h.b16 %v3643
    %v4180 = vunpack.c.l.b16 %v3644
    %v4181 = vunpack.c.h.b16 %v3644
    %v4182 = vunpack.c.l.b16 %v3645
    %v4183 = vunpack.c.h.b16 %v3645
    %v4184 = vunpack.c.l.b16 %v3646
    %v4185 = vunpack.c.h.b16 %v3646
    %v4186 = vunpack.c.l.b16 %v3647
    %v4187 = vunpack.c.h.b16 %v3647
    %v4188 = vunpack.c.l.b16 %v3648
    %v4189 = vunpack.c.h.b16 %v3648
    %v4190 = vunpack.c.l.b16 %v3649
    %v4191 = vunpack.c.h.b16 %v3649
    %v4192 = vunpack.c.l.b16 %v3650
    %v4193 = vunpack.c.h.b16 %v3650
    %v4194 = vunpack.c.l.b16 %v3651
    %v4195 = vunpack.c.h.b16 %v3651
    %v4196 = vunpack.c.l.b16 %v3652
    %v4197 = vunpack.c.h.b16 %v3652
    %v4198 = vunpack.c.l.b16 %v3653
    %v4199 = vunpack.c.h.b16 %v3653
    %v4200 = vunpack.c.l.b16 %v3654
    %v4201 = vunpack.c.h.b16 %v3654
    %v4202 = vunpack.c.l.b16 %v3655
    %v4203 = vunpack.c.h.b16 %v3655
    %v4204 = vunpack.c.l.b16 %v3656
    %v4205 = vunpack.c.h.b16 %v3656
    %v4206 = vunpack.c.l.b16 %v3657
    %v4207 = vunpack.c.h.b16 %v3657
    %v4208 = vunpack.c.l.b16 %v3658
    %v4209 = vunpack.c.h.b16 %v3658
    %v4210 = vunpack.c.l.b16 %v3659
    %v4211 = vunpack.c.h.b16 %v3659
    %v4212 = vunpack.c.l.b16 %v3660
    %v4213 = vunpack.c.h.b16 %v3660
    %v4214 = vunpack.c.l.b16 %v3661
    %v4215 = vunpack.c.h.b16 %v3661
    %v4216 = vunpack.c.l.b16 %v3662
    %v4217 = vunpack.c.h.b16 %v3662
    %v4218 = vunpack.c.l.b16 %v3663
    %v4219 = vunpack.c.h.b16 %v3663
    %v4220 = vunpack.c.l.b16 %v3664
    %v4221 = vunpack.c.h.b16 %v3664
    %v4222 = vunpack.c.l.b16 %v3665
    %v4223 = vunpack.c.h.b16 %v3665
    %v4224 = vunpack.c.l.b16 %v3666
    %v4225 = vunpack.c.h.b16 %v3666
    %v4226 = vunpack.c.l.b16 %v3667
    %v4227 = vunpack.c.h.b16 %v3667
    %v4228 = vunpack.c.l.b16 %v3668
    %v4229 = vunpack.c.h.b16 %v3668
    %v4230 = vunpack.c.l.b16 %v3669
    %v4231 = vunpack.c.h.b16 %v3669
    %v4232 = vunpack.c.l.b16 %v3670
    %v4233 = vunpack.c.h.b16 %v3670
    %v4234 = vunpack.c.l.b16 %v3671
    %v4235 = vunpack.c.h.b16 %v3671
    %v4236 = vunpack.c.l.b16 %v3672
    %v4237 = vunpack.c.h.b16 %v3672
    %v4238 = vunpack.c.l.b16 %v3673
    %v4239 = vunpack.c.h.b16 %v3673
    %v4240 = vunpack.c.l.b16 %v3674
    %v4241 = vunpack.c.h.b16 %v3674
    %v4242 = vunpack.c.l.b16 %v3675
    %v4243 = vunpack.c.h.b16 %v3675
    %v4244 = vunpack.c.l.b16 %v3676
    %v4245 = vunpack.c.h.b16 %v3676
    %v4246 = vunpack.c.l.b16 %v3677
    %v4247 = vunpack.c.h.b16 %v3677
    %v4248 = vunpack.c.l.b16 %v3678
    %v4249 = vunpack.c.h.b16 %v3678
    %v4250 = vunpack.c.l.b16 %v3679
    %v4251 = vunpack.c.h.b16 %v3679
    %v4252 = vunpack.c.l.b16 %v3680
    %v4253 = vunpack.c.h.b16 %v3680
    %v4254 = vunpack.c.l.b16 %v3681
    %v4255 = vunpack.c.h.b16 %v3681
    %v4256 = vunpack.c.l.b16 %v3682
    %v4257 = vunpack.c.h.b16 %v3682
    %v4258 = vunpack.c.l.b16 %v3683
    %v4259 = vunpack.c.h.b16 %v3683
    %v4260 = vunpack.c.l.b16 %v3684
    %v4261 = vunpack.c.h.b16 %v3684
    %v4262 = vunpack.c.l.b16 %v3685
    %v4263 = vunpack.c.h.b16 %v3685
    %v4264 = vunpack.c.l.b16 %v3686
    %v4265 = vunpack.c.h.b16 %v3686
    %v4266 = vunpack.c.l.b16 %v3687
    %v4267 = vunpack.c.h.b16 %v3687
    %v4268 = vunpack.c.l.b16 %v3688
    %v4269 = vunpack.c.h.b16 %v3688
    %v4270 = vunpack.c.l.b16 %v3689
    %v4271 = vunpack.c.h.b16 %v3689
    %v4272 = vunpack.c.l.b16 %v3690
    %v4273 = vunpack.c.h.b16 %v3690
    %v4274 = vunpack.c.l.b16 %v3691
    %v4275 = vunpack.c.h.b16 %v3691
    %v4276 = vunpack.c.l.b16 %v3692
    %v4277 = vunpack.c.h.b16 %v3692
    %v4278 = vunpack.c.l.b16 %v3693
    %v4279 = vunpack.c.h.b16 %v3693
    %v4280 = vunpack.c.l.b16 %v3694
    %v4281 = vunpack.c.h.b16 %v3694
    %v4282 = vunpack.c.l.b16 %v3695
    %v4283 = vunpack.c.h.b16 %v3695
    %v4284 = vunpack.c.l.b16 %v3696
    %v4285 = vunpack.c.h.b16 %v3696
    %v4286 = vunpack.c.l.b16 %v3697
    %v4287 = vunpack.c.h.b16 %v3697
    %v4288 = vunpack.c.l.b16 %v3698
    %v4289 = vunpack.c.h.b16 %v3698
    %v4290 = vunpack.c.l.b16 %v3699
    %v4291 = vunpack.c.h.b16 %v3699
    %v4292 = vunpack.c.l.b16 %v3700
    %v4293 = vunpack.c.h.b16 %v3700
    %v4294 = vunpack.c.l.b16 %v3701
    %v4295 = vunpack.c.h.b16 %v3701
    %v4296 = vunpack.c.l.b16 %v3702
    %v4297 = vunpack.c.h.b16 %v3702
    %v4298 = vunpack.c.l.b16 %v3703
    %v4299 = vunpack.c.h.b16 %v3703
    %v4300 = vunpack.c.l.b16 %v3704
    %v4301 = vunpack.c.h.b16 %v3704
    %v4302 = vunpack.c.l.b16 %v3705
    %v4303 = vunpack.c.h.b16 %v3705
    %v4304 = vunpack.c.l.b16 %v3706
    %v4305 = vunpack.c.h.b16 %v3706
    %v4306 = vunpack.c.l.b16 %v3707
    %v4307 = vunpack.c.h.b16 %v3707
    %v4308 = vunpack.c.l.b16 %v3708
    %v4309 = vunpack.c.h.b16 %v3708
    %v4310 = vunpack.c.l.b16 %v3709
    %v4311 = vunpack.c.h.b16 %v3709
    %v4312 = vunpack.c.l.b16 %v3710
    %v4313 = vunpack.c.h.b16 %v3710
    %v4314 = vunpack.c.l.b16 %v3711
    %v4315 = vunpack.c.h.b16 %v3711
    %v4316 = vunpack.c.l.b16 %v3712
    %v4317 = vunpack.c.h.b16 %v3712
    %v4318 = vunpack.c.l.b16 %v3713
    %v4319 = vunpack.c.h.b16 %v3713
    %v4320 = vunpack.c.l.b16 %v3714
    %v4321 = vunpack.c.h.b16 %v3714
    %v4322 = vunpack.c.l.b16 %v3715
    %v4323 = vunpack.c.h.b16 %v3715
    %v4324 = vunpack.c.l.b16 %v3716
    %v4325 = vunpack.c.h.b16 %v3716
    %v4326 = vunpack.c.l.b16 %v3717
    %v4327 = vunpack.c.h.b16 %v3717
    %v4328 = vunpack.c.l.b16 %v3718
    %v4329 = vunpack.c.h.b16 %v3718
    %v4330 = vunpack.c.l.b16 %v3719
    %v4331 = vunpack.c.h.b16 %v3719
    %v4332 = vunpack.c.l.b16 %v3720
    %v4333 = vunpack.c.h.b16 %v3720
    %v4334 = vunpack.c.l.b16 %v3721
    %v4335 = vunpack.c.h.b16 %v3721
    %v4336 = vunpack.c.l.b16 %v3722
    %v4337 = vunpack.c.h.b16 %v3722
    %v4338 = vunpack.c.l.b16 %v3723
    %v4339 = vunpack.c.h.b16 %v3723
    %v4340 = vunpack.c.l.b16 %v3724
    %v4341 = vunpack.c.h.b16 %v3724
    %v4342 = vunpack.c.l.b16 %v3725
    %v4343 = vunpack.c.h.b16 %v3725
    %v4344 = vunpack.c.l.b16 %v3726
    %v4345 = vunpack.c.h.b16 %v3726
    %v4346 = vunpack.c.l.b16 %v3727
    %v4347 = vunpack.c.h.b16 %v3727
    %v4348 = vunpack.c.l.b16 %v3728
    %v4349 = vunpack.c.h.b16 %v3728
    %v4350 = vunpack.c.l.b16 %v3729
    %v4351 = vunpack.c.h.b16 %v3729
    %v4352 = vunpack.c.l.b16 %v3730
    %v4353 = vunpack.c.h.b16 %v3730
    %v4354 = vunpack.c.l.b16 %v3731
    %v4355 = vunpack.c.h.b16 %v3731
    %v4356 = vunpack.c.l.b16 %v3732
    %v4357 = vunpack.c.h.b16 %v3732
    %v4358 = vunpack.c.l.b16 %v3733
    %v4359 = vunpack.c.h.b16 %v3733
    %v4360 = vunpack.c.l.b16 %v3734
    %v4361 = vunpack.c.h.b16 %v3734
    %v4362 = vunpack.c.l.b16 %v3735
    %v4363 = vunpack.c.h.b16 %v3735
    %v4364 = vunpack.c.l.b16 %v3736
    %v4365 = vunpack.c.h.b16 %v3736
    %v4366 = vunpack.c.l.b16 %v3737
    %v4367 = vunpack.c.h.b16 %v3737
    %v4368 = vunpack.c.l.b16 %v3738
    %v4369 = vunpack.c.h.b16 %v3738
    %v4370 = vunpack.c.l.b16 %v3739
    %v4371 = vunpack.c.h.b16 %v3739
    %v4372 = vunpack.c.l.b16 %v3740
    %v4373 = vunpack.c.h.b16 %v3740
    %v4374 = vunpack.c.l.b16 %v3741
    %v4375 = vunpack.c.h.b16 %v3741
    %v4376 = vunpack.c.l.b16 %v3742
    %v4377 = vunpack.c.h.b16 %v3742
    %v4378 = vunpack.c.l.b16 %v3743
    %v4379 = vunpack.c.h.b16 %v3743
    %v4380 = vunpack.c.l.b16 %v3744
    %v4381 = vunpack.c.h.b16 %v3744
    %v4382 = vunpack.c.l.b16 %v3745
    %v4383 = vunpack.c.h.b16 %v3745
    %v4384 = vunpack.c.l.b16 %v3746
    %v4385 = vunpack.c.h.b16 %v3746
    %v4386 = vunpack.c.l.b16 %v3747
    %v4387 = vunpack.c.h.b16 %v3747
    %v4388 = vunpack.c.l.b16 %v3748
    %v4389 = vunpack.c.h.b16 %v3748
    %v4390 = vunpack.c.l.b16 %v3749
    %v4391 = vunpack.c.h.b16 %v3749
    %v4392 = vunpack.c.l.b16 %v3750
    %v4393 = vunpack.c.h.b16 %v3750
    %v4394 = vunpack.c.l.b16 %v3751
    %v4395 = vunpack.c.h.b16 %v3751
    %v4396 = vunpack.c.l.b16 %v3752
    %v4397 = vunpack.c.h.b16 %v3752
    %v4398 = vunpack.c.l.b16 %v3753
    %v4399 = vunpack.c.h.b16 %v3753
    %v4400 = vunpack.c.l.b16 %v3754
    %v4401 = vunpack.c.h.b16 %v3754
    %v4402 = vunpack.c.l.b16 %v3755
    %v4403 = vunpack.c.h.b16 %v3755
    %v4404 = vunpack.c.l.b16 %v3756
    %v4405 = vunpack.c.h.b16 %v3756
    %v4406 = vunpack.c.l.b16 %v3757
    %v4407 = vunpack.c.h.b16 %v3757
    %v4408 = vunpack.c.l.b16 %v3758
    %v4409 = vunpack.c.h.b16 %v3758
    %v4410 = vunpack.c.l.b16 %v3759
    %v4411 = vunpack.c.h.b16 %v3759
    %v4412 = vunpack.c.l.b16 %v3760
    %v4413 = vunpack.c.h.b16 %v3760
    %v4414 = vunpack.c.l.b16 %v3761
    %v4415 = vunpack.c.h.b16 %v3761
    %v4416 = vunpack.c.l.b16 %v3762
    %v4417 = vunpack.c.h.b16 %v3762
    %v4418 = vunpack.c.l.b16 %v3763
    %v4419 = vunpack.c.h.b16 %v3763
    %v4420 = vunpack.c.l.b16 %v3764
    %v4421 = vunpack.c.h.b16 %v3764
    %v4422 = vunpack.c.l.b16 %v3765
    %v4423 = vunpack.c.h.b16 %v3765
    %v4424 = vunpack.c.l.b16 %v3766
    %v4425 = vunpack.c.h.b16 %v3766
    %v4426 = vunpack.c.l.b16 %v3767
    %v4427 = vunpack.c.h.b16 %v3767
    %v4428 = vunpack.c.l.b16 %v3768
    %v4429 = vunpack.c.h.b16 %v3768
    %v4430 = vunpack.c.l.b16 %v3769
    %v4431 = vunpack.c.h.b16 %v3769
    %v4432 = vunpack.c.l.b16 %v3770
    %v4433 = vunpack.c.h.b16 %v3770
    %v4434 = vunpack.c.l.b16 %v3771
    %v4435 = vunpack.c.h.b16 %v3771
    %v4436 = vunpack.c.l.b16 %v3772
    %v4437 = vunpack.c.h.b16 %v3772
    %v4438 = vunpack.c.l.b16 %v3773
    %v4439 = vunpack.c.h.b16 %v3773
    %v4440 = vunpack.c.l.b16 %v3774
    %v4441 = vunpack.c.h.b16 %v3774
    %v4442 = vunpack.c.l.b16 %v3775
    %v4443 = vunpack.c.h.b16 %v3775
    %v4444 = vunpack.c.l.b16 %v3776
    %v4445 = vunpack.c.h.b16 %v3776
    %v4446 = vunpack.c.l.b16 %v3777
    %v4447 = vunpack.c.h.b16 %v3777
    %v4448 = vunpack.c.l.b16 %v3778
    %v4449 = vunpack.c.h.b16 %v3778
    %v4450 = vunpack.c.l.b16 %v3779
    %v4451 = vunpack.c.h.b16 %v3779
    %v4452 = vunpack.c.l.b16 %v3780
    %v4453 = vunpack.c.h.b16 %v3780
    %v4454 = vunpack.c.l.b16 %v3781
    %v4455 = vunpack.c.h.b16 %v3781
    %v4456 = vunpack.c.l.b16 %v3782
    %v4457 = vunpack.c.h.b16 %v3782
    %v4458 = vunpack.c.l.b16 %v3783
    %v4459 = vunpack.c.h.b16 %v3783
    %v4460 = vunpack.c.l.b16 %v3784
    %v4461 = vunpack.c.h.b16 %v3784
    %v4462 = vunpack.c.l.b16 %v3785
    %v4463 = vunpack.c.h.b16 %v3785
    %v4464 = vunpack.c.l.b16 %v3786
    %v4465 = vunpack.c.h.b16 %v3786
    %v4466 = vunpack.c.l.b16 %v3787
    %v4467 = vunpack.c.h.b16 %v3787
    %v4468 = vunpack.c.l.b16 %v3788
    %v4469 = vunpack.c.h.b16 %v3788
    %v4470 = vunpack.c.l.b16 %v3789
    %v4471 = vunpack.c.h.b16 %v3789
    %v4472 = vunpack.c.l.b16 %v3790
    %v4473 = vunpack.c.h.b16 %v3790
    %v4474 = vunpack.c.l.b16 %v3791
    %v4475 = vunpack.c.h.b16 %v3791
    %v4476 = vunpack.c.l.b16 %v3792
    %v4477 = vunpack.c.h.b16 %v3792
    %v4478 = vunpack.c.l.b16 %v3793
    %v4479 = vunpack.c.h.b16 %v3793
    %v4480 = vunpack.c.l.b16 %v3794
    %v4481 = vunpack.c.h.b16 %v3794
    %v4482 = vunpack.c.l.b16 %v3795
    %v4483 = vunpack.c.h.b16 %v3795
    %v4484 = vunpack.c.l.b16 %v3796
    %v4485 = vunpack.c.h.b16 %v3796
    %v4486 = vunpack.c.l.b16 %v3797
    %v4487 = vunpack.c.h.b16 %v3797
    %v4488 = vunpack.c.l.b16 %v3798
    %v4489 = vunpack.c.h.b16 %v3798
    %v4490 = vunpack.c.l.b16 %v3799
    %v4491 = vunpack.c.h.b16 %v3799
    %v4492 = vunpack.c.l.b16 %v3800
    %v4493 = vunpack.c.h.b16 %v3800
    %v4494 = vunpack.c.l.b16 %v3801
    %v4495 = vunpack.c.h.b16 %v3801
    %v4496 = vunpack.c.l.b16 %v3802
    %v4497 = vunpack.c.h.b16 %v3802
    %v4498 = vunpack.c.l.b16 %v3803
    %v4499 = vunpack.c.h.b16 %v3803
    %v4500 = vunpack.c.l.b16 %v3804
    %v4501 = vunpack.c.h.b16 %v3804
    %v4502 = vunpack.c.l.b16 %v3805
    %v4503 = vunpack.c.h.b16 %v3805
    %v4504 = vunpack.c.l.b16 %v3806
    %v4505 = vunpack.c.h.b16 %v3806
    %v4506 = vunpack.c.l.b16 %v3807
    %v4507 = vunpack.c.h.b16 %v3807
    %v4508 = vunpack.c.l.b16 %v3808
    %v4509 = vunpack.c.h.b16 %v3808
    %v4510 = vunpack.c.l.b16 %v3809
    %v4511 = vunpack.c.h.b16 %v3809
    %v4512 = vunpack.c.l.b16 %v3810
    %v4513 = vunpack.c.h.b16 %v3810
    %v4514 = vunpack.c.l.b16 %v3811
    %v4515 = vunpack.c.h.b16 %v3811
    %v4516 = vunpack.c.l.b16 %v3812
    %v4517 = vunpack.c.h.b16 %v3812
    %v4518 = vunpack.c.l.b16 %v3813
    %v4519 = vunpack.c.h.b16 %v3813
    %v4520 = vunpack.c.l.b16 %v3814
    %v4521 = vunpack.c.h.b16 %v3814
    %v4522 = vunpack.c.l.b16 %v3815
    %v4523 = vunpack.c.h.b16 %v3815
    %v4524 = vunpack.c.l.b16 %v3816
    %v4525 = vunpack.c.h.b16 %v3816
    %v4526 = vunpack.c.l.b16 %v3817
    %v4527 = vunpack.c.h.b16 %v3817
    %v4528 = vunpack.c.l.b16 %v3818
    %v4529 = vunpack.c.h.b16 %v3818
    %v4530 = vunpack.c.l.b16 %v3819
    %v4531 = vunpack.c.h.b16 %v3819
    %v4532 = vunpack.c.l.b16 %v3820
    %v4533 = vunpack.c.h.b16 %v3820
    %v4534 = vunpack.c.l.b16 %v3821
    %v4535 = vunpack.c.h.b16 %v3821
    %v4536 = vunpack.c.l.b16 %v3822
    %v4537 = vunpack.c.h.b16 %v3822
    %v4538 = vunpack.c.l.b16 %v3823
    %v4539 = vunpack.c.h.b16 %v3823
    %v4540 = vunpack.c.l.b16 %v3824
    %v4541 = vunpack.c.h.b16 %v3824
    %v4542 = vunpack.c.l.b16 %v3825
    %v4543 = vunpack.c.h.b16 %v3825
    %v4544 = vunpack.c.l.b16 %v3826
    %v4545 = vunpack.c.h.b16 %v3826
    %v4546 = vunpack.c.l.b16 %v3827
    %v4547 = vunpack.c.h.b16 %v3827
    %v4548 = vunpack.c.l.b16 %v3828
    %v4549 = vunpack.c.h.b16 %v3828
    %v4550 = vunpack.c.l.b16 %v3829
    %v4551 = vunpack.c.h.b16 %v3829
    %v4552 = vunpack.c.l.b16 %v3830
    %v4553 = vunpack.c.h.b16 %v3830
    %v4554 = vunpack.c.l.b16 %v3831
    %v4555 = vunpack.c.h.b16 %v3831
    %v4556 = vunpack.c.l.b16 %v3832
    %v4557 = vunpack.c.h.b16 %v3832
    %v4558 = vunpack.c.l.b16 %v3833
    %v4559 = vunpack.c.h.b16 %v3833
    %v4560 = vunpack.c.l.b16 %v3834
    %v4561 = vunpack.c.h.b16 %v3834
    %v4562 = vunpack.c.l.b16 %v3835
    %v4563 = vunpack.c.h.b16 %v3835
    %v4564 = vunpack.c.l.b16 %v3836
    %v4565 = vunpack.c.h.b16 %v3836
    %v4566 = vunpack.c.l.b16 %v3837
    %v4567 = vunpack.c.h.b16 %v3837
    %v4568 = vunpack.c.l.b16 %v3838
    %v4569 = vunpack.c.h.b16 %v3838
    %v4570 = vunpack.c.l.b16 %v3839
    %v4571 = vunpack.c.h.b16 %v3839
    %v4572 = vunpack.c.l.b16 %v3840
    %v4573 = vunpack.c.h.b16 %v3840
    %v4574 = vunpack.c.l.b16 %v3841
    %v4575 = vunpack.c.h.b16 %v3841
    %v4576 = vunpack.c.l.b16 %v3842
    %v4577 = vunpack.c.h.b16 %v3842
    %v4578 = vunpack.c.l.b16 %v3843
    %v4579 = vunpack.c.h.b16 %v3843
    %v4580 = vunpack.c.l.b16 %v3844
    %v4581 = vunpack.c.h.b16 %v3844
    %v4582 = vunpack.c.l.b16 %v3845
    %v4583 = vunpack.c.h.b16 %v3845
    %v4584 = vunpack.c.l.b16 %v3846
    %v4585 = vunpack.c.h.b16 %v3846
    %v4586 = vunpack.c.l.b16 %v3847
    %v4587 = vunpack.c.h.b16 %v3847
    %v4588 = vunpack.c.l.b16 %v3848
    %v4589 = vunpack.c.h.b16 %v3848
    %v4590 = vunpack.c.l.b16 %v3849
    %v4591 = vunpack.c.h.b16 %v3849
    %v4592 = vunpack.c.l.b16 %v3850
    %v4593 = vunpack.c.h.b16 %v3850
    %v4594 = vunpack.c.l.b16 %v3851
    %v4595 = vunpack.c.h.b16 %v3851
    %v4596 = vunpack.c.l.b16 %v3852
    %v4597 = vunpack.c.h.b16 %v3852
    %v4598 = vunpack.c.l.b16 %v3853
    %v4599 = vunpack.c.h.b16 %v3853
    %v4600 = vunpack.c.l.b16 %v3854
    %v4601 = vunpack.c.h.b16 %v3854
    %v4602 = vunpack.c.l.b16 %v3855
    %v4603 = vunpack.c.h.b16 %v3855
    %v4604 = vunpack.c.l.b16 %v3856
    %v4605 = vunpack.c.h.b16 %v3856
    %v4606 = vunpack.c.l.b16 %v3857
    %v4607 = vunpack.c.h.b16 %v3857
    %v4608 = vunpack.c.l.b16 %v3858
    %v4609 = vunpack.c.h.b16 %v3858
    %v4610 = vunpack.c.l.b16 %v3859
    %v4611 = vunpack.c.h.b16 %v3859
    %v4612 = vunpack.c.l.b16 %v3860
    %v4613 = vunpack.c.h.b16 %v3860
    %v4614 = vunpack.c.l.b16 %v3861
    %v4615 = vunpack.c.h.b16 %v3861
    %v4616 = vunpack.c.l.b16 %v3862
    %v4617 = vunpack.c.h.b16 %v3862
    %v4618 = vunpack.c.l.b16 %v3863
    %v4619 = vunpack.c.h.b16 %v3863
    %v4620 = vunpack.c.l.b16 %v3864
    %v4621 = vunpack.c.h.b16 %v3864
    %v4622 = vunpack.c.l.b16 %v3865
    %v4623 = vunpack.c.h.b16 %v3865
    %v4624 = vunpack.c.l.b16 %v3866
    %v4625 = vunpack.c.h.b16 %v3866
    %v4626 = vunpack.c.l.b16 %v3867
    %v4627 = vunpack.c.h.b16 %v3867
    %v4628 = vunpack.c.l.b16 %v3868
    %v4629 = vunpack.c.h.b16 %v3868
    %v4630 = vunpack.c.l.b16 %v3869
    %v4631 = vunpack.c.h.b16 %v3869
    %v4632 = vunpack.c.l.b16 %v3870
    %v4633 = vunpack.c.h.b16 %v3870
    %v4634 = vunpack.c.l.b16 %v3871
    %v4635 = vunpack.c.h.b16 %v3871
    %v4636 = vunpack.c.l.b16 %v3872
    %v4637 = vunpack.c.h.b16 %v3872
    %v4638 = vunpack.c.l.b16 %v3873
    %v4639 = vunpack.c.h.b16 %v3873
    %v4640 = vunpack.c.l.b16 %v3874
    %v4641 = vunpack.c.h.b16 %v3874
    %v4642 = vunpack.c.l.b16 %v3875
    %v4643 = vunpack.c.h.b16 %v3875
    %v4644 = vunpack.c.l.b16 %v3876
    %v4645 = vunpack.c.h.b16 %v3876
    %v4646 = vunpack.c.l.b16 %v3877
    %v4647 = vunpack.c.h.b16 %v3877
    %v4648 = vunpack.c.l.b16 %v3878
    %v4649 = vunpack.c.h.b16 %v3878
    %v4650 = vunpack.c.l.b16 %v3879
    %v4651 = vunpack.c.h.b16 %v3879
    %v4652 = vunpack.c.l.b16 %v3880
    %v4653 = vunpack.c.h.b16 %v3880
    %v4654 = vunpack.c.l.b16 %v3881
    %v4655 = vunpack.c.h.b16 %v3881
    %v4656 = vunpack.c.l.b16 %v3882
    %v4657 = vunpack.c.h.b16 %v3882
    %v4658 = vunpack.c.l.b16 %v3883
    %v4659 = vunpack.c.h.b16 %v3883
    %v4660 = vunpack.c.l.b16 %v3884
    %v4661 = vunpack.c.h.b16 %v3884
    %v4662 = vunpack.c.l.b16 %v3885
    %v4663 = vunpack.c.h.b16 %v3885
    %v4664 = vpack.c.b16 %v4156, %v4152
    %v4665 = vpack.c.b16 %v4157, %v4153
    %v4666 = vpack.c.b16 %v4158, %v4154
    %v4667 = vpack.c.b16 %v4159, %v4155
    %v4668 = vpack.c.b16 %v4164, %v4160
    %v4669 = vpack.c.b16 %v4165, %v4161
    %v4670 = vpack.c.b16 %v4166, %v4162
    %v4671 = vpack.c.b16 %v4167, %v4163
    %v4672 = vpack.c.b16 %v4172, %v4168
    %v4673 = vpack.c.b16 %v4173, %v4169
    %v4674 = vpack.c.b16 %v4174, %v4170
    %v4675 = vpack.c.b16 %v4175, %v4171
    %v4676 = vpack.c.b16 %v4180, %v4176
    %v4677 = vpack.c.b16 %v4181, %v4177
    %v4678 = vpack.c.b16 %v4182, %v4178
    %v4679 = vpack.c.b16 %v4183, %v4179
    %v4680 = vpack.c.b16 %v4188, %v4184
    %v4681 = vpack.c.b16 %v4189, %v4185
    %v4682 = vpack.c.b16 %v4190, %v4186
    %v4683 = vpack.c.b16 %v4191, %v4187
    %v4684 = vpack.c.b16 %v4196, %v4192
    %v4685 = vpack.c.b16 %v4197, %v4193
    %v4686 = vpack.c.b16 %v4198, %v4194
    %v4687 = vpack.c.b16 %v4199, %v4195
    %v4688 = vpack.c.b16 %v4204, %v4200
    %v4689 = vpack.c.b16 %v4205, %v4201
    %v4690 = vpack.c.b16 %v4206, %v4202
    %v4691 = vpack.c.b16 %v4207, %v4203
    %v4692 = vpack.c.b16 %v4212, %v4208
    %v4693 = vpack.c.b16 %v4213, %v4209
    %v4694 = vpack.c.b16 %v4214, %v4210
    %v4695 = vpack.c.b16 %v4215, %v4211
    %v4696 = vpack.c.b16 %v4220, %v4216
    %v4697 = vpack.c.b16 %v4221, %v4217
    %v4698 = vpack.c.b16 %v4222, %v4218
    %v4699 = vpack.c.b16 %v4223, %v4219
    %v4700 = vpack.c.b16 %v4228, %v4224
    %v4701 = vpack.c.b16 %v4229, %v4225
    %v4702 = vpack.c.b16 %v4230, %v4226
    %v4703 = vpack.c.b16 %v4231, %v4227
    %v4704 = vpack.c.b16 %v4236, %v4232
    %v4705 = vpack.c.b16 %v4237, %v4233
    %v4706 = vpack.c.b16 %v4238, %v4234
    %v4707 = vpack.c.b16 %v4239, %v4235
    %v4708 = vpack.c.b16 %v4244, %v4240
    %v4709 = vpack.c.b16 %v4245, %v4241
    %v4710 = vpack.c.b16 %v4246, %v4242
    %v4711 = vpack.c.b16 %v4247, %v4243
    %v4712 = vpack.c.b16 %v4252, %v4248
    %v4713 = vpack.c.b16 %v4253, %v4249
    %v4714 = vpack.c.b16 %v4254, %v4250
    %v4715 = vpack.c.b16 %v4255, %v4251
    %v4716 = vpack.c.b16 %v4260, %v4256
    %v4717 = vpack.c.b16 %v4261, %v4257
    %v4718 = vpack.c.b16 %v4262, %v4258
    %v4719 = vpack.c.b16 %v4263, %v4259
    %v4720 = vpack.c.b16 %v4268, %v4264
    %v4721 = vpack.c.b16 %v4269, %v4265
    %v4722 = vpack.c.b16 %v4270, %v4266
    %v4723 = vpack.c.b16 %v4271, %v4267
    %v4724 = vpack.c.b16 %v4276, %v4272
    %v4725 = vpack.c.b16 %v4277, %v4273
    %v4726 = vpack.c.b16 %v4278, %v4274
    %v4727 = vpack.c.b16 %v4279, %v4275
    %v4728 = vpack.c.b16 %v4284, %v4280
    %v4729 = vpack.c.b16 %v4285, %v4281
    %v4730 = vpack.c.b16 %v4286, %v4282
    %v4731 = vpack.c.b16 %v4287, %v4283
    %v4732 = vpack.c.b16 %v4292, %v4288
    %v4733 = vpack.c.b16 %v4293, %v4289
    %v4734 = vpack.c.b16 %v4294, %v4290
    %v4735 = vpack.c.b16 %v4295, %v4291
    %v4736 = vpack.c.b16 %v4300, %v4296
    %v4737 = vpack.c.b16 %v4301, %v4297
    %v4738 = vpack.c.b16 %v4302, %v4298
    %v4739 = vpack.c.b16 %v4303, %v4299
    %v4740 = vpack.c.b16 %v4308, %v4304
    %v4741 = vpack.c.b16 %v4309, %v4305
    %v4742 = vpack.c.b16 %v4310, %v4306
    %v4743 = vpack.c.b16 %v4311, %v4307
    %v4744 = vpack.c.b16 %v4316, %v4312
    %v4745 = vpack.c.b16 %v4317, %v4313
    %v4746 = vpack.c.b16 %v4318, %v4314
    %v4747 = vpack.c.b16 %v4319, %v4315
    %v4748 = vpack.c.b16 %v4324, %v4320
    %v4749 = vpack.c.b16 %v4325, %v4321
    %v4750 = vpack.c.b16 %v4326, %v4322
    %v4751 = vpack.c.b16 %v4327, %v4323
    %v4752 = vpack.c.b16 %v4332, %v4328
    %v4753 = vpack.c.b16 %v4333, %v4329
    %v4754 = vpack.c.b16 %v4334, %v4330
    %v4755 = vpack.c.b16 %v4335, %v4331
    %v4756 = vpack.c.b16 %v4340, %v4336
    %v4757 = vpack.c.b16 %v4341, %v4337
    %v4758 = vpack.c.b16 %v4342, %v4338
    %v4759 = vpack.c.b16 %v4343, %v4339
    %v4760 = vpack.c.b16 %v4348, %v4344
    %v4761 = vpack.c.b16 %v4349, %v4345
    %v4762 = vpack.c.b16 %v4350, %v4346
    %v4763 = vpack.c.b16 %v4351, %v4347
    %v4764 = vpack.c.b16 %v4356, %v4352
    %v4765 = vpack.c.b16 %v4357, %v4353
    %v4766 = vpack.c.b16 %v4358, %v4354
    %v4767 = vpack.c.b16 %v4359, %v4355
    %v4768 = vpack.c.b16 %v4364, %v4360
    %v4769 = vpack.c.b16 %v4365, %v4361
    %v4770 = vpack.c.b16 %v4366, %v4362
    %v4771 = vpack.c.b16 %v4367, %v4363
    %v4772 = vpack.c.b16 %v4372, %v4368
    %v4773 = vpack.c.b16 %v4373, %v4369
    %v4774 = vpack.c.b16 %v4374, %v4370
    %v4775 = vpack.c.b16 %v4375, %v4371
    %v4776 = vpack.c.b16 %v4380, %v4376
    %v4777 = vpack.c.b16 %v4381, %v4377
    %v4778 = vpack.c.b16 %v4382, %v4378
    %v4779 = vpack.c.b16 %v4383, %v4379
    %v4780 = vpack.c.b16 %v4388, %v4384
    %v4781 = vpack.c.b16 %v4389, %v4385
    %v4782 = vpack.c.b16 %v4390, %v4386
    %v4783 = vpack.c.b16 %v4391, %v4387
    %v4784 = vpack.c.b16 %v4396, %v4392
    %v4785 = vpack.c.b16 %v4397, %v4393
    %v4786 = vpack.c.b16 %v4398, %v4394
    %v4787 = vpack.c.b16 %v4399, %v4395
    %v4788 = vpack.c.b16 %v4404, %v4400
    %v4789 = vpack.c.b16 %v4405, %v4401
    %v4790 = vpack.c.b16 %v4406, %v4402
    %v4791 = vpack.c.b16 %v4407, %v4403
    %v4792 = vpack.c.b16 %v4412, %v4408
    %v4793 = vpack.c.b16 %v4413, %v4409
    %v4794 = vpack.c.b16 %v4414, %v4410
    %v4795 = vpack.c.b16 %v4415, %v4411
    %v4796 = vpack.c.b16 %v4420, %v4416
    %v4797 = vpack.c.b16 %v4421, %v4417
    %v4798 = vpack.c.b16 %v4422, %v4418
    %v4799 = vpack.c.b16 %v4423, %v4419
    %v4800 = vpack.c.b16 %v4428, %v4424
    %v4801 = vpack.c.b16 %v4429, %v4425
    %v4802 = vpack.c.b16 %v4430, %v4426
    %v4803 = vpack.c.b16 %v4431, %v4427
    %v4804 = vpack.c.b16 %v4436, %v4432
    %v4805 = vpack.c.b16 %v4437, %v4433
    %v4806 = vpack.c.b16 %v4438, %v4434
    %v4807 = vpack.c.b16 %v4439, %v4435
    %v4808 = vpack.c.b16 %v4444, %v4440
    %v4809 = vpack.c.b16 %v4445, %v4441
    %v4810 = vpack.c.b16 %v4446, %v4442
    %v4811 = vpack.c.b16 %v4447, %v4443
    %v4812 = vpack.c.b16 %v4452, %v4448
    %v4813 = vpack.c.b16 %v4453, %v4449
    %v4814 = vpack.c.b16 %v4454, %v4450
    %v4815 = vpack.c.b16 %v4455, %v4451
    %v4816 = vpack.c.b16 %v4460, %v4456
    %v4817 = vpack.c.b16 %v4461, %v4457
    %v4818 = vpack.c.b16 %v4462, %v4458
    %v4819 = vpack.c.b16 %v4463, %v4459
    %v4820 = vpack.c.b16 %v4468, %v4464
    %v4821 = vpack.c.b16 %v4469, %v4465
    %v4822 = vpack.c.b16 %v4470, %v4466
    %v4823 = vpack.c.b16 %v4471, %v4467
    %v4824 = vpack.c.b16 %v4476, %v4472
    %v4825 = vpack.c.b16 %v4477, %v4473
    %v4826 = vpack.c.b16 %v4478, %v4474
    %v4827 = vpack.c.b16 %v4479, %v4475
    %v4828 = vpack.c.b16 %v4484, %v4480
    %v4829 = vpack.c.b16 %v4485, %v4481
    %v4830 = vpack.c.b16 %v4486, %v4482
    %v4831 = vpack.c.b16 %v4487, %v4483
    %v4832 = vpack.c.b16 %v4492, %v4488
    %v4833 = vpack.c.b16 %v4493, %v4489
    %v4834 = vpack.c.b16 %v4494, %v4490
    %v4835 = vpack.c.b16 %v4495, %v4491
    %v4836 = vpack.c.b16 %v4500, %v4496
    %v4837 = vpack.c.b16 %v4501, %v4497
    %v4838 = vpack.c.b16 %v4502, %v4498
    %v4839 = vpack.c.b16 %v4503, %v4499
    %v4840 = vpack.c.b16 %v4508, %v4504
    %v4841 = vpack.c.b16 %v4509, %v4505
    %v4842 = vpack.c.b16 %v4510, %v4506
    %v4843 = vpack.c.b16 %v4511, %v4507
    %v4844 = vpack.c.b16 %v4516, %v4512
    %v4845 = vpack.c.b16 %v4517, %v4513
    %v4846 = vpack.c.b16 %v4518, %v4514
    %v4847 = vpack.c.b16 %v4519, %v4515
    %v4848 = vpack.c.b16 %v4524, %v4520
    %v4849 = vpack.c.b16 %v4525, %v4521
    %v4850 = vpack.c.b16 %v4526, %v4522
    %v4851 = vpack.c.b16 %v4527, %v4523
    %v4852 = vpack.c.b16 %v4532, %v4528
    %v4853 = vpack.c.b16 %v4533, %v4529
    %v4854 = vpack.c.b16 %v4534, %v4530
    %v4855 = vpack.c.b16 %v4535, %v4531
    %v4856 = vpack.c.b16 %v4540, %v4536
    %v4857 = vpack.c.b16 %v4541, %v4537
    %v4858 = vpack.c.b16 %v4542, %v4538
    %v4859 = vpack.c.b16 %v4543, %v4539
    %v4860 = vpack.c.b16 %v4548, %v4544
    %v4861 = vpack.c.b16 %v4549, %v4545
    %v4862 = vpack.c.b16 %v4550, %v4546
    %v4863 = vpack.c.b16 %v4551, %v4547
    %v4864 = vpack.c.b16 %v4556, %v4552
    %v4865 = vpack.c.b16 %v4557, %v4553
    %v4866 = vpack.c.b16 %v4558, %v4554
    %v4867 = vpack.c.b16 %v4559, %v4555
    %v4868 = vpack.c.b16 %v4564, %v4560
    %v4869 = vpack.c.b16 %v4565, %v4561
    %v4870 = vpack.c.b16 %v4566, %v4562
    %v4871 = vpack.c.b16 %v4567, %v4563
    %v4872 = vpack.c.b16 %v4572, %v4568
    %v4873 = vpack.c.b16 %v4573, %v4569
    %v4874 = vpack.c.b16 %v4574, %v4570
    %v4875 = vpack.c.b16 %v4575, %v4571
    %v4876 = vpack.c.b16 %v4580, %v4576
    %v4877 = vpack.c.b16 %v4581, %v4577
    %v4878 = vpack.c.b16 %v4582, %v4578
    %v4879 = vpack.c.b16 %v4583, %v4579
    %v4880 = vpack.c.b16 %v4588, %v4584
    %v4881 = vpack.c.b16 %v4589, %v4585
    %v4882 = vpack.c.b16 %v4590, %v4586
    %v4883 = vpack.c.b16 %v4591, %v4587
    %v4884 = vpack.c.b16 %v4596, %v4592
    %v4885 = vpack.c.b16 %v4597, %v4593
    %v4886 = vpack.c.b16 %v4598, %v4594
    %v4887 = vpack.c.b16 %v4599, %v4595
    %v4888 = vpack.c.b16 %v4604, %v4600
    %v4889 = vpack.c.b16 %v4605, %v4601
    %v4890 = vpack.c.b16 %v4606, %v4602
    %v4891 = vpack.c.b16 %v4607, %v4603
    %v4892 = vpack.c.b16 %v4612, %v4608
    %v4893 = vpack.c.b16 %v4613, %v4609
    %v4894 = vpack.c.b16 %v4614, %v4610
    %v4895 = vpack.c.b16 %v4615, %v4611
    %v4896 = vpack.c.b16 %v4620, %v4616
    %v4897 = vpack.c.b16 %v4621, %v4617
    %v4898 = vpack.c.b16 %v4622, %v4618
    %v4899 = vpack.c.b16 %v4623, %v4619
    %v4900 = vpack.c.b16 %v4628, %v4624
    %v4901 = vpack.c.b16 %v4629, %v4625
    %v4902 = vpack.c.b16 %v4630, %v4626
    %v4903 = vpack.c.b16 %v4631, %v4627
    %v4904 = vpack.c.b16 %v4636, %v4632
    %v4905 = vpack.c.b16 %v4637, %v4633
    %v4906 = vpack.c.b16 %v4638, %v4634
    %v4907 = vpack.c.b16 %v4639, %v4635
    %v4908 = vpack.c.b16 %v4644, %v4640
    %v4909 = vpack.c.b16 %v4645, %v4641
    %v4910 = vpack.c.b16 %v4646, %v4642
    %v4911 = vpack.c.b16 %v4647, %v4643
    %v4912 = vpack.c.b16 %v4652, %v4648
    %v4913 = vpack.c.b16 %v4653, %v4649
    %v4914 = vpack.c.b16 %v4654, %v4650
    %v4915 = vpack.c.b16 %v4655, %v4651
    %v4916 = vpack.c.b16 %v4660, %v4656
    %v4917 = vpack.c.b16 %v4661, %v4657
    %v4918 = vpack.c.b16 %v4662, %v4658
    %v4919 = vpack.c.b16 %v4663, %v4659
    %5176 = vmatpush.bf16.msra.mxu0 %v4692
    %5177 = vmatpush.bf16.msra.mxu0 %v4688
    %5178 = vmatpush.bf16.msra.mxu0 %v4684
    %5179 = vmatpush.bf16.msra.mxu0 %v4680
    %5180 = vmatpush.bf16.msra.mxu0 %v4676
    %5181 = vmatpush.bf16.msra.mxu0 %v4672
    %5182 = vmatpush.bf16.msra.mxu0 %v4668
    %5183 = vmatpush.bf16.msra.mxu0 %v4664
    %5184 = vmatmul.bf16.gmra.mxu0 %v3622
    %v5185 = vpop.f32.mrf.mxu0
    %v5186 = vadd.f32 %v3888, %v5185
    %v5187 = vpop.f32.mrf.mxu0
    %v5188 = vadd.f32 %v3888, %v5187
    %5189 = vdwg.mxu0
    %5190 = vmatpush.bf16.msra.mxu0 %v4724
    %5191 = vmatpush.bf16.msra.mxu0 %v4720
    %5192 = vmatpush.bf16.msra.mxu0 %v4716
    %5193 = vmatpush.bf16.msra.mxu0 %v4712
    %5194 = vmatpush.bf16.msra.mxu0 %v4708
    %5195 = vmatpush.bf16.msra.mxu0 %v4704
    %5196 = vmatpush.bf16.msra.mxu0 %v4700
    %5197 = vmatpush.bf16.msra.mxu0 %v4696
    %5198 = vmatmul.bf16.gmra.mxu0 %v3623
    %v5199 = vpop.f32.mrf.mxu0
    %v5200 = vadd.f32 %v5186, %v5199
    %v5201 = vpop.f32.mrf.mxu0
    %v5202 = vadd.f32 %v5188, %v5201
    %5203 = vdwg.mxu0
    %5204 = vmatpush.bf16.msra.mxu0 %v4756
    %5205 = vmatpush.bf16.msra.mxu0 %v4752
    %5206 = vmatpush.bf16.msra.mxu0 %v4748
    %5207 = vmatpush.bf16.msra.mxu0 %v4744
    %5208 = vmatpush.bf16.msra.mxu0 %v4740
    %5209 = vmatpush.bf16.msra.mxu0 %v4736
    %5210 = vmatpush.bf16.msra.mxu0 %v4732
    %5211 = vmatpush.bf16.msra.mxu0 %v4728
    %5212 = vmatmul.bf16.gmra.mxu0 %v3624
    %v5213 = vpop.f32.mrf.mxu0
    %v5214 = vadd.f32 %v5200, %v5213
    %v5215 = vpop.f32.mrf.mxu0
    %v5216 = vadd.f32 %v5202, %v5215
    %5217 = vdwg.mxu0
    %5218 = vmatpush.bf16.msra.mxu0 %v4788
    %5219 = vmatpush.bf16.msra.mxu0 %v4784
    %5220 = vmatpush.bf16.msra.mxu0 %v4780
    %5221 = vmatpush.bf16.msra.mxu0 %v4776
    %5222 = vmatpush.bf16.msra.mxu0 %v4772
    %5223 = vmatpush.bf16.msra.mxu0 %v4768
    %5224 = vmatpush.bf16.msra.mxu0 %v4764
    %5225 = vmatpush.bf16.msra.mxu0 %v4760
    %5226 = vmatmul.bf16.gmra.mxu0 %v3625
    %v5227 = vpop.f32.mrf.mxu0
    %v5228 = vadd.f32 %v5214, %v5227
    %v5229 = vpop.f32.mrf.mxu0
    %v5230 = vadd.f32 %v5216, %v5229
    %5231 = vdwg.mxu0
    %5232 = vmatpush.bf16.msra.mxu0 %v4820
    %5233 = vmatpush.bf16.msra.mxu0 %v4816
    %5234 = vmatpush.bf16.msra.mxu0 %v4812
    %5235 = vmatpush.bf16.msra.mxu0 %v4808
    %5236 = vmatpush.bf16.msra.mxu0 %v4804
    %5237 = vmatpush.bf16.msra.mxu0 %v4800
    %5238 = vmatpush.bf16.msra.mxu0 %v4796
    %5239 = vmatpush.bf16.msra.mxu0 %v4792
    %5240 = vmatmul.bf16.gmra.mxu0 %v3626
    %v5241 = vpop.f32.mrf.mxu0
    %v5242 = vadd.f32 %v5228, %v5241
    %v5243 = vpop.f32.mrf.mxu0
    %v5244 = vadd.f32 %v5230, %v5243
    %5245 = vdwg.mxu0
    %5246 = vmatpush.bf16.msra.mxu0 %v4852
    %5247 = vmatpush.bf16.msra.mxu0 %v4848
    %5248 = vmatpush.bf16.msra.mxu0 %v4844
    %5249 = vmatpush.bf16.msra.mxu0 %v4840
    %5250 = vmatpush.bf16.msra.mxu0 %v4836
    %5251 = vmatpush.bf16.msra.mxu0 %v4832
    %5252 = vmatpush.bf16.msra.mxu0 %v4828
    %5253 = vmatpush.bf16.msra.mxu0 %v4824
    %5254 = vmatmul.bf16.gmra.mxu0 %v3627
    %v5255 = vpop.f32.mrf.mxu0
    %v5256 = vadd.f32 %v5242, %v5255
    %v5257 = vpop.f32.mrf.mxu0
    %v5258 = vadd.f32 %v5244, %v5257
    %5259 = vdwg.mxu0
    %5260 = vmatpush.bf16.msra.mxu0 %v4884
    %5261 = vmatpush.bf16.msra.mxu0 %v4880
    %5262 = vmatpush.bf16.msra.mxu0 %v4876
    %5263 = vmatpush.bf16.msra.mxu0 %v4872
    %5264 = vmatpush.bf16.msra.mxu0 %v4868
    %5265 = vmatpush.bf16.msra.mxu0 %v4864
    %5266 = vmatpush.bf16.msra.mxu0 %v4860
    %5267 = vmatpush.bf16.msra.mxu0 %v4856
    %5268 = vmatmul.bf16.gmra.mxu0 %v3628
    %v5269 = vpop.f32.mrf.mxu0
    %v5270 = vadd.f32 %v5256, %v5269
    %v5271 = vpop.f32.mrf.mxu0
    %v5272 = vadd.f32 %v5258, %v5271
    %5273 = vdwg.mxu0
    %5274 = vmatpush.bf16.msra.mxu0 %v4916
    %5275 = vmatpush.bf16.msra.mxu0 %v4912
    %5276 = vmatpush.bf16.msra.mxu0 %v4908
    %5277 = vmatpush.bf16.msra.mxu0 %v4904
    %5278 = vmatpush.bf16.msra.mxu0 %v4900
    %5279 = vmatpush.bf16.msra.mxu0 %v4896
    %5280 = vmatpush.bf16.msra.mxu0 %v4892
    %5281 = vmatpush.bf16.msra.mxu0 %v4888
    %5282 = vmatmul.bf16.gmra.mxu0 %v3629
    %v5283 = vpop.f32.mrf.mxu0
    %v5284 = vadd.f32 %v5270, %v5283
    %v5285 = vpop.f32.mrf.mxu0
    %v5286 = vadd.f32 %v5272, %v5285
    %5287 = vdwg.mxu0
    %5288 = vmatpush.bf16.msra.mxu0 %v4693
    %5289 = vmatpush.bf16.msra.mxu0 %v4689
    %5290 = vmatpush.bf16.msra.mxu0 %v4685
    %5291 = vmatpush.bf16.msra.mxu0 %v4681
    %5292 = vmatpush.bf16.msra.mxu0 %v4677
    %5293 = vmatpush.bf16.msra.mxu0 %v4673
    %5294 = vmatpush.bf16.msra.mxu0 %v4669
    %5295 = vmatpush.bf16.msra.mxu0 %v4665
    %5296 = vmatmul.bf16.gmra.mxu0 %v3622
    %v5297 = vpop.f32.mrf.mxu0
    %v5298 = vadd.f32 %v3889, %v5297
    %v5299 = vpop.f32.mrf.mxu0
    %v5300 = vadd.f32 %v3889, %v5299
    %5301 = vdwg.mxu0
    %5302 = vmatpush.bf16.msra.mxu0 %v4725
    %5303 = vmatpush.bf16.msra.mxu0 %v4721
    %5304 = vmatpush.bf16.msra.mxu0 %v4717
    %5305 = vmatpush.bf16.msra.mxu0 %v4713
    %5306 = vmatpush.bf16.msra.mxu0 %v4709
    %5307 = vmatpush.bf16.msra.mxu0 %v4705
    %5308 = vmatpush.bf16.msra.mxu0 %v4701
    %5309 = vmatpush.bf16.msra.mxu0 %v4697
    %5310 = vmatmul.bf16.gmra.mxu0 %v3623
    %v5311 = vpop.f32.mrf.mxu0
    %v5312 = vadd.f32 %v5298, %v5311
    %v5313 = vpop.f32.mrf.mxu0
    %v5314 = vadd.f32 %v5300, %v5313
    %5315 = vdwg.mxu0
    %5316 = vmatpush.bf16.msra.mxu0 %v4757
    %5317 = vmatpush.bf16.msra.mxu0 %v4753
    %5318 = vmatpush.bf16.msra.mxu0 %v4749
    %5319 = vmatpush.bf16.msra.mxu0 %v4745
    %5320 = vmatpush.bf16.msra.mxu0 %v4741
    %5321 = vmatpush.bf16.msra.mxu0 %v4737
    %5322 = vmatpush.bf16.msra.mxu0 %v4733
    %5323 = vmatpush.bf16.msra.mxu0 %v4729
    %5324 = vmatmul.bf16.gmra.mxu0 %v3624
    %v5325 = vpop.f32.mrf.mxu0
    %v5326 = vadd.f32 %v5312, %v5325
    %v5327 = vpop.f32.mrf.mxu0
    %v5328 = vadd.f32 %v5314, %v5327
    %5329 = vdwg.mxu0
    %5330 = vmatpush.bf16.msra.mxu0 %v4789
    %5331 = vmatpush.bf16.msra.mxu0 %v4785
    %5332 = vmatpush.bf16.msra.mxu0 %v4781
    %5333 = vmatpush.bf16.msra.mxu0 %v4777
    %5334 = vmatpush.bf16.msra.mxu0 %v4773
    %5335 = vmatpush.bf16.msra.mxu0 %v4769
    %5336 = vmatpush.bf16.msra.mxu0 %v4765
    %5337 = vmatpush.bf16.msra.mxu0 %v4761
    %5338 = vmatmul.bf16.gmra.mxu0 %v3625
    %v5339 = vpop.f32.mrf.mxu0
    %v5340 = vadd.f32 %v5326, %v5339
    %v5341 = vpop.f32.mrf.mxu0
    %v5342 = vadd.f32 %v5328, %v5341
    %5343 = vdwg.mxu0
    %5344 = vmatpush.bf16.msra.mxu0 %v4821
    %5345 = vmatpush.bf16.msra.mxu0 %v4817
    %5346 = vmatpush.bf16.msra.mxu0 %v4813
    %5347 = vmatpush.bf16.msra.mxu0 %v4809
    %5348 = vmatpush.bf16.msra.mxu0 %v4805
    %5349 = vmatpush.bf16.msra.mxu0 %v4801
    %5350 = vmatpush.bf16.msra.mxu0 %v4797
    %5351 = vmatpush.bf16.msra.mxu0 %v4793
    %5352 = vmatmul.bf16.gmra.mxu0 %v3626
    %v5353 = vpop.f32.mrf.mxu0
    %v5354 = vadd.f32 %v5340, %v5353
    %v5355 = vpop.f32.mrf.mxu0
    %v5356 = vadd.f32 %v5342, %v5355
    %5357 = vdwg.mxu0
    %5358 = vmatpush.bf16.msra.mxu0 %v4853
    %5359 = vmatpush.bf16.msra.mxu0 %v4849
    %5360 = vmatpush.bf16.msra.mxu0 %v4845
    %5361 = vmatpush.bf16.msra.mxu0 %v4841
    %5362 = vmatpush.bf16.msra.mxu0 %v4837
    %5363 = vmatpush.bf16.msra.mxu0 %v4833
    %5364 = vmatpush.bf16.msra.mxu0 %v4829
    %5365 = vmatpush.bf16.msra.mxu0 %v4825
    %5366 = vmatmul.bf16.gmra.mxu0 %v3627
    %v5367 = vpop.f32.mrf.mxu0
    %v5368 = vadd.f32 %v5354, %v5367
    %v5369 = vpop.f32.mrf.mxu0
    %v5370 = vadd.f32 %v5356, %v5369
    %5371 = vdwg.mxu0
    %5372 = vmatpush.bf16.msra.mxu0 %v4885
    %5373 = vmatpush.bf16.msra.mxu0 %v4881
    %5374 = vmatpush.bf16.msra.mxu0 %v4877
    %5375 = vmatpush.bf16.msra.mxu0 %v4873
    %5376 = vmatpush.bf16.msra.mxu0 %v4869
    %5377 = vmatpush.bf16.msra.mxu0 %v4865
    %5378 = vmatpush.bf16.msra.mxu0 %v4861
    %5379 = vmatpush.bf16.msra.mxu0 %v4857
    %5380 = vmatmul.bf16.gmra.mxu0 %v3628
    %v5381 = vpop.f32.mrf.mxu0
    %v5382 = vadd.f32 %v5368, %v5381
    %v5383 = vpop.f32.mrf.mxu0
    %v5384 = vadd.f32 %v5370, %v5383
    %5385 = vdwg.mxu0
    %5386 = vmatpush.bf16.msra.mxu0 %v4917
    %5387 = vmatpush.bf16.msra.mxu0 %v4913
    %5388 = vmatpush.bf16.msra.mxu0 %v4909
    %5389 = vmatpush.bf16.msra.mxu0 %v4905
    %5390 = vmatpush.bf16.msra.mxu0 %v4901
    %5391 = vmatpush.bf16.msra.mxu0 %v4897
    %5392 = vmatpush.bf16.msra.mxu0 %v4893
    %5393 = vmatpush.bf16.msra.mxu0 %v4889
    %5394 = vmatmul.bf16.gmra.mxu0 %v3629
    %v5395 = vpop.f32.mrf.mxu0
    %v5396 = vadd.f32 %v5382, %v5395
    %v5397 = vpop.f32.mrf.mxu0
    %v5398 = vadd.f32 %v5384, %v5397
    %5399 = vdwg.mxu0
    %5400 = vmatpush.bf16.msra.mxu0 %v4694
    %5401 = vmatpush.bf16.msra.mxu0 %v4690
    %5402 = vmatpush.bf16.msra.mxu0 %v4686
    %5403 = vmatpush.bf16.msra.mxu0 %v4682
    %5404 = vmatpush.bf16.msra.mxu0 %v4678
    %5405 = vmatpush.bf16.msra.mxu0 %v4674
    %5406 = vmatpush.bf16.msra.mxu0 %v4670
    %5407 = vmatpush.bf16.msra.mxu0 %v4666
    %5408 = vmatmul.bf16.gmra.mxu0 %v3622
    %v5409 = vpop.f32.mrf.mxu0
    %v5410 = vadd.f32 %v3890, %v5409
    %v5411 = vpop.f32.mrf.mxu0
    %v5412 = vadd.f32 %v3890, %v5411
    %5413 = vdwg.mxu0
    %5414 = vmatpush.bf16.msra.mxu0 %v4726
    %5415 = vmatpush.bf16.msra.mxu0 %v4722
    %5416 = vmatpush.bf16.msra.mxu0 %v4718
    %5417 = vmatpush.bf16.msra.mxu0 %v4714
    %5418 = vmatpush.bf16.msra.mxu0 %v4710
    %5419 = vmatpush.bf16.msra.mxu0 %v4706
    %5420 = vmatpush.bf16.msra.mxu0 %v4702
    %5421 = vmatpush.bf16.msra.mxu0 %v4698
    %5422 = vmatmul.bf16.gmra.mxu0 %v3623
    %v5423 = vpop.f32.mrf.mxu0
    %v5424 = vadd.f32 %v5410, %v5423
    %v5425 = vpop.f32.mrf.mxu0
    %v5426 = vadd.f32 %v5412, %v5425
    %5427 = vdwg.mxu0
    %5428 = vmatpush.bf16.msra.mxu0 %v4758
    %5429 = vmatpush.bf16.msra.mxu0 %v4754
    %5430 = vmatpush.bf16.msra.mxu0 %v4750
    %5431 = vmatpush.bf16.msra.mxu0 %v4746
    %5432 = vmatpush.bf16.msra.mxu0 %v4742
    %5433 = vmatpush.bf16.msra.mxu0 %v4738
    %5434 = vmatpush.bf16.msra.mxu0 %v4734
    %5435 = vmatpush.bf16.msra.mxu0 %v4730
    %5436 = vmatmul.bf16.gmra.mxu0 %v3624
    %v5437 = vpop.f32.mrf.mxu0
    %v5438 = vadd.f32 %v5424, %v5437
    %v5439 = vpop.f32.mrf.mxu0
    %v5440 = vadd.f32 %v5426, %v5439
    %5441 = vdwg.mxu0
    %5442 = vmatpush.bf16.msra.mxu0 %v4790
    %5443 = vmatpush.bf16.msra.mxu0 %v4786
    %5444 = vmatpush.bf16.msra.mxu0 %v4782
    %5445 = vmatpush.bf16.msra.mxu0 %v4778
    %5446 = vmatpush.bf16.msra.mxu0 %v4774
    %5447 = vmatpush.bf16.msra.mxu0 %v4770
    %5448 = vmatpush.bf16.msra.mxu0 %v4766
    %5449 = vmatpush.bf16.msra.mxu0 %v4762
    %5450 = vmatmul.bf16.gmra.mxu0 %v3625
    %v5451 = vpop.f32.mrf.mxu0
    %v5452 = vadd.f32 %v5438, %v5451
    %v5453 = vpop.f32.mrf.mxu0
    %v5454 = vadd.f32 %v5440, %v5453
    %5455 = vdwg.mxu0
    %5456 = vmatpush.bf16.msra.mxu0 %v4822
    %5457 = vmatpush.bf16.msra.mxu0 %v4818
    %5458 = vmatpush.bf16.msra.mxu0 %v4814
    %5459 = vmatpush.bf16.msra.mxu0 %v4810
    %5460 = vmatpush.bf16.msra.mxu0 %v4806
    %5461 = vmatpush.bf16.msra.mxu0 %v4802
    %5462 = vmatpush.bf16.msra.mxu0 %v4798
    %5463 = vmatpush.bf16.msra.mxu0 %v4794
    %5464 = vmatmul.bf16.gmra.mxu0 %v3626
    %v5465 = vpop.f32.mrf.mxu0
    %v5466 = vadd.f32 %v5452, %v5465
    %v5467 = vpop.f32.mrf.mxu0
    %v5468 = vadd.f32 %v5454, %v5467
    %5469 = vdwg.mxu0
    %5470 = vmatpush.bf16.msra.mxu0 %v4854
    %5471 = vmatpush.bf16.msra.mxu0 %v4850
    %5472 = vmatpush.bf16.msra.mxu0 %v4846
    %5473 = vmatpush.bf16.msra.mxu0 %v4842
    %5474 = vmatpush.bf16.msra.mxu0 %v4838
    %5475 = vmatpush.bf16.msra.mxu0 %v4834
    %5476 = vmatpush.bf16.msra.mxu0 %v4830
    %5477 = vmatpush.bf16.msra.mxu0 %v4826
    %5478 = vmatmul.bf16.gmra.mxu0 %v3627
    %v5479 = vpop.f32.mrf.mxu0
    %v5480 = vadd.f32 %v5466, %v5479
    %v5481 = vpop.f32.mrf.mxu0
    %v5482 = vadd.f32 %v5468, %v5481
    %5483 = vdwg.mxu0
    %5484 = vmatpush.bf16.msra.mxu0 %v4886
    %5485 = vmatpush.bf16.msra.mxu0 %v4882
    %5486 = vmatpush.bf16.msra.mxu0 %v4878
    %5487 = vmatpush.bf16.msra.mxu0 %v4874
    %5488 = vmatpush.bf16.msra.mxu0 %v4870
    %5489 = vmatpush.bf16.msra.mxu0 %v4866
    %5490 = vmatpush.bf16.msra.mxu0 %v4862
    %5491 = vmatpush.bf16.msra.mxu0 %v4858
    %5492 = vmatmul.bf16.gmra.mxu0 %v3628
    %v5493 = vpop.f32.mrf.mxu0
    %v5494 = vadd.f32 %v5480, %v5493
    %v5495 = vpop.f32.mrf.mxu0
    %v5496 = vadd.f32 %v5482, %v5495
    %5497 = vdwg.mxu0
    %5498 = vmatpush.bf16.msra.mxu0 %v4918
    %5499 = vmatpush.bf16.msra.mxu0 %v4914
    %5500 = vmatpush.bf16.msra.mxu0 %v4910
    %5501 = vmatpush.bf16.msra.mxu0 %v4906
    %5502 = vmatpush.bf16.msra.mxu0 %v4902
    %5503 = vmatpush.bf16.msra.mxu0 %v4898
    %5504 = vmatpush.bf16.msra.mxu0 %v4894
    %5505 = vmatpush.bf16.msra.mxu0 %v4890
    %5506 = vmatmul.bf16.gmra.mxu0 %v3629
    %v5507 = vpop.f32.mrf.mxu0
    %v5508 = vadd.f32 %v5494, %v5507
    %v5509 = vpop.f32.mrf.mxu0
    %v5510 = vadd.f32 %v5496, %v5509
    %5511 = vdwg.mxu0
    %5512 = vmatpush.bf16.msra.mxu0 %v4695
    %5513 = vmatpush.bf16.msra.mxu0 %v4691
    %5514 = vmatpush.bf16.msra.mxu0 %v4687
    %5515 = vmatpush.bf16.msra.mxu0 %v4683
    %5516 = vmatpush.bf16.msra.mxu0 %v4679
    %5517 = vmatpush.bf16.msra.mxu0 %v4675
    %5518 = vmatpush.bf16.msra.mxu0 %v4671
    %5519 = vmatpush.bf16.msra.mxu0 %v4667
    %5520 = vmatmul.bf16.gmra.mxu0 %v3622
    %v5521 = vpop.f32.mrf.mxu0
    %v5522 = vadd.f32 %v3891, %v5521
    %v5523 = vpop.f32.mrf.mxu0
    %v5524 = vadd.f32 %v3891, %v5523
    %5525 = vdwg.mxu0
    %5526 = vmatpush.bf16.msra.mxu0 %v4727
    %5527 = vmatpush.bf16.msra.mxu0 %v4723
    %5528 = vmatpush.bf16.msra.mxu0 %v4719
    %5529 = vmatpush.bf16.msra.mxu0 %v4715
    %5530 = vmatpush.bf16.msra.mxu0 %v4711
    %5531 = vmatpush.bf16.msra.mxu0 %v4707
    %5532 = vmatpush.bf16.msra.mxu0 %v4703
    %5533 = vmatpush.bf16.msra.mxu0 %v4699
    %5534 = vmatmul.bf16.gmra.mxu0 %v3623
    %v5535 = vpop.f32.mrf.mxu0
    %v5536 = vadd.f32 %v5522, %v5535
    %v5537 = vpop.f32.mrf.mxu0
    %v5538 = vadd.f32 %v5524, %v5537
    %5539 = vdwg.mxu0
    %5540 = vmatpush.bf16.msra.mxu0 %v4759
    %5541 = vmatpush.bf16.msra.mxu0 %v4755
    %5542 = vmatpush.bf16.msra.mxu0 %v4751
    %5543 = vmatpush.bf16.msra.mxu0 %v4747
    %5544 = vmatpush.bf16.msra.mxu0 %v4743
    %5545 = vmatpush.bf16.msra.mxu0 %v4739
    %5546 = vmatpush.bf16.msra.mxu0 %v4735
    %5547 = vmatpush.bf16.msra.mxu0 %v4731
    %5548 = vmatmul.bf16.gmra.mxu0 %v3624
    %v5549 = vpop.f32.mrf.mxu0
    %v5550 = vadd.f32 %v5536, %v5549
    %v5551 = vpop.f32.mrf.mxu0
    %v5552 = vadd.f32 %v5538, %v5551
    %5553 = vdwg.mxu0
    %5554 = vmatpush.bf16.msra.mxu0 %v4791
    %5555 = vmatpush.bf16.msra.mxu0 %v4787
    %5556 = vmatpush.bf16.msra.mxu0 %v4783
    %5557 = vmatpush.bf16.msra.mxu0 %v4779
    %5558 = vmatpush.bf16.msra.mxu0 %v4775
    %5559 = vmatpush.bf16.msra.mxu0 %v4771
    %5560 = vmatpush.bf16.msra.mxu0 %v4767
    %5561 = vmatpush.bf16.msra.mxu0 %v4763
    %5562 = vmatmul.bf16.gmra.mxu0 %v3625
    %v5563 = vpop.f32.mrf.mxu0
    %v5564 = vadd.f32 %v5550, %v5563
    %v5565 = vpop.f32.mrf.mxu0
    %v5566 = vadd.f32 %v5552, %v5565
    %5567 = vdwg.mxu0
    %5568 = vmatpush.bf16.msra.mxu0 %v4823
    %5569 = vmatpush.bf16.msra.mxu0 %v4819
    %5570 = vmatpush.bf16.msra.mxu0 %v4815
    %5571 = vmatpush.bf16.msra.mxu0 %v4811
    %5572 = vmatpush.bf16.msra.mxu0 %v4807
    %5573 = vmatpush.bf16.msra.mxu0 %v4803
    %5574 = vmatpush.bf16.msra.mxu0 %v4799
    %5575 = vmatpush.bf16.msra.mxu0 %v4795
    %5576 = vmatmul.bf16.gmra.mxu0 %v3626
    %v5577 = vpop.f32.mrf.mxu0
    %v5578 = vadd.f32 %v5564, %v5577
    %v5579 = vpop.f32.mrf.mxu0
    %v5580 = vadd.f32 %v5566, %v5579
    %5581 = vdwg.mxu0
    %5582 = vmatpush.bf16.msra.mxu0 %v4855
    %5583 = vmatpush.bf16.msra.mxu0 %v4851
    %5584 = vmatpush.bf16.msra.mxu0 %v4847
    %5585 = vmatpush.bf16.msra.mxu0 %v4843
    %5586 = vmatpush.bf16.msra.mxu0 %v4839
    %5587 = vmatpush.bf16.msra.mxu0 %v4835
    %5588 = vmatpush.bf16.msra.mxu0 %v4831
    %5589 = vmatpush.bf16.msra.mxu0 %v4827
    %5590 = vmatmul.bf16.gmra.mxu0 %v3627
    %v5591 = vpop.f32.mrf.mxu0
    %v5592 = vadd.f32 %v5578, %v5591
    %v5593 = vpop.f32.mrf.mxu0
    %v5594 = vadd.f32 %v5580, %v5593
    %5595 = vdwg.mxu0
    %5596 = vmatpush.bf16.msra.mxu0 %v4887
    %5597 = vmatpush.bf16.msra.mxu0 %v4883
    %5598 = vmatpush.bf16.msra.mxu0 %v4879
    %5599 = vmatpush.bf16.msra.mxu0 %v4875
    %5600 = vmatpush.bf16.msra.mxu0 %v4871
    %5601 = vmatpush.bf16.msra.mxu0 %v4867
    %5602 = vmatpush.bf16.msra.mxu0 %v4863
    %5603 = vmatpush.bf16.msra.mxu0 %v4859
    %5604 = vmatmul.bf16.gmra.mxu0 %v3628
    %v5605 = vpop.f32.mrf.mxu0
    %v5606 = vadd.f32 %v5592, %v5605
    %v5607 = vpop.f32.mrf.mxu0
    %v5608 = vadd.f32 %v5594, %v5607
    %5609 = vdwg.mxu0
    %5610 = vmatpush.bf16.msra.mxu0 %v4919
    %5611 = vmatpush.bf16.msra.mxu0 %v4915
    %5612 = vmatpush.bf16.msra.mxu0 %v4911
    %5613 = vmatpush.bf16.msra.mxu0 %v4907
    %5614 = vmatpush.bf16.msra.mxu0 %v4903
    %5615 = vmatpush.bf16.msra.mxu0 %v4899
    %5616 = vmatpush.bf16.msra.mxu0 %v4895
    %5617 = vmatpush.bf16.msra.mxu0 %v4891
    %5618 = vmatmul.bf16.gmra.mxu0 %v3629
    %v5619 = vpop.f32.mrf.mxu0
    %v5620 = vadd.f32 %v5606, %v5619
    %v5621 = vpop.f32.mrf.mxu0
    %v5622 = vadd.f32 %v5608, %v5621
    %5623 = vdwg.mxu0
    %vm5624 = vcmp.gt.f32.partialorder %v5284, 0.0
    %vm5625 = vcmp.gt.f32.partialorder %v5396, 0.0
    %vm5626 = vcmp.gt.f32.partialorder %v5508, 0.0
    %vm5627 = vcmp.gt.f32.partialorder %v5620, 0.0
    %vm5628 = vcmp.gt.f32.partialorder %v5286, 0.0
    %vm5629 = vcmp.gt.f32.partialorder %v5398, 0.0
    %vm5630 = vcmp.gt.f32.partialorder %v5510, 0.0
    %vm5631 = vcmp.gt.f32.partialorder %v5622, 0.0
    %v5632 = vmul.f32 %v5284, 0.2
    %v5633 = vmul.f32 %v5396, 0.2
    %v5634 = vmul.f32 %v5508, 0.2
    %v5635 = vmul.f32 %v5620, 0.2
    %v5636 = vmul.f32 %v5286, 0.2
    %v5637 = vmul.f32 %v5398, 0.2
    %v5638 = vmul.f32 %v5510, 0.2
    %v5639 = vmul.f32 %v5622, 0.2
    %v5640 = vsel %vm5624, %v5284, %v5632
    %v5641 = vsel %vm5625, %v5396, %v5633
    %v5642 = vsel %vm5626, %v5508, %v5634
    %v5643 = vsel %vm5627, %v5620, %v5635
    %v5644 = vsel %vm5628, %v5286, %v5636
    %v5645 = vsel %vm5629, %v5398, %v5637
    %v5646 = vsel %vm5630, %v5510, %v5638
    %v5647 = vsel %vm5631, %v5622, %v5639
    %v5648 = vpack.c.bf16 %v5644, %v5640
    %v5649 = vpack.c.bf16 %v5645, %v5641
    %v5650 = vpack.c.bf16 %v5646, %v5642
    %v5651 = vpack.c.bf16 %v5647, %v5643
    %v5652 = vld [vmem:[#allocation13] sm:$0xff]
    %v5653 = vld [vmem:[#allocation13 + $0x8] sm:$0xff]
    %v5654 = vld [vmem:[#allocation13 + $0x10] sm:$0xff]
    %v5655 = vld [vmem:[#allocation13 + $0x18] sm:$0xff]
    %v5656 = vld [vmem:[#allocation13 + $0x20] sm:$0xff]
    %v5657 = vld [vmem:[#allocation13 + $0x28] sm:$0xff]
    %v5658 = vld [vmem:[#allocation13 + $0x30] sm:$0xff]
    %v5659 = vld [vmem:[#allocation13 + $0x38] sm:$0xff]
    %v5660 = vld [vmem:[#allocation13 + $0x40] sm:$0xff]
    %v5661 = vld [vmem:[#allocation13 + $0x48] sm:$0xff]
    %v5662 = vld [vmem:[#allocation13 + $0x50] sm:$0xff]
    %v5663 = vld [vmem:[#allocation13 + $0x58] sm:$0xff]
    %v5664 = vld [vmem:[#allocation13 + $0x60] sm:$0xff]
    %v5665 = vld [vmem:[#allocation13 + $0x68] sm:$0xff]
    %v5666 = vld [vmem:[#allocation13 + $0x70] sm:$0xff]
    %v5667 = vld [vmem:[#allocation13 + $0x78] sm:$0xff]
    %v5668 = vld [vmem:[#allocation13 + $0x80] sm:$0xff]
    %v5669 = vld [vmem:[#allocation13 + $0x88] sm:$0xff]
    %v5670 = vld [vmem:[#allocation13 + $0x90] sm:$0xff]
    %v5671 = vld [vmem:[#allocation13 + $0x98] sm:$0xff]
    %v5672 = vld [vmem:[#allocation13 + $0xa0] sm:$0xff]
    %v5673 = vld [vmem:[#allocation13 + $0xa8] sm:$0xff]
    %v5674 = vld [vmem:[#allocation13 + $0xb0] sm:$0xff]
    %v5675 = vld [vmem:[#allocation13 + $0xb8] sm:$0xff]
    %v5676 = vld [vmem:[#allocation13 + $0xc0] sm:$0xff]
    %v5677 = vld [vmem:[#allocation13 + $0xc8] sm:$0xff]
    %v5678 = vld [vmem:[#allocation13 + $0xd0] sm:$0xff]
    %v5679 = vld [vmem:[#allocation13 + $0xd8] sm:$0xff]
    %v5680 = vld [vmem:[#allocation13 + $0xe0] sm:$0xff]
    %v5681 = vld [vmem:[#allocation13 + $0xe8] sm:$0xff]
    %v5682 = vld [vmem:[#allocation13 + $0xf0] sm:$0xff]
    %v5683 = vld [vmem:[#allocation13 + $0xf8] sm:$0xff]
    %v5684 = vld [vmem:[#allocation13 + $0x100] sm:$0xff]
    %v5685 = vld [vmem:[#allocation13 + $0x108] sm:$0xff]
    %v5686 = vld [vmem:[#allocation13 + $0x110] sm:$0xff]
    %v5687 = vld [vmem:[#allocation13 + $0x118] sm:$0xff]
    %v5688 = vld [vmem:[#allocation13 + $0x120] sm:$0xff]
    %v5689 = vld [vmem:[#allocation13 + $0x128] sm:$0xff]
    %v5690 = vld [vmem:[#allocation13 + $0x130] sm:$0xff]
    %v5691 = vld [vmem:[#allocation13 + $0x138] sm:$0xff]
    %v5692 = vld [vmem:[#allocation13 + $0x140] sm:$0xff]
    %v5693 = vld [vmem:[#allocation13 + $0x148] sm:$0xff]
    %v5694 = vld [vmem:[#allocation13 + $0x150] sm:$0xff]
    %v5695 = vld [vmem:[#allocation13 + $0x158] sm:$0xff]
    %v5696 = vld [vmem:[#allocation13 + $0x160] sm:$0xff]
    %v5697 = vld [vmem:[#allocation13 + $0x168] sm:$0xff]
    %v5698 = vld [vmem:[#allocation13 + $0x170] sm:$0xff]
    %v5699 = vld [vmem:[#allocation13 + $0x178] sm:$0xff]
    %v5700 = vld [vmem:[#allocation13 + $0x180] sm:$0xff]
    %v5701 = vld [vmem:[#allocation13 + $0x188] sm:$0xff]
    %v5702 = vld [vmem:[#allocation13 + $0x190] sm:$0xff]
    %v5703 = vld [vmem:[#allocation13 + $0x198] sm:$0xff]
    %v5704 = vld [vmem:[#allocation13 + $0x1a0] sm:$0xff]
    %v5705 = vld [vmem:[#allocation13 + $0x1a8] sm:$0xff]
    %v5706 = vld [vmem:[#allocation13 + $0x1b0] sm:$0xff]
    %v5707 = vld [vmem:[#allocation13 + $0x1b8] sm:$0xff]
    %v5708 = vld [vmem:[#allocation13 + $0x1c0] sm:$0xff]
    %v5709 = vld [vmem:[#allocation13 + $0x1c8] sm:$0xff]
    %v5710 = vld [vmem:[#allocation13 + $0x1d0] sm:$0xff]
    %v5711 = vld [vmem:[#allocation13 + $0x1d8] sm:$0xff]
    %v5712 = vld [vmem:[#allocation13 + $0x1e0] sm:$0xff]
    %v5713 = vld [vmem:[#allocation13 + $0x1e8] sm:$0xff]
    %v5714 = vld [vmem:[#allocation13 + $0x1f0] sm:$0xff]
    %v5715 = vld [vmem:[#allocation13 + $0x1f8] sm:$0xff]
    %v5716 = vld [vmem:[#allocation15] sm:$0x3]
    %v5718 = vperm.slane %v5716, 0
    %v5719 = vperm.slane %v5716, 1
    %v5786 = vunpack.c.l.b16 %v5652
    %v5787 = vunpack.c.h.b16 %v5652
    %v5788 = vunpack.c.l.b16 %v5653
    %v5789 = vunpack.c.h.b16 %v5653
    %v5790 = vunpack.c.l.b16 %v5654
    %v5791 = vunpack.c.h.b16 %v5654
    %v5792 = vunpack.c.l.b16 %v5655
    %v5793 = vunpack.c.h.b16 %v5655
    %v5794 = vunpack.c.l.b16 %v5656
    %v5795 = vunpack.c.h.b16 %v5656
    %v5796 = vunpack.c.l.b16 %v5657
    %v5797 = vunpack.c.h.b16 %v5657
    %v5798 = vunpack.c.l.b16 %v5658
    %v5799 = vunpack.c.h.b16 %v5658
    %v5800 = vunpack.c.l.b16 %v5659
    %v5801 = vunpack.c.h.b16 %v5659
    %v5802 = vunpack.c.l.b16 %v5660
    %v5803 = vunpack.c.h.b16 %v5660
    %v5804 = vunpack.c.l.b16 %v5661
    %v5805 = vunpack.c.h.b16 %v5661
    %v5806 = vunpack.c.l.b16 %v5662
    %v5807 = vunpack.c.h.b16 %v5662
    %v5808 = vunpack.c.l.b16 %v5663
    %v5809 = vunpack.c.h.b16 %v5663
    %v5810 = vunpack.c.l.b16 %v5664
    %v5811 = vunpack.c.h.b16 %v5664
    %v5812 = vunpack.c.l.b16 %v5665
    %v5813 = vunpack.c.h.b16 %v5665
    %v5814 = vunpack.c.l.b16 %v5666
    %v5815 = vunpack.c.h.b16 %v5666
    %v5816 = vunpack.c.l.b16 %v5667
    %v5817 = vunpack.c.h.b16 %v5667
    %v5818 = vunpack.c.l.b16 %v5668
    %v5819 = vunpack.c.h.b16 %v5668
    %v5820 = vunpack.c.l.b16 %v5669
    %v5821 = vunpack.c.h.b16 %v5669
    %v5822 = vunpack.c.l.b16 %v5670
    %v5823 = vunpack.c.h.b16 %v5670
    %v5824 = vunpack.c.l.b16 %v5671
    %v5825 = vunpack.c.h.b16 %v5671
    %v5826 = vunpack.c.l.b16 %v5672
    %v5827 = vunpack.c.h.b16 %v5672
    %v5828 = vunpack.c.l.b16 %v5673
    %v5829 = vunpack.c.h.b16 %v5673
    %v5830 = vunpack.c.l.b16 %v5674
    %v5831 = vunpack.c.h.b16 %v5674
    %v5832 = vunpack.c.l.b16 %v5675
    %v5833 = vunpack.c.h.b16 %v5675
    %v5834 = vunpack.c.l.b16 %v5676
    %v5835 = vunpack.c.h.b16 %v5676
    %v5836 = vunpack.c.l.b16 %v5677
    %v5837 = vunpack.c.h.b16 %v5677
    %v5838 = vunpack.c.l.b16 %v5678
    %v5839 = vunpack.c.h.b16 %v5678
    %v5840 = vunpack.c.l.b16 %v5679
    %v5841 = vunpack.c.h.b16 %v5679
    %v5842 = vunpack.c.l.b16 %v5680
    %v5843 = vunpack.c.h.b16 %v5680
    %v5844 = vunpack.c.l.b16 %v5681
    %v5845 = vunpack.c.h.b16 %v5681
    %v5846 = vunpack.c.l.b16 %v5682
    %v5847 = vunpack.c.h.b16 %v5682
    %v5848 = vunpack.c.l.b16 %v5683
    %v5849 = vunpack.c.h.b16 %v5683
    %v5850 = vunpack.c.l.b16 %v5684
    %v5851 = vunpack.c.h.b16 %v5684
    %v5852 = vunpack.c.l.b16 %v5685
    %v5853 = vunpack.c.h.b16 %v5685
    %v5854 = vunpack.c.l.b16 %v5686
    %v5855 = vunpack.c.h.b16 %v5686
    %v5856 = vunpack.c.l.b16 %v5687
    %v5857 = vunpack.c.h.b16 %v5687
    %v5858 = vunpack.c.l.b16 %v5688
    %v5859 = vunpack.c.h.b16 %v5688
    %v5860 = vunpack.c.l.b16 %v5689
    %v5861 = vunpack.c.h.b16 %v5689
    %v5862 = vunpack.c.l.b16 %v5690
    %v5863 = vunpack.c.h.b16 %v5690
    %v5864 = vunpack.c.l.b16 %v5691
    %v5865 = vunpack.c.h.b16 %v5691
    %v5866 = vunpack.c.l.b16 %v5692
    %v5867 = vunpack.c.h.b16 %v5692
    %v5868 = vunpack.c.l.b16 %v5693
    %v5869 = vunpack.c.h.b16 %v5693
    %v5870 = vunpack.c.l.b16 %v5694
    %v5871 = vunpack.c.h.b16 %v5694
    %v5872 = vunpack.c.l.b16 %v5695
    %v5873 = vunpack.c.h.b16 %v5695
    %v5874 = vunpack.c.l.b16 %v5696
    %v5875 = vunpack.c.h.b16 %v5696
    %v5876 = vunpack.c.l.b16 %v5697
    %v5877 = vunpack.c.h.b16 %v5697
    %v5878 = vunpack.c.l.b16 %v5698
    %v5879 = vunpack.c.h.b16 %v5698
    %v5880 = vunpack.c.l.b16 %v5699
    %v5881 = vunpack.c.h.b16 %v5699
    %v5882 = vunpack.c.l.b16 %v5700
    %v5883 = vunpack.c.h.b16 %v5700
    %v5884 = vunpack.c.l.b16 %v5701
    %v5885 = vunpack.c.h.b16 %v5701
    %v5886 = vunpack.c.l.b16 %v5702
    %v5887 = vunpack.c.h.b16 %v5702
    %v5888 = vunpack.c.l.b16 %v5703
    %v5889 = vunpack.c.h.b16 %v5703
    %v5890 = vunpack.c.l.b16 %v5704
    %v5891 = vunpack.c.h.b16 %v5704
    %v5892 = vunpack.c.l.b16 %v5705
    %v5893 = vunpack.c.h.b16 %v5705
    %v5894 = vunpack.c.l.b16 %v5706
    %v5895 = vunpack.c.h.b16 %v5706
    %v5896 = vunpack.c.l.b16 %v5707
    %v5897 = vunpack.c.h.b16 %v5707
    %v5898 = vunpack.c.l.b16 %v5708
    %v5899 = vunpack.c.h.b16 %v5708
    %v5900 = vunpack.c.l.b16 %v5709
    %v5901 = vunpack.c.h.b16 %v5709
    %v5902 = vunpack.c.l.b16 %v5710
    %v5903 = vunpack.c.h.b16 %v5710
    %v5904 = vunpack.c.l.b16 %v5711
    %v5905 = vunpack.c.h.b16 %v5711
    %v5906 = vunpack.c.l.b16 %v5712
    %v5907 = vunpack.c.h.b16 %v5712
    %v5908 = vunpack.c.l.b16 %v5713
    %v5909 = vunpack.c.h.b16 %v5713
    %v5910 = vunpack.c.l.b16 %v5714
    %v5911 = vunpack.c.h.b16 %v5714
    %v5912 = vunpack.c.l.b16 %v5715
    %v5913 = vunpack.c.h.b16 %v5715
    %v5914 = vpack.c.b16 %v5788, %v5786
    %v5915 = vpack.c.b16 %v5789, %v5787
    %v5916 = vpack.c.b16 %v5792, %v5790
    %v5917 = vpack.c.b16 %v5793, %v5791
    %v5918 = vpack.c.b16 %v5796, %v5794
    %v5919 = vpack.c.b16 %v5797, %v5795
    %v5920 = vpack.c.b16 %v5800, %v5798
    %v5921 = vpack.c.b16 %v5801, %v5799
    %v5922 = vpack.c.b16 %v5804, %v5802
    %v5923 = vpack.c.b16 %v5805, %v5803
    %v5924 = vpack.c.b16 %v5808, %v5806
    %v5925 = vpack.c.b16 %v5809, %v5807
    %v5926 = vpack.c.b16 %v5812, %v5810
    %v5927 = vpack.c.b16 %v5813, %v5811
    %v5928 = vpack.c.b16 %v5816, %v5814
    %v5929 = vpack.c.b16 %v5817, %v5815
    %v5930 = vpack.c.b16 %v5820, %v5818
    %v5931 = vpack.c.b16 %v5821, %v5819
    %v5932 = vpack.c.b16 %v5824, %v5822
    %v5933 = vpack.c.b16 %v5825, %v5823
    %v5934 = vpack.c.b16 %v5828, %v5826
    %v5935 = vpack.c.b16 %v5829, %v5827
    %v5936 = vpack.c.b16 %v5832, %v5830
    %v5937 = vpack.c.b16 %v5833, %v5831
    %v5938 = vpack.c.b16 %v5836, %v5834
    %v5939 = vpack.c.b16 %v5837, %v5835
    %v5940 = vpack.c.b16 %v5840, %v5838
    %v5941 = vpack.c.b16 %v5841, %v5839
    %v5942 = vpack.c.b16 %v5844, %v5842
    %v5943 = vpack.c.b16 %v5845, %v5843
    %v5944 = vpack.c.b16 %v5848, %v5846
    %v5945 = vpack.c.b16 %v5849, %v5847
    %v5946 = vpack.c.b16 %v5852, %v5850
    %v5947 = vpack.c.b16 %v5853, %v5851
    %v5948 = vpack.c.b16 %v5856, %v5854
    %v5949 = vpack.c.b16 %v5857, %v5855
    %v5950 = vpack.c.b16 %v5860, %v5858
    %v5951 = vpack.c.b16 %v5861, %v5859
    %v5952 = vpack.c.b16 %v5864, %v5862
    %v5953 = vpack.c.b16 %v5865, %v5863
    %v5954 = vpack.c.b16 %v5868, %v5866
    %v5955 = vpack.c.b16 %v5869, %v5867
    %v5956 = vpack.c.b16 %v5872, %v5870
    %v5957 = vpack.c.b16 %v5873, %v5871
    %v5958 = vpack.c.b16 %v5876, %v5874
    %v5959 = vpack.c.b16 %v5877, %v5875
    %v5960 = vpack.c.b16 %v5880, %v5878
    %v5961 = vpack.c.b16 %v5881, %v5879
    %v5962 = vpack.c.b16 %v5884, %v5882
    %v5963 = vpack.c.b16 %v5885, %v5883
    %v5964 = vpack.c.b16 %v5888, %v5886
    %v5965 = vpack.c.b16 %v5889, %v5887
    %v5966 = vpack.c.b16 %v5892, %v5890
    %v5967 = vpack.c.b16 %v5893, %v5891
    %v5968 = vpack.c.b16 %v5896, %v5894
    %v5969 = vpack.c.b16 %v5897, %v5895
    %v5970 = vpack.c.b16 %v5900, %v5898
    %v5971 = vpack.c.b16 %v5901, %v5899
    %v5972 = vpack.c.b16 %v5904, %v5902
    %v5973 = vpack.c.b16 %v5905, %v5903
    %v5974 = vpack.c.b16 %v5908, %v5906
    %v5975 = vpack.c.b16 %v5909, %v5907
    %v5976 = vpack.c.b16 %v5912, %v5910
    %v5977 = vpack.c.b16 %v5913, %v5911
    %6042 = vmatpush.bf16.msra.mxu0 %v5928
    %6043 = vmatpush.bf16.msra.mxu0 %v5926
    %6044 = vmatpush.bf16.msra.mxu0 %v5924
    %6045 = vmatpush.bf16.msra.mxu0 %v5922
    %6046 = vmatpush.bf16.msra.mxu0 %v5920
    %6047 = vmatpush.bf16.msra.mxu0 %v5918
    %6048 = vmatpush.bf16.msra.mxu0 %v5916
    %6049 = vmatpush.bf16.msra.mxu0 %v5914
    %6050 = vmatmul.bf16.gmra.mxu0 %v5648
    %v6051 = vpop.f32.mrf.mxu0
    %v6052 = vadd.f32 %v5718, %v6051
    %v6053 = vpop.f32.mrf.mxu0
    %v6054 = vadd.f32 %v5718, %v6053
    %6055 = vdwg.mxu0
    %6056 = vmatpush.bf16.msra.mxu0 %v5944
    %6057 = vmatpush.bf16.msra.mxu0 %v5942
    %6058 = vmatpush.bf16.msra.mxu0 %v5940
    %6059 = vmatpush.bf16.msra.mxu0 %v5938
    %6060 = vmatpush.bf16.msra.mxu0 %v5936
    %6061 = vmatpush.bf16.msra.mxu0 %v5934
    %6062 = vmatpush.bf16.msra.mxu0 %v5932
    %6063 = vmatpush.bf16.msra.mxu0 %v5930
    %6064 = vmatmul.bf16.gmra.mxu0 %v5649
    %v6065 = vpop.f32.mrf.mxu0
    %v6066 = vadd.f32 %v6052, %v6065
    %v6067 = vpop.f32.mrf.mxu0
    %v6068 = vadd.f32 %v6054, %v6067
    %6069 = vdwg.mxu0
    %6070 = vmatpush.bf16.msra.mxu0 %v5960
    %6071 = vmatpush.bf16.msra.mxu0 %v5958
    %6072 = vmatpush.bf16.msra.mxu0 %v5956
    %6073 = vmatpush.bf16.msra.mxu0 %v5954
    %6074 = vmatpush.bf16.msra.mxu0 %v5952
    %6075 = vmatpush.bf16.msra.mxu0 %v5950
    %6076 = vmatpush.bf16.msra.mxu0 %v5948
    %6077 = vmatpush.bf16.msra.mxu0 %v5946
    %6078 = vmatmul.bf16.gmra.mxu0 %v5650
    %v6079 = vpop.f32.mrf.mxu0
    %v6080 = vadd.f32 %v6066, %v6079
    %v6081 = vpop.f32.mrf.mxu0
    %v6082 = vadd.f32 %v6068, %v6081
    %6083 = vdwg.mxu0
    %6084 = vmatpush.bf16.msra.mxu0 %v5976
    %6085 = vmatpush.bf16.msra.mxu0 %v5974
    %6086 = vmatpush.bf16.msra.mxu0 %v5972
    %6087 = vmatpush.bf16.msra.mxu0 %v5970
    %6088 = vmatpush.bf16.msra.mxu0 %v5968
    %6089 = vmatpush.bf16.msra.mxu0 %v5966
    %6090 = vmatpush.bf16.msra.mxu0 %v5964
    %6091 = vmatpush.bf16.msra.mxu0 %v5962
    %6092 = vmatmul.bf16.gmra.mxu0 %v5651
    %v6093 = vpop.f32.mrf.mxu0
    %v6094 = vadd.f32 %v6080, %v6093
    %v6095 = vpop.f32.mrf.mxu0
    %v6096 = vadd.f32 %v6082, %v6095
    %6097 = vdwg.mxu0
    %6098 = vmatpush.bf16.msra.mxu0 %v5929
    %6099 = vmatpush.bf16.msra.mxu0 %v5927
    %6100 = vmatpush.bf16.msra.mxu0 %v5925
    %6101 = vmatpush.bf16.msra.mxu0 %v5923
    %6102 = vmatpush.bf16.msra.mxu0 %v5921
    %6103 = vmatpush.bf16.msra.mxu0 %v5919
    %6104 = vmatpush.bf16.msra.mxu0 %v5917
    %6105 = vmatpush.bf16.msra.mxu0 %v5915
    %6106 = vmatmul.bf16.gmra.mxu0 %v5648
    %v6107 = vpop.f32.mrf.mxu0
    %v6108 = vadd.f32 %v5719, %v6107
    %v6109 = vpop.f32.mrf.mxu0
    %v6110 = vadd.f32 %v5719, %v6109
    %6111 = vdwg.mxu0
    %6112 = vmatpush.bf16.msra.mxu0 %v5945
    %6113 = vmatpush.bf16.msra.mxu0 %v5943
    %6114 = vmatpush.bf16.msra.mxu0 %v5941
    %6115 = vmatpush.bf16.msra.mxu0 %v5939
    %6116 = vmatpush.bf16.msra.mxu0 %v5937
    %6117 = vmatpush.bf16.msra.mxu0 %v5935
    %6118 = vmatpush.bf16.msra.mxu0 %v5933
    %6119 = vmatpush.bf16.msra.mxu0 %v5931
    %6120 = vmatmul.bf16.gmra.mxu0 %v5649
    %v6121 = vpop.f32.mrf.mxu0
    %v6122 = vadd.f32 %v6108, %v6121
    %v6123 = vpop.f32.mrf.mxu0
    %v6124 = vadd.f32 %v6110, %v6123
    %6125 = vdwg.mxu0
    %6126 = vmatpush.bf16.msra.mxu0 %v5961
    %6127 = vmatpush.bf16.msra.mxu0 %v5959
    %6128 = vmatpush.bf16.msra.mxu0 %v5957
    %6129 = vmatpush.bf16.msra.mxu0 %v5955
    %6130 = vmatpush.bf16.msra.mxu0 %v5953
    %6131 = vmatpush.bf16.msra.mxu0 %v5951
    %6132 = vmatpush.bf16.msra.mxu0 %v5949
    %6133 = vmatpush.bf16.msra.mxu0 %v5947
    %6134 = vmatmul.bf16.gmra.mxu0 %v5650
    %v6135 = vpop.f32.mrf.mxu0
    %v6136 = vadd.f32 %v6122, %v6135
    %v6137 = vpop.f32.mrf.mxu0
    %v6138 = vadd.f32 %v6124, %v6137
    %6139 = vdwg.mxu0
    %6140 = vmatpush.bf16.msra.mxu0 %v5977
    %6141 = vmatpush.bf16.msra.mxu0 %v5975
    %6142 = vmatpush.bf16.msra.mxu0 %v5973
    %6143 = vmatpush.bf16.msra.mxu0 %v5971
    %6144 = vmatpush.bf16.msra.mxu0 %v5969
    %6145 = vmatpush.bf16.msra.mxu0 %v5967
    %6146 = vmatpush.bf16.msra.mxu0 %v5965
    %6147 = vmatpush.bf16.msra.mxu0 %v5963
    %6148 = vmatmul.bf16.gmra.mxu0 %v5651
    %v6149 = vpop.f32.mrf.mxu0
    %v6150 = vadd.f32 %v6136, %v6149
    %v6151 = vpop.f32.mrf.mxu0
    %v6152 = vadd.f32 %v6138, %v6151
    %6153 = vdwg.mxu0
    %vm6154 = vcmp.gt.f32.partialorder %v6094, 0.0
    %vm6155 = vcmp.gt.f32.partialorder %v6150, 0.0
    %vm6156 = vcmp.gt.f32.partialorder %v6096, 0.0
    %vm6157 = vcmp.gt.f32.partialorder %v6152, 0.0
    %v6158 = vmul.f32 %v6094, 0.2
    %v6159 = vmul.f32 %v6150, 0.2
    %v6160 = vmul.f32 %v6096, 0.2
    %v6161 = vmul.f32 %v6152, 0.2
    %v6162 = vsel %vm6154, %v6094, %v6158
    %v6163 = vsel %vm6155, %v6150, %v6159
    %v6164 = vsel %vm6156, %v6096, %v6160
    %v6165 = vsel %vm6157, %v6152, %v6161
    %v6166 = vpack.c.bf16 %v6164, %v6162
    %v6167 = vpack.c.bf16 %v6165, %v6163
    %v6168 = vld [vmem:[%s9] sm:$0xf]
    %v6169 = vld [vmem:[%s9 + $0x4] sm:$0xf]
    %v6170 = vld [vmem:[%s9 + $0x8] sm:$0xf]
    %v6171 = vld [vmem:[%s9 + $0xc] sm:$0xf]
    %v6172 = vld [vmem:[%s9 + $0x10] sm:$0xf]
    %v6173 = vld [vmem:[%s9 + $0x14] sm:$0xf]
    %v6174 = vld [vmem:[%s9 + $0x18] sm:$0xf]
    %v6175 = vld [vmem:[%s9 + $0x1c] sm:$0xf]
    %v6176 = vld [vmem:[%s9 + $0x20] sm:$0xf]
    %v6177 = vld [vmem:[%s9 + $0x24] sm:$0xf]
    %v6178 = vld [vmem:[%s9 + $0x28] sm:$0xf]
    %v6179 = vld [vmem:[%s9 + $0x2c] sm:$0xf]
    %v6180 = vld [vmem:[%s9 + $0x30] sm:$0xf]
    %v6181 = vld [vmem:[%s9 + $0x34] sm:$0xf]
    %v6182 = vld [vmem:[%s9 + $0x38] sm:$0xf]
    %v6183 = vld [vmem:[%s9 + $0x3c] sm:$0xf]
    %v6184 = vld [vmem:[%s9 + $0x40] sm:$0xf]
    %v6185 = vld [vmem:[%s9 + $0x44] sm:$0xf]
    %v6186 = vld [vmem:[%s9 + $0x48] sm:$0xf]
    %v6187 = vld [vmem:[%s9 + $0x4c] sm:$0xf]
    %v6188 = vld [vmem:[%s9 + $0x50] sm:$0xf]
    %v6189 = vld [vmem:[%s9 + $0x54] sm:$0xf]
    %v6190 = vld [vmem:[%s9 + $0x58] sm:$0xf]
    %v6191 = vld [vmem:[%s9 + $0x5c] sm:$0xf]
    %v6192 = vld [vmem:[%s9 + $0x60] sm:$0xf]
    %v6193 = vld [vmem:[%s9 + $0x64] sm:$0xf]
    %v6194 = vld [vmem:[%s9 + $0x68] sm:$0xf]
    %v6195 = vld [vmem:[%s9 + $0x6c] sm:$0xf]
    %v6196 = vld [vmem:[%s9 + $0x70] sm:$0xf]
    %v6197 = vld [vmem:[%s9 + $0x74] sm:$0xf]
    %v6198 = vld [vmem:[%s9 + $0x78] sm:$0xf]
    %v6199 = vld [vmem:[%s9 + $0x7c] sm:$0xf]
    %v6200 = vld [vmem:[#allocation16] sm:$0x1]
    %v6202 = vperm.slane %v6200, 0
    %v6236 = vunpack.c.l.b16 %v6168
    %v6237 = vunpack.c.l.b16 %v6169
    %v6238 = vunpack.c.l.b16 %v6170
    %v6239 = vunpack.c.l.b16 %v6171
    %v6240 = vunpack.c.l.b16 %v6172
    %v6241 = vunpack.c.l.b16 %v6173
    %v6242 = vunpack.c.l.b16 %v6174
    %v6243 = vunpack.c.l.b16 %v6175
    %v6244 = vunpack.c.l.b16 %v6176
    %v6245 = vunpack.c.l.b16 %v6177
    %v6246 = vunpack.c.l.b16 %v6178
    %v6247 = vunpack.c.l.b16 %v6179
    %v6248 = vunpack.c.l.b16 %v6180
    %v6249 = vunpack.c.l.b16 %v6181
    %v6250 = vunpack.c.l.b16 %v6182
    %v6251 = vunpack.c.l.b16 %v6183
    %v6252 = vunpack.c.l.b16 %v6184
    %v6253 = vunpack.c.l.b16 %v6185
    %v6254 = vunpack.c.l.b16 %v6186
    %v6255 = vunpack.c.l.b16 %v6187
    %v6256 = vunpack.c.l.b16 %v6188
    %v6257 = vunpack.c.l.b16 %v6189
    %v6258 = vunpack.c.l.b16 %v6190
    %v6259 = vunpack.c.l.b16 %v6191
    %v6260 = vunpack.c.l.b16 %v6192
    %v6261 = vunpack.c.l.b16 %v6193
    %v6262 = vunpack.c.l.b16 %v6194
    %v6263 = vunpack.c.l.b16 %v6195
    %v6264 = vunpack.c.l.b16 %v6196
    %v6265 = vunpack.c.l.b16 %v6197
    %v6266 = vunpack.c.l.b16 %v6198
    %v6267 = vunpack.c.l.b16 %v6199
    %v6268 = vpack.c.b16 %v6237, %v6236
    %v6269 = vpack.c.b16 %v6239, %v6238
    %v6270 = vpack.c.b16 %v6241, %v6240
    %v6271 = vpack.c.b16 %v6243, %v6242
    %v6272 = vpack.c.b16 %v6245, %v6244
    %v6273 = vpack.c.b16 %v6247, %v6246
    %v6274 = vpack.c.b16 %v6249, %v6248
    %v6275 = vpack.c.b16 %v6251, %v6250
    %v6276 = vpack.c.b16 %v6253, %v6252
    %v6277 = vpack.c.b16 %v6255, %v6254
    %v6278 = vpack.c.b16 %v6257, %v6256
    %v6279 = vpack.c.b16 %v6259, %v6258
    %v6280 = vpack.c.b16 %v6261, %v6260
    %v6281 = vpack.c.b16 %v6263, %v6262
    %v6282 = vpack.c.b16 %v6265, %v6264
    %v6283 = vpack.c.b16 %v6267, %v6266
    %6300 = vmatpush.bf16.msra.mxu0 %v6275
    %6301 = vmatpush.bf16.msra.mxu0 %v6274
    %6302 = vmatpush.bf16.msra.mxu0 %v6273
    %6303 = vmatpush.bf16.msra.mxu0 %v6272
    %6304 = vmatpush.bf16.msra.mxu0 %v6271
    %6305 = vmatpush.bf16.msra.mxu0 %v6270
    %6306 = vmatpush.bf16.msra.mxu0 %v6269
    %6307 = vmatpush.bf16.msra.mxu0 %v6268
    %6308 = vmatmul.bf16.gmra.mxu0 %v6166
    %v6309 = vpop.f32.mrf.mxu0
    %v6310 = vadd.f32 %v6202, %v6309
    %v6311 = vpop.f32.mrf.mxu0
    %v6312 = vadd.f32 %v6202, %v6311
    %6313 = vdwg.mxu0
    %6314 = vmatpush.bf16.msra.mxu0 %v6283
    %6315 = vmatpush.bf16.msra.mxu0 %v6282
    %6316 = vmatpush.bf16.msra.mxu0 %v6281
    %6317 = vmatpush.bf16.msra.mxu0 %v6280
    %6318 = vmatpush.bf16.msra.mxu0 %v6279
    %6319 = vmatpush.bf16.msra.mxu0 %v6278
    %6320 = vmatpush.bf16.msra.mxu0 %v6277
    %6321 = vmatpush.bf16.msra.mxu0 %v6276
    %6322 = vmatmul.bf16.gmra.mxu0 %v6167
    %v6323 = vpop.f32.mrf.mxu0
    %v6324 = vadd.f32 %v6310, %v6323
    %v6325 = vpop.f32.mrf.mxu0
    %v6326 = vadd.f32 %v6312, %v6325
    %6327 = vdwg.mxu0
    %v6328 = vsub.f32 0.0, %v6324
    %v6329 = vsub.f32 0.0, %v6326
    %v6330 = vmul.f32 %v6328, 1.442695
    %v6331 = vpow.pop %v6330
    %v6332 = vmul.f32 %v6329, 1.442695
    %v6333 = vpow.pop %v6332
    %v6334 = vadd.f32 %v6331, 1.0
    %v6335 = vadd.f32 %v6333, 1.0
    %v6336 = vrcp.pop %v6334
    %v6337 = vrcp.pop %v6335
    %vm6338 = vcmask 64512
    %6339 = vst.msk [vmem:[%s11] sm:$0xff] %vm6338, %v6336
    %6340 = vst.msk [vmem:[%s11 + $0x8] sm:$0xff] %vm6338, %v6337
    // Predicated region
    $region86: #{tpu_custom_call.1} parent=1 // pred_check
      _
    $region87: #{tpu_custom_call.1} parent=1 // pred_check_branch
      %6342 = sbr.rel (0) target = $region89
    $region88: #{tpu_custom_call.1} parent=1 // pred_region
      _
    $region89: #{tpu_custom_call.1} parent=1 // pred_fallthru
      _
    // Predicated region
    $region90: #{tpu_custom_call.1} parent=1 // pred_check
      _
    $region91: #{tpu_custom_call.1} parent=1 // pred_check_branch
      %6344 = sbr.rel (0) target = $region93
    $region92: #{tpu_custom_call.1} parent=1 // pred_region
      _
    $region93: #{tpu_custom_call.1} parent=1 // pred_fallthru
      _
    %6345 = vsyncpa [#allocation3], 1
    %6346 = vsyncpa [#allocation5], 1
    %6347 = vsyncpa [#allocation8], 1
    %6348 = vsyncpa [#allocation11], 1
    %6349 = vsyncpa [#allocation14], 1
    %6350 = vsyncpa [#allocation17], 1

</llo_original>
